<compile_context>
chip_gen: v6e
topology: v6e:2x2x1
jax: 0.10.0
libtpu: 0.0.40
codegen_flags: <defaults>
</compile_context>

<pallas_src>
import functools

import numpy as np
import jax
import jax.numpy as jnp
from jax.experimental import pallas as pl
from jax.experimental.pallas import tpu as pltpu

LN_EPS = 1e-5        # torch nn.LayerNorm default eps
NORM_EPS = 1e-12     # torch F.normalize default eps
HIDDEN_DIM = 4096    # hard-coded in the PyTorch module

_SMEM_SPEC = pl.BlockSpec(memory_space=pltpu.MemorySpace.SMEM)


# ----------------------------------------------------------------------------
# Small helpers
# ----------------------------------------------------------------------------
def _round_up(x, m):
    return ((x + m - 1) // m) * m


def _pick_tile(n, max_tile, multiple):
    """Tile size <= max_tile, multiple of `multiple`, preferring >=2 grid steps
    (so both v7x TensorCores get work) when the batch allows it."""
    full = _round_up(max(n, 1), multiple)
    if full > max_tile:
        return max_tile
    half = _round_up((n + 1) // 2, multiple)
    return half if half < full else full


def _pad_rows(x, n_pad):
    n = x.shape[0]
    return x if n_pad == n else jnp.pad(x, ((0, n_pad - n), (0, 0)))


def _pad_cols(x, d_pad):
    d = x.shape[1]
    return x if d_pad == d else jnp.pad(x, ((0, 0), (0, d_pad - d)))


_CHIP_CONFIG = None


def _chip_config():
    """Generation-aware tiling / VMEM / hidden-dtype knobs."""
    global _CHIP_CONFIG
    if _CHIP_CONFIG is not None:
        return _CHIP_CONFIG
    try:
        kind = jax.devices()[0].device_kind.lower()
    except Exception:  # pragma: no cover - defensive
        kind = ""
    if "v5" in kind or "v6" in kind:
        # 128 MiB VMEM chips: big tiles + generous scoped-VMEM limit.
        _CHIP_CONFIG = {
            "max_row_tile": 512,
            "max_img_tile": 512,
            "vmem_limit": 100 * 1024 * 1024,
            # v5e has no bf16 VPU/EUP -> keep the hidden activations in f32 there.
            "hidden_dtype": jnp.float32 if "v5" in kind else jnp.bfloat16,
        }
    else:
        # v7x (64 MiB physical VMEM) or unknown: conservative sizing.
        _CHIP_CONFIG = {
            "max_row_tile": 256,
            "max_img_tile": 256,
            "vmem_limit": 40 * 1024 * 1024,
            "hidden_dtype": jnp.bfloat16,
        }
    return _CHIP_CONFIG


def _compiler_params(semantics, cfg):
    return pltpu.CompilerParams(dimension_semantics=semantics,
                                vmem_limit_bytes=cfg["vmem_limit"])


_BUFFERED_SUPPORTED = None


def _buffered_single_supported():
    """Runtime probe: can grid-invariant weight specs be single-buffered via
    pipeline_mode=pl.Buffered(1)?  (Halves resident-weight VMEM on v7x.)"""
    global _BUFFERED_SUPPORTED
    if _BUFFERED_SUPPORTED is not None:
        return _BUFFERED_SUPPORTED
    if not hasattr(pl, "Buffered"):
        _BUFFERED_SUPPORTED = False
        return False
    try:
        def _probe_kernel(x_ref, o_ref):
            o_ref[...] = x_ref[...]

        spec = pl.BlockSpec((8, 128), lambda i: (0, 0),
                            pipeline_mode=pl.Buffered(1))
        out = pl.pallas_call(
            _probe_kernel,
            out_shape=jax.ShapeDtypeStruct((8, 128), jnp.float32),
            grid=(1,),
            in_specs=[spec],
            out_specs=pl.BlockSpec((8, 128), lambda i: (0, 0)),
        )(jnp.zeros((8, 128), jnp.float32))
        jax.block_until_ready(out)
        _BUFFERED_SUPPORTED = True
    except Exception:
        _BUFFERED_SUPPORTED = False
    return _BUFFERED_SUPPORTED


# ----------------------------------------------------------------------------
# Kernels
# ----------------------------------------------------------------------------
def _text_path_kernel(x_ref, w1_ref, b1_ref, w2_ref, b2_ref, o_ref, on_ref, *,
                      hidden_dtype):
    # x: [TILE_M, D_t] f32. LayerNorm over the last dim (gamma/beta folded into
    # w1/b1 on the host), then the 2-layer MLP to [TILE_M, D_v_pad].
    x = x_ref[...].astype(jnp.float32)
    mean = jnp.mean(x, axis=-1, keepdims=True)
    var = jnp.mean(jnp.square(x - mean), axis=-1, keepdims=True)
    xn = (x - mean) * jax.lax.rsqrt(var + LN_EPS)

    # MXU matmuls consume bf16 operands; accumulation stays f32.
    h = jnp.dot(xn.astype(jnp.bfloat16), w1_ref[...],
                preferred_element_type=jnp.float32)
    # Bias-add + GELU on the 4096-wide hidden in bf16 where the VPU/EUP support
    # it (v6e/v7x); f32 on v5e.
    h = h.astype(hidden_dtype) + b1_ref[...].astype(hidden_dtype)
    # TODO(synk): ShareLockMLP source is not provided with the module; assumed
    # Linear -> GELU -> Linear with tanh-approx GELU (torch nn.GELU default is
    # exact erf; ~1e-3 level difference).
    h = jax.nn.gelu(h, approximate=True)
    y = jnp.dot(h.astype(jnp.bfloat16), w2_ref[...],
                preferred_element_type=jnp.float32) + b2_ref[...]

    # Raw projected text features are returned to the caller -> keep f32.
    o_ref[...] = y
    # L2-normalize epilogue (rows already resident); stored bf16 so the logits
    # kernel streams half the bytes and runs the MXU at full bf16 rate.
    inv = jax.lax.rsqrt(jnp.maximum(jnp.sum(y * y, axis=-1, keepdims=True),
                                    NORM_EPS * NORM_EPS))
    on_ref[...] = (y * inv).astype(on_ref.dtype)


def _logits_kernel(bias_ref, t_ref, i_ref, s_ref, o_ref):
    # t: [TILE_T, D] bf16 (already L2-normalized text)
    # i: [TILE_I, D] bf16 (raw, zero-padded image features)
    # s: [1, TILE_I] f32  == exp(logit_scale) / max(||image_row||, eps)
    # Contract on the last dim of both operands (no explicit transpose).
    acc = jax.lax.dot_general(
        t_ref[...], i_ref[...],
        dimension_numbers=(((1,), (1,)), ((), ())),
        preferred_element_type=jnp.float32)
    o_ref[...] = acc * s_ref[...] + bias_ref[0]


# ----------------------------------------------------------------------------
# Wrappers
# ----------------------------------------------------------------------------
def prepare_params(params):
    """One-time parameter preparation (hoist out of the per-call forward):
    fold LayerNorm gamma/beta into the first linear, pad, cast to bf16."""
    d_v = params["w2"].shape[1]
    d_v_pad = _round_up(d_v, 128)            # lane-dense feature axis

    ln_g = params["ln_g"].reshape(-1).astype(jnp.float32)
    ln_b = params["ln_b"].reshape(-1).astype(jnp.float32)
    w1 = params["w1"].astype(jnp.float32)
    b1 = params["b1"].reshape(1, -1).astype(jnp.float32)
    w2 = params["w2"].astype(jnp.float32)
    b2 = params["b2"].reshape(1, -1).astype(jnp.float32)

    w1_f = ln_g[:, None] * w1                # gamma row-scales w1
    b1_f = ln_b[None, :] @ w1 + b1           # beta folds into b1
    return {
        "w1": w1_f.astype(jnp.bfloat16),
        "b1": b1_f,
        "w2": _pad_cols(w2, d_v_pad).astype(jnp.bfloat16),
        "b2": _pad_cols(b2, d_v_pad),
        "logit_scale": params["logit_scale"].astype(jnp.float32),
        "logit_bias": params["logit_bias"].astype(jnp.float32),
        "d_v": d_v,
        "d_v_pad": d_v_pad,
    }


def text_path(text_features, prepared, d_v_pad, cfg):
    """Returns (raw_f32 [N_pad, d_v_pad], l2_normalized_bf16 [N_pad, d_v_pad], tile_m)."""
    n_t, d_t = text_features.shape
    # bf16 normalized output -> row tile must be a multiple of 16 (sublane packing).
    tile_m = _pick_tile(n_t, cfg["max_row_tile"], 16)
    n_pad = _round_up(n_t, tile_m)
    x = _pad_rows(text_features.astype(jnp.float32), n_pad)

    w1, b1, w2, b2 = prepared["w1"], prepared["b1"], prepared["w2"], prepared["b2"]
    single = _buffered_single_supported()

    # TODO(synk): for very large text/vision dims (weights >~24 MiB bf16) a
    # K-tiled fallback over the 4096 hidden axis would be needed to stay inside
    # v7x's 64 MiB VMEM; not implemented here.
    def weight_spec(shape):
        if single:
            return pl.BlockSpec(shape, lambda i: (0, 0),
                                pipeline_mode=pl.Buffered(1))
        return pl.BlockSpec(shape, lambda i: (0, 0))     # resident across grid

    def row_spec(d):
        return pl.BlockSpec((tile_m, d), lambda i: (i, 0))

    kernel = functools.partial(_text_path_kernel,
                               hidden_dtype=cfg["hidden_dtype"])
    raw, normed = pl.pallas_call(
        kernel,
        out_shape=(jax.ShapeDtypeStruct((n_pad, d_v_pad), jnp.float32),
                   jax.ShapeDtypeStruct((n_pad, d_v_pad), jnp.bfloat16)),
        grid=(n_pad // tile_m,),
        in_specs=[row_spec(d_t),
                  weight_spec(w1.shape), weight_spec(b1.shape),
                  weight_spec(w2.shape), weight_spec(b2.shape)],
        out_specs=(row_spec(d_v_pad), row_spec(d_v_pad)),
        compiler_params=_compiler_params(("parallel",), cfg),
    )(x, w1, b1, w2, b2)
    return raw, normed, tile_m


def logits_per_text_fn(text_norm_pad, image_bf16_pad, inv_scale, logit_bias,
                       tile_t, tile_i, cfg):
    n_t_pad, d_pad = text_norm_pad.shape
    n_i_pad = image_bf16_pad.shape[0]
    bias = jnp.reshape(logit_bias, (1,)).astype(jnp.float32)

    # Put the larger matrix on the outer grid axis (read from HBM once); the
    # smaller one is the one re-streamed on the inner axis.
    text_outer = n_t_pad >= n_i_pad
    if text_outer:
        grid = (n_t_pad // tile_t, n_i_pad // tile_i)
        t_map = lambda a, b: (a, 0)
        i_map = lambda a, b: (b, 0)
        s_map = lambda a, b: (0, b)
        o_map = lambda a, b: (a, b)
    else:
        grid = (n_i_pad // tile_i, n_t_pad // tile_t)
        t_map = lambda a, b: (b, 0)
        i_map = lambda a, b: (a, 0)
        s_map = lambda a, b: (0, a)
        o_map = lambda a, b: (b, a)

    return pl.pallas_call(
        _logits_kernel,
        out_shape=jax.ShapeDtypeStruct((n_t_pad, n_i_pad), jnp.float32),
        grid=grid,
        in_specs=[_SMEM_SPEC,
                  pl.BlockSpec((tile_t, d_pad), t_map),
                  pl.BlockSpec((tile_i, d_pad), i_map),
                  pl.BlockSpec((1, tile_i), s_map)],
        out_specs=pl.BlockSpec((tile_t, tile_i), o_map),
        compiler_params=_compiler_params(("parallel", "parallel"), cfg),
    )(bias, text_norm_pad, image_bf16_pad, inv_scale)


def init_params(key, text_dimension, vision_dimension, hidden_dim=HIDDEN_DIM):
    """Deterministic parameter init matching the module's _initialize_weights."""
    target_dimension = vision_dimension  # module sets target_dimension = vision_dimesion
    k1, k2 = jax.random.split(key)

    def xavier_uniform(k, fan_in, fan_out):
        # torch xavier_uniform_ on a Linear weight (out, in): bound = sqrt(6/(in+out))
        bound = float(np.sqrt(6.0 / (fan_in + fan_out)))
        # stored as (in, out) so kernels compute x @ W
        return jax.random.uniform(k, (fan_in, fan_out), jnp.float32, -bound, bound)

    return {
        "ln_g": jnp.ones((1, text_dimension), jnp.float32),      # LayerNorm weight = 1
        "ln_b": jnp.zeros((1, text_dimension), jnp.float32),     # LayerNorm bias   = 0
        "w1": xavier_uniform(k1, text_dimension, hidden_dim),
        "b1": jnp.zeros((1, hidden_dim), jnp.float32),           # Linear bias = 0
        "w2": xavier_uniform(k2, hidden_dim, target_dimension),
        "b2": jnp.zeros((1, target_dimension), jnp.float32),
        "logit_scale": jnp.array(np.log(1.0 / 0.07), jnp.float32),
        "logit_bias": jnp.array(-10.0, jnp.float32),
    }


def share_lock_forward(params, image_features=None, text_features=None,
                       extra_text_features=None, compute_logits=False,
                       prepared=None):
    del extra_text_features  # unused (matches the PyTorch module's forward)
    if image_features is None and text_features is None:
        raise ValueError(
            "At least one of image_features and text_features should be provided.")

    if prepared is None:
        # For repeated forward calls, hoist this out and pass `prepared=`.
        prepared = prepare_params(params)
    cfg = _chip_config()
    d_v, d_v_pad = prepared["d_v"], prepared["d_v_pad"]

    text_out = None
    text_norm_pad = None
    tile_t = None
    if text_features is not None:
        raw_pad, text_norm_pad, tile_t = text_path(text_features, prepared,
                                                   d_v_pad, cfg)
        n_t = text_features.shape[0]
        text_out = raw_pad[:n_t, :d_v]

    logits_per_text = None
    if (compute_logits and image_features is not None and text_out is not None
            and image_features.size > 0 and text_out.size > 0):
        n_t = text_out.shape[0]
        n_i = image_features.shape[0]
        tile_i = _pick_tile(n_i, cfg["max_img_tile"], 128)  # lane-dense output tile
        n_i_pad = _round_up(n_i, tile_i)

        # Image normalization fused into the logits kernel: the kernel streams
        # the raw (padded) bf16 image features and applies a precomputed f32
        # inverse-norm column scale (pre-multiplied by exp(logit_scale)).
        img_bf16 = jnp.pad(image_features.astype(jnp.bfloat16),
                           ((0, n_i_pad - n_i), (0, d_v_pad - d_v)))
        sq = jnp.sum(jnp.square(image_features.astype(jnp.float32)), axis=-1)
        inv_scale = (jax.lax.rsqrt(jnp.maximum(sq, NORM_EPS * NORM_EPS))
                     * jnp.exp(prepared["logit_scale"]))
        inv_scale = jnp.pad(inv_scale, (0, n_i_pad - n_i)).reshape(1, n_i_pad)

        logits_pad = logits_per_text_fn(text_norm_pad, img_bf16, inv_scale,
                                        prepared["logit_bias"], tile_t, tile_i,
                                        cfg)
        logits_per_text = logits_pad[:n_t, :n_i]

    return {
        "image_features": image_features,
        "text_features": text_out,
        "logits_per_text": logits_per_text,
        "logit_scale": jnp.exp(params["logit_scale"]),
        "logit_bias": params["logit_bias"],
    }


# ----------------------------------------------------------------------------
# Pure-JAX reference (for a loose numeric sanity check)
# ----------------------------------------------------------------------------
def _reference_forward(params, image_features, text_features):
    x = text_features.astype(jnp.float32)
    mean = jnp.mean(x, axis=-1, keepdims=True)
    var = jnp.mean(jnp.square(x - mean), axis=-1, keepdims=True)
    xn = (x - mean) * jax.lax.rsqrt(var + LN_EPS)
    xn = xn * params["ln_g"].reshape(-1) + params["ln_b"].reshape(-1)
    h = jax.nn.gelu(xn @ params["w1"] + params["b1"].reshape(-1), approximate=True)
    t = h @ params["w2"] + params["b2"].reshape(-1)
    tn = t / jnp.maximum(jnp.linalg.norm(t, axis=-1, keepdims=True), NORM_EPS)
    im = image_features.astype(jnp.float32)
    imn = im / jnp.maximum(jnp.linalg.norm(im, axis=-1, keepdims=True), NORM_EPS)
    logits = tn @ imn.T * jnp.exp(params["logit_scale"]) + params["logit_bias"]
    return t, logits


# ----------------------------------------------------------------------------
# Main
# ----------------------------------------------------------------------------
if __name__ == "__main__":
    key = jax.random.PRNGKey(0)
    k_param, k_img, k_txt = jax.random.split(key, 3)

    vision_dim = 64   # target_dimension = vision_dimension in the module
    text_dim = 32
    n_images = 8
    n_texts = 8

    params = init_params(k_param, text_dim, vision_dim)
    prepared = prepare_params(params)   # hoisted: once per parameter set

    image_features = jax.random.normal(k_img, (n_images, vision_dim), jnp.float32)
    text_features = jax.random.normal(k_txt, (n_texts, text_dim), jnp.float32)

    out = share_lock_forward(params,
                             image_features=image_features,
                             text_features=text_features,
                             compute_logits=True,
                             prepared=prepared)

    jax.block_until_ready(out["text_features"])
    jax.block_until_ready(out["logits_per_text"])

    assert out["text_features"].shape == (n_texts, vision_dim)
    assert out["logits_per_text"].shape == (n_texts, n_images)
    assert bool(jnp.all(jnp.isfinite(out["text_features"])))
    assert bool(jnp.all(jnp.isfinite(out["logits_per_text"])))

    # Loose tolerance vs f32 reference (kernel uses bf16 MXU operands).
    ref_t, ref_logits = _reference_forward(params, image_features, text_features)
    assert float(jnp.max(jnp.abs(out["text_features"] - ref_t))) < 0.1
    assert float(jnp.max(jnp.abs(out["logits_per_text"] - ref_logits))) < 0.5

    print("KERNEL_OK")
</pallas_src>

<mosaic_0001>
module attributes {stable_mosaic.version = 11 : i64} {
  func.func @_probe_kernel(%arg0: i32, %arg1: memref<8x128xf32, #tpu.memory_space<vmem>>, %arg2: memref<8x128xf32, #tpu.memory_space<vmem>>) attributes {dimension_semantics = [#tpu.dimension_semantics<arbitrary>], iteration_bounds = array<i64: 1>, scalar_prefetch = 0 : i64, scratch_operands = 0 : i64, tpu.core_type = #tpu.core_type<tc>, window_params = [{pipeline_mode = #tpu.pipeline_mode<synchronous>, transform_indices = @transform_0, window_bounds = array<i64: 8, 128>}, {pipeline_mode = #tpu.pipeline_mode<synchronous>, transform_indices = @transform_1, window_bounds = array<i64: 8, 128>}]} {
    %c0 = arith.constant 0 : index
    %c0_0 = arith.constant 0 : index
    %0 = vector.load %arg1[%c0, %c0_0] : memref<8x128xf32, #tpu.memory_space<vmem>>, vector<8x128xf32>
    %c0_1 = arith.constant 0 : index
    %c0_2 = arith.constant 0 : index
    %1 = vector.load %arg2[%c0_1, %c0_2] : memref<8x128xf32, #tpu.memory_space<vmem>>, vector<8x128xf32>
    tpu.vector_store %arg2[%c0_1, %c0_2], %0 {strides = array<i32>} : memref<8x128xf32, #tpu.memory_space<vmem>>, vector<8x128xf32>,
    return
  }
  func.func @transform_0(%arg0: i32) -> (i32, i32) {
    %c0_i32 = arith.constant 0 : i32
    %c0_i32_0 = arith.constant 0 : i32
    %c0_i32_1 = arith.constant 0 : i32
    return %c0_i32, %c0_i32_0 : i32, i32
  }
  func.func @transform_1(%arg0: i32) -> (i32, i32) {
    %c0_i32 = arith.constant 0 : i32
    %c0_i32_0 = arith.constant 0 : i32
    %c0_i32_1 = arith.constant 0 : i32
    return %c0_i32, %c0_i32_0 : i32, i32
  }
}

module attributes {stable_mosaic.version = 11 : i64} {
  func.func @_text_path_kernel(%arg0: i32, %arg1: memref<16x32xf32, #tpu.memory_space<vmem>>, %arg2: memref<32x4096xbf16, #tpu.memory_space<vmem>>, %arg3: memref<1x4096xf32, #tpu.memory_space<vmem>>, %arg4: memref<4096x128xbf16, #tpu.memory_space<vmem>>, %arg5: memref<1x128xf32, #tpu.memory_space<vmem>>, %arg6: memref<16x128xf32, #tpu.memory_space<vmem>>, %arg7: memref<16x128xbf16, #tpu.memory_space<vmem>>) attributes {dimension_semantics = [#tpu.dimension_semantics<parallel>], iteration_bounds = array<i64: 1>, scalar_prefetch = 0 : i64, scratch_operands = 0 : i64, tpu.core_type = #tpu.core_type<tc>, window_params = [{transform_indices = @transform_0, window_bounds = array<i64: 16, 32>}, {pipeline_mode = #tpu.pipeline_mode<synchronous>, transform_indices = @transform_1, window_bounds = array<i64: 32, 4096>}, {pipeline_mode = #tpu.pipeline_mode<synchronous>, transform_indices = @transform_2, window_bounds = array<i64: 1, 4096>}, {pipeline_mode = #tpu.pipeline_mode<synchronous>, transform_indices = @transform_3, window_bounds = array<i64: 4096, 128>}, {pipeline_mode = #tpu.pipeline_mode<synchronous>, transform_indices = @transform_4, window_bounds = array<i64: 1, 128>}, {transform_indices = @transform_5, window_bounds = array<i64: 16, 128>}, {transform_indices = @transform_6, window_bounds = array<i64: 16, 128>}]} {
    %c0 = arith.constant 0 : index
    %c0_0 = arith.constant 0 : index
    %0 = vector.load %arg1[%c0, %c0_0] : memref<16x32xf32, #tpu.memory_space<vmem>>, vector<16x32xf32>
    %cst = arith.constant dense<0.000000e+00> : vector<16xf32>
    %1 = vector.multi_reduction <add>, %0, %cst [1] : vector<16x32xf32> to vector<16xf32>
    %2 = vector.shape_cast %1 : vector<16xf32> to vector<16x1xf32>
    %cst_1 = arith.constant 3.200000e+01 : f32
    %3 = vector.broadcast %cst_1 : f32 to vector<16x1xf32>
    %4 = arith.divf %2, %3 : vector<16x1xf32>
    %5 = vector.broadcast %4 : vector<16x1xf32> to vector<16x32xf32>
    %6 = arith.subf %0, %5 : vector<16x32xf32>
    %7 = arith.mulf %6, %6 : vector<16x32xf32>
    %cst_2 = arith.constant dense<0.000000e+00> : vector<16xf32>
    %8 = vector.multi_reduction <add>, %7, %cst_2 [1] : vector<16x32xf32> to vector<16xf32>
    %9 = vector.shape_cast %8 : vector<16xf32> to vector<16x1xf32>
    %cst_3 = arith.constant 3.200000e+01 : f32
    %10 = vector.broadcast %cst_3 : f32 to vector<16x1xf32>
    %11 = arith.divf %9, %10 : vector<16x1xf32>
    %12 = vector.broadcast %4 : vector<16x1xf32> to vector<16x32xf32>
    %13 = arith.subf %0, %12 : vector<16x32xf32>
    %cst_4 = arith.constant 9.99999974E-6 : f32
    %14 = vector.broadcast %cst_4 : f32 to vector<16x1xf32>
    %15 = arith.addf %11, %14 : vector<16x1xf32>
    %16 = math.rsqrt %15 : vector<16x1xf32>
    %17 = vector.broadcast %16 : vector<16x1xf32> to vector<16x32xf32>
    %18 = arith.mulf %13, %17 : vector<16x32xf32>
    %19 = arith.truncf %18 : vector<16x32xf32> to vector<16x32xbf16>
    %c0_5 = arith.constant 0 : index
    %c0_6 = arith.constant 0 : index
    %20 = vector.load %arg2[%c0_5, %c0_6] : memref<32x4096xbf16, #tpu.memory_space<vmem>>, vector<32x4096xbf16>
    %cst_7 = arith.constant dense<0.000000e+00> : vector<16x4096xf32>
    %21 = tpu.matmul %19, %20, %cst_7 {dimension_numbers = #tpu.dot_dimension_numbers<[1], [0], [0], [1], [0, 0, 1, 1], [], []>} : vector<16x32xbf16>, vector<32x4096xbf16>, vector<16x4096xf32> -> vector<16x4096xf32>
    %22 = arith.truncf %21 : vector<16x4096xf32> to vector<16x4096xbf16>
    %c0_8 = arith.constant 0 : index
    %c0_9 = arith.constant 0 : index
    %23 = vector.load %arg3[%c0_8, %c0_9] : memref<1x4096xf32, #tpu.memory_space<vmem>>, vector<1x4096xf32>
    %24 = arith.truncf %23 : vector<1x4096xf32> to vector<1x4096xbf16>
    %25 = vector.broadcast %24 : vector<1x4096xbf16> to vector<16x4096xbf16>
    %26 = arith.addf %22, %25 : vector<16x4096xbf16>
    %27 = arith.mulf %26, %26 : vector<16x4096xbf16>
    %28 = arith.mulf %26, %27 : vector<16x4096xbf16>
    %cst_10 = arith.constant 4.467770e-02 : bf16
    %29 = vector.broadcast %cst_10 : bf16 to vector<16x4096xbf16>
    %30 = arith.mulf %29, %28 : vector<16x4096xbf16>
    %31 = arith.addf %26, %30 : vector<16x4096xbf16>
    %cst_11 = arith.constant 7.968750e-01 : bf16
    %32 = vector.broadcast %cst_11 : bf16 to vector<16x4096xbf16>
    %33 = arith.mulf %32, %31 : vector<16x4096xbf16>
    %34 = math.tanh %33 : vector<16x4096xbf16>
    %cst_12 = arith.constant 1.000000e+00 : bf16
    %35 = vector.broadcast %cst_12 : bf16 to vector<16x4096xbf16>
    %36 = arith.addf %35, %34 : vector<16x4096xbf16>
    %cst_13 = arith.constant 5.000000e-01 : bf16
    %37 = vector.broadcast %cst_13 : bf16 to vector<16x4096xbf16>
    %38 = arith.mulf %37, %36 : vector<16x4096xbf16>
    %39 = arith.mulf %26, %38 : vector<16x4096xbf16>
    %c0_14 = arith.constant 0 : index
    %c0_15 = arith.constant 0 : index
    %40 = vector.load %arg4[%c0_14, %c0_15] : memref<4096x128xbf16, #tpu.memory_space<vmem>>, vector<4096x128xbf16>
    %cst_16 = arith.constant dense<0.000000e+00> : vector<16x128xf32>
    %41 = tpu.matmul %39, %40, %cst_16 {dimension_numbers = #tpu.dot_dimension_numbers<[1], [0], [0], [1], [0, 0, 1, 1], [], []>} : vector<16x4096xbf16>, vector<4096x128xbf16>, vector<16x128xf32> -> vector<16x128xf32>
    %c0_17 = arith.constant 0 : index
    %c0_18 = arith.constant 0 : index
    %42 = vector.load %arg5[%c0_17, %c0_18] : memref<1x128xf32, #tpu.memory_space<vmem>>, vector<1x128xf32>
    %43 = vector.broadcast %42 : vector<1x128xf32> to vector<16x128xf32>
    %44 = arith.addf %41, %43 : vector<16x128xf32>
    %c0_19 = arith.constant 0 : index
    %c0_20 = arith.constant 0 : index
    %45 = vector.load %arg6[%c0_19, %c0_20] : memref<16x128xf32, #tpu.memory_space<vmem>>, vector<16x128xf32>
    tpu.vector_store %arg6[%c0_19, %c0_20], %44 {strides = array<i32>} : memref<16x128xf32, #tpu.memory_space<vmem>>, vector<16x128xf32>,
    %46 = arith.mulf %44, %44 : vector<16x128xf32>
    %cst_21 = arith.constant dense<0.000000e+00> : vector<16xf32>
    %47 = vector.multi_reduction <add>, %46, %cst_21 [1] : vector<16x128xf32> to vector<16xf32>
    %48 = vector.shape_cast %47 : vector<16xf32> to vector<16x1xf32>
    %cst_22 = arith.constant 1.000000e-24 : f32
    %49 = vector.broadcast %cst_22 : f32 to vector<16x1xf32>
    %50 = arith.maximumf %48, %49 : vector<16x1xf32>
    %51 = math.rsqrt %50 : vector<16x1xf32>
    %52 = vector.broadcast %51 : vector<16x1xf32> to vector<16x128xf32>
    %53 = arith.mulf %44, %52 : vector<16x128xf32>
    %54 = arith.truncf %53 : vector<16x128xf32> to vector<16x128xbf16>
    %c0_23 = arith.constant 0 : index
    %c0_24 = arith.constant 0 : index
    %55 = vector.load %arg7[%c0_23, %c0_24] : memref<16x128xbf16, #tpu.memory_space<vmem>>, vector<16x128xbf16>
    tpu.vector_store %arg7[%c0_23, %c0_24], %54 {strides = array<i32>} : memref<16x128xbf16, #tpu.memory_space<vmem>>, vector<16x128xbf16>,
    return
  }
  func.func @transform_0(%arg0: i32) -> (i32, i32) {
    %c0_i32 = arith.constant 0 : i32
    %c0_i32_0 = arith.constant 0 : i32
    return %arg0, %c0_i32 : i32, i32
  }
  func.func @transform_1(%arg0: i32) -> (i32, i32) {
    %c0_i32 = arith.constant 0 : i32
    %c0_i32_0 = arith.constant 0 : i32
    %c0_i32_1 = arith.constant 0 : i32
    return %c0_i32, %c0_i32_0 : i32, i32
  }
  func.func @transform_2(%arg0: i32) -> (i32, i32) {
    %c0_i32 = arith.constant 0 : i32
    %c0_i32_0 = arith.constant 0 : i32
    %c0_i32_1 = arith.constant 0 : i32
    return %c0_i32, %c0_i32_0 : i32, i32
  }
  func.func @transform_3(%arg0: i32) -> (i32, i32) {
    %c0_i32 = arith.constant 0 : i32
    %c0_i32_0 = arith.constant 0 : i32
    %c0_i32_1 = arith.constant 0 : i32
    return %c0_i32, %c0_i32_0 : i32, i32
  }
  func.func @transform_4(%arg0: i32) -> (i32, i32) {
    %c0_i32 = arith.constant 0 : i32
    %c0_i32_0 = arith.constant 0 : i32
    %c0_i32_1 = arith.constant 0 : i32
    return %c0_i32, %c0_i32_0 : i32, i32
  }
  func.func @transform_5(%arg0: i32) -> (i32, i32) {
    %c0_i32 = arith.constant 0 : i32
    %c0_i32_0 = arith.constant 0 : i32
    return %arg0, %c0_i32 : i32, i32
  }
  func.func @transform_6(%arg0: i32) -> (i32, i32) {
    %c0_i32 = arith.constant 0 : i32
    %c0_i32_0 = arith.constant 0 : i32
    return %arg0, %c0_i32 : i32, i32
  }
}

</mosaic_0001>

<llo_original>
// kernel: tpu_custom_call.1
$region0: #{tpu_custom_call.1}
  #allocation0 [shape = 'u32[]', space=smem, size = 0x4, offset = 0x4, fixed_abs, tag = 'smem constant byte address 0x4 - core index']
  #allocation1 [shape = 'u32[144,128]{1,0:T(1,128)}', space=vmem, size = 0x12000, scoped, tag = 'internal scratch']
  %s0 = inlined_call_operand.hbm [shape: f32[8,128], index: 0, kind: input, shape index: {}]
  %s1 = inlined_call_operand.hbm [shape: f32[8,128], index: 1, kind: output, shape index: {}]
  %s2 = sld [smem:[#allocation0]]
  $region18: #{tpu_custom_call.1} parent=0
    _
  %s4 = ssub.s32 1, %s2
  %s5 = scalar_select 0, %s4, %s2
  $region1: #{tpu_custom_call.1} parent=0
    #allocation2 [shape = 'u8[4096]{0}', space=vmem, size = 0x1000, scoped, tag = 'input window, operand 0, single buffered']
    #allocation3 [shape = 's32[1]{0}', space=sflag, size = 0x4, scoped, tag = 'scoped memory for tpu_custom_call.1']
    #allocation4 [shape = 's32[1]{0}', space=sflag, size = 0x4, scoped, tag = 'scoped memory for tpu_custom_call.1']
    #allocation5 [shape = 'u8[4096]{0}', space=vmem, size = 0x1000, scoped, tag = 'output window, operand 0, single buffered']
    %6 = vsyncpa [#allocation3], 0
    %7 = vsyncpa [#allocation4], 0
    // Predicated region
    $region2: #{tpu_custom_call.1} parent=1 // pred_check
      _
    $region3: #{tpu_custom_call.1} parent=1 // pred_check_branch
      %9 = sbr.rel (0) target = $region5
    $region4: #{tpu_custom_call.1} parent=1 // pred_region
      %s11 = ssub.s32 128, 128
      %12 = vsyncadd [#allocation3], %s11
      %s14 = sshll.u32 [#allocation2], 4
      %s15 = int_to_ptr.vmem [resolvable:$true] %s14
      %17 = dma.hbm_to_vmem [thread:$0]  %s0, 128, %s15, [#allocation3]
    $region5: #{tpu_custom_call.1} parent=1 // pred_fallthru
      _
    // Predicated region
    $region6: #{tpu_custom_call.1} parent=1 // pred_check
      _
    $region7: #{tpu_custom_call.1} parent=1 // pred_check_branch
      %19 = sbr.rel (0) target = $region9
    $region8: #{tpu_custom_call.1} parent=1 // pred_region
      %20 = dma.done [#allocation3], 128
    $region9: #{tpu_custom_call.1} parent=1 // pred_fallthru
      _
    %v21 = vld [vmem:[#allocation2] sm:$0xff]
    %22 = vst [vmem:[#allocation5] sm:$0xff] %v21
    // Predicated region
    $region10: #{tpu_custom_call.1} parent=1 // pred_check
      _
    $region11: #{tpu_custom_call.1} parent=1 // pred_check_branch
      %24 = sbr.rel (0) target = $region13
    $region12: #{tpu_custom_call.1} parent=1 // pred_region
      %s26 = ssub.s32 128, 128
      %27 = vsyncadd [#allocation4], %s26
      %s29 = sshll.u32 [#allocation5], 4
      %s30 = int_to_ptr.vmem [resolvable:$true] %s29
      %32 = dma.vmem_to_hbm [thread:$0]  %s30, 128, %s1, [#allocation4]
    $region13: #{tpu_custom_call.1} parent=1 // pred_fallthru
      _
    // Predicated region
    $region14: #{tpu_custom_call.1} parent=1 // pred_check
      _
    $region15: #{tpu_custom_call.1} parent=1 // pred_check_branch
      %34 = sbr.rel (0) target = $region17
    $region16: #{tpu_custom_call.1} parent=1 // pred_region
      %35 = dma.done [#allocation4], 128
    $region17: #{tpu_custom_call.1} parent=1 // pred_fallthru
      _
    %36 = vsyncpa [#allocation3], 1
    %37 = vsyncpa [#allocation4], 1

// kernel: tpu_custom_call.1
$region0: #{tpu_custom_call.1}
  #allocation0 [shape = 'u32[]', space=smem, size = 0x4, offset = 0x4, fixed_abs, tag = 'smem constant byte address 0x4 - core index']
  #allocation1 [shape = 'u32[144,128]{1,0:T(1,128)}', space=vmem, size = 0x12000, scoped, tag = 'internal scratch']
  %s0 = inlined_call_operand.hbm [shape: f32[16,32], index: 0, kind: input, shape index: {}]
  %s1 = inlined_call_operand.hbm [shape: bf16[32,4096], index: 1, kind: input, shape index: {}]
  %s2 = inlined_call_operand.hbm [shape: f32[1,4096], index: 2, kind: input, shape index: {}]
  %s3 = inlined_call_operand.hbm [shape: bf16[4096,128], index: 3, kind: input, shape index: {}]
  %s4 = inlined_call_operand.vmem [shape: f32[1,128], index: 4, kind: input, shape index: {}]
  %s5 = inlined_call_operand.hbm [shape: f32[16,128], index: 5, kind: output, shape index: {0}]
  %s6 = inlined_call_operand.hbm [shape: bf16[16,128], index: 6, kind: output, shape index: {1}]
  %7 = xla_tuple %s5, %s6
  %s8 = sld [smem:[#allocation0]]
  $region54: #{tpu_custom_call.1} parent=0
    _
  %s10 = ssub.s32 1, %s8
  %s11 = scalar_select 0, %s10, %s8
  $region1: #{tpu_custom_call.1} parent=0
    #allocation2 [shape = 'u8[8192]{0}', space=vmem, size = 0x2000, scoped, tag = 'input window, operand 0, single buffered']
    #allocation3 [shape = 's32[1]{0}', space=sflag, size = 0x4, scoped, tag = 'scoped memory for tpu_custom_call.1']
    #allocation4 [shape = 's32[1]{0}', space=sflag, size = 0x4, scoped, tag = 'scoped memory for tpu_custom_call.1']
    #allocation5 [shape = 'u8[262144]{0}', space=vmem, size = 0x40000, scoped, tag = 'input window, operand 1, single buffered']
    #allocation6 [shape = 's32[1]{0}', space=sflag, size = 0x4, scoped, tag = 'scoped memory for tpu_custom_call.1']
    #allocation7 [shape = 'u8[16384]{0}', space=vmem, size = 0x4000, scoped, tag = 'input window, operand 2, single buffered']
    #allocation8 [shape = 'u8[1048576]{0}', space=vmem, size = 0x100000, scoped, tag = 'input window, operand 3, single buffered']
    #allocation9 [shape = 's32[1]{0}', space=sflag, size = 0x4, scoped, tag = 'scoped memory for tpu_custom_call.1']
    #allocation10 [shape = 'u8[8192]{0}', space=vmem, size = 0x2000, scoped, tag = 'output window, operand 0, single buffered']
    #allocation11 [shape = 'u8[4096]{0}', space=vmem, size = 0x1000, scoped, tag = 'output window, operand 1, single buffered']
    #allocation12 [shape = 's32[1]{0}', space=sflag, size = 0x4, scoped, tag = 'scoped memory for tpu_custom_call.1']
    %12 = vsyncpa [#allocation3], 0
    %13 = vsyncpa [#allocation6], 0
    %14 = vsyncpa [#allocation9], 0
    %15 = vsyncpa [#allocation4], 0
    %16 = vsyncpa [#allocation12], 0
    // Predicated region
    $region2: #{tpu_custom_call.1} parent=1 // pred_check
      _
    $region3: #{tpu_custom_call.1} parent=1 // pred_check_branch
      %18 = sbr.rel (0) target = $region5
    $region4: #{tpu_custom_call.1} parent=1 // pred_region
      %s20 = ssub.s32 256, 256
      %21 = vsyncadd [#allocation3], %s20
      %s22 = sshll.u32 [#allocation2], 4
      %s23 = int_to_ptr.vmem [resolvable:$true] %s22
      %28 = dma.hbm_to_vmem [thread:$0]  %s0, 256, %s23, [#allocation3], 128, 128, 8
    $region5: #{tpu_custom_call.1} parent=1 // pred_fallthru
      _
    // Predicated region
    $region6: #{tpu_custom_call.1} parent=1 // pred_check
      _
    $region7: #{tpu_custom_call.1} parent=1 // pred_check_branch
      %30 = sbr.rel (0) target = $region9
    $region8: #{tpu_custom_call.1} parent=1 // pred_region
      %s32 = ssub.s32 8192, 8192
      %33 = vsyncadd [#allocation6], %s32
      %s34 = sshll.u32 [#allocation5], 4
      %s35 = int_to_ptr.vmem [resolvable:$true] %s34
      %40 = dma.hbm_to_vmem [thread:$0]  %s1, 8192, %s35, [#allocation6], 2048, 2048, 128
    $region9: #{tpu_custom_call.1} parent=1 // pred_fallthru
      _
    // Predicated region
    $region10: #{tpu_custom_call.1} parent=1 // pred_check
      _
    $region11: #{tpu_custom_call.1} parent=1 // pred_check_branch
      %42 = sbr.rel (0) target = $region13
    $region12: #{tpu_custom_call.1} parent=1 // pred_region
      %s44 = ssub.s32 512, 512
      %45 = vsyncadd [#allocation6], %s44
      %s47 = sshll.u32 [#allocation7], 4
      %s48 = int_to_ptr.vmem [resolvable:$true] %s47
      %50 = dma.hbm_to_vmem [thread:$0]  %s2, 512, %s48, [#allocation6]
    $region13: #{tpu_custom_call.1} parent=1 // pred_fallthru
      _
    // Predicated region
    $region14: #{tpu_custom_call.1} parent=1 // pred_check
      _
    $region15: #{tpu_custom_call.1} parent=1 // pred_check_branch
      %52 = sbr.rel (0) target = $region17
    $region16: #{tpu_custom_call.1} parent=1 // pred_region
      %s54 = ssub.s32 32768, 32768
      %55 = vsyncadd [#allocation9], %s54
      %s56 = sshll.u32 [#allocation8], 4
      %s57 = int_to_ptr.vmem [resolvable:$true] %s56
      %62 = dma.hbm_to_vmem [thread:$0]  %s3, 32768, %s57, [#allocation9], 64, 64, 4
    $region17: #{tpu_custom_call.1} parent=1 // pred_fallthru
      _
    // Predicated region
    $region18: #{tpu_custom_call.1} parent=1 // pred_check
      _
    $region19: #{tpu_custom_call.1} parent=1 // pred_check_branch
      %64 = sbr.rel (0) target = $region21
    $region20: #{tpu_custom_call.1} parent=1 // pred_region
      _
    $region21: #{tpu_custom_call.1} parent=1 // pred_fallthru
      _
    // Predicated region
    $region22: #{tpu_custom_call.1} parent=1 // pred_check
      _
    $region23: #{tpu_custom_call.1} parent=1 // pred_check_branch
      %66 = sbr.rel (0) target = $region25
    $region24: #{tpu_custom_call.1} parent=1 // pred_region
      %67 = dma.done [#allocation3], 256
    $region25: #{tpu_custom_call.1} parent=1 // pred_fallthru
      _
    // Predicated region
    $region26: #{tpu_custom_call.1} parent=1 // pred_check
      _
    $region27: #{tpu_custom_call.1} parent=1 // pred_check_branch
      %69 = sbr.rel (0) target = $region29
    $region28: #{tpu_custom_call.1} parent=1 // pred_region
      %70 = dma.done [#allocation6], 8192
    $region29: #{tpu_custom_call.1} parent=1 // pred_fallthru
      _
    // Predicated region
    $region30: #{tpu_custom_call.1} parent=1 // pred_check
      _
    $region31: #{tpu_custom_call.1} parent=1 // pred_check_branch
      %72 = sbr.rel (0) target = $region33
    $region32: #{tpu_custom_call.1} parent=1 // pred_region
      %73 = dma.done [#allocation6], 512
    $region33: #{tpu_custom_call.1} parent=1 // pred_fallthru
      _
    // Predicated region
    $region34: #{tpu_custom_call.1} parent=1 // pred_check
      _
    $region35: #{tpu_custom_call.1} parent=1 // pred_check_branch
      %75 = sbr.rel (0) target = $region37
    $region36: #{tpu_custom_call.1} parent=1 // pred_region
      %76 = dma.done [#allocation9], 32768
    $region37: #{tpu_custom_call.1} parent=1 // pred_fallthru
      _
    %v82 = vld [vmem:[#allocation2] sm:$0xff]
    %v83 = vld [vmem:[#allocation2 + $0x8] sm:$0xff]
    %vm84 = vcmask 261120
    %v85 = vsel %vm84, %v82, 0.0
    %86 = vadd.xlane.f32.xlu0 %v85
    %v87 = vpop.xlane.xlu0 %86
    %v88 = vsel %vm84, %v83, 0.0
    %89 = vadd.xlane.f32.xlu0 %v88
    %v90 = vpop.xlane.xlu0 %89
    %v91 = vrcp.pop 32.0
    %v92 = vmul.f32 %v87, %v91
    %v93 = vmul.f32 %v90, %v91
    %v94 = vsub.f32 %v82, %v92
    %v95 = vsub.f32 %v83, %v93
    %v96 = vmul.f32 %v94, %v94
    %v97 = vmul.f32 %v95, %v95
    %v98 = vsel %vm84, %v96, 0.0
    %99 = vadd.xlane.f32.xlu0 %v98
    %v100 = vpop.xlane.xlu0 %99
    %v101 = vsel %vm84, %v97, 0.0
    %102 = vadd.xlane.f32.xlu0 %v101
    %v103 = vpop.xlane.xlu0 %102
    %v104 = vmul.f32 %v100, %v91
    %v105 = vmul.f32 %v103, %v91
    %v106 = vadd.f32 %v104, 1e-05
    %v107 = vadd.f32 %v105, 1e-05
    %v108 = vrsqrt.pop %v106
    %v109 = vrsqrt.pop %v107
    %v110 = vmul.f32 %v94, %v108
    %v111 = vmul.f32 %v95, %v109
    %v112 = vpack.c.bf16 %v111, %v110
    %v113 = vld [vmem:[#allocation5] sm:$0xff]
    %v114 = vld [vmem:[#allocation5 + $0x8] sm:$0xff]
    %v115 = vld [vmem:[#allocation5 + $0x10] sm:$0xff]
    %v116 = vld [vmem:[#allocation5 + $0x18] sm:$0xff]
    %v117 = vld [vmem:[#allocation5 + $0x20] sm:$0xff]
    %v118 = vld [vmem:[#allocation5 + $0x28] sm:$0xff]
    %v119 = vld [vmem:[#allocation5 + $0x30] sm:$0xff]
    %v120 = vld [vmem:[#allocation5 + $0x38] sm:$0xff]
    %v121 = vld [vmem:[#allocation5 + $0x40] sm:$0xff]
    %v122 = vld [vmem:[#allocation5 + $0x48] sm:$0xff]
    %v123 = vld [vmem:[#allocation5 + $0x50] sm:$0xff]
    %v124 = vld [vmem:[#allocation5 + $0x58] sm:$0xff]
    %v125 = vld [vmem:[#allocation5 + $0x60] sm:$0xff]
    %v126 = vld [vmem:[#allocation5 + $0x68] sm:$0xff]
    %v127 = vld [vmem:[#allocation5 + $0x70] sm:$0xff]
    %v128 = vld [vmem:[#allocation5 + $0x78] sm:$0xff]
    %v129 = vld [vmem:[#allocation5 + $0x80] sm:$0xff]
    %v130 = vld [vmem:[#allocation5 + $0x88] sm:$0xff]
    %v131 = vld [vmem:[#allocation5 + $0x90] sm:$0xff]
    %v132 = vld [vmem:[#allocation5 + $0x98] sm:$0xff]
    %v133 = vld [vmem:[#allocation5 + $0xa0] sm:$0xff]
    %v134 = vld [vmem:[#allocation5 + $0xa8] sm:$0xff]
    %v135 = vld [vmem:[#allocation5 + $0xb0] sm:$0xff]
    %v136 = vld [vmem:[#allocation5 + $0xb8] sm:$0xff]
    %v137 = vld [vmem:[#allocation5 + $0xc0] sm:$0xff]
    %v138 = vld [vmem:[#allocation5 + $0xc8] sm:$0xff]
    %v139 = vld [vmem:[#allocation5 + $0xd0] sm:$0xff]
    %v140 = vld [vmem:[#allocation5 + $0xd8] sm:$0xff]
    %v141 = vld [vmem:[#allocation5 + $0xe0] sm:$0xff]
    %v142 = vld [vmem:[#allocation5 + $0xe8] sm:$0xff]
    %v143 = vld [vmem:[#allocation5 + $0xf0] sm:$0xff]
    %v144 = vld [vmem:[#allocation5 + $0xf8] sm:$0xff]
    %v145 = vld [vmem:[#allocation5 + $0x100] sm:$0xff]
    %v146 = vld [vmem:[#allocation5 + $0x108] sm:$0xff]
    %v147 = vld [vmem:[#allocation5 + $0x110] sm:$0xff]
    %v148 = vld [vmem:[#allocation5 + $0x118] sm:$0xff]
    %v149 = vld [vmem:[#allocation5 + $0x120] sm:$0xff]
    %v150 = vld [vmem:[#allocation5 + $0x128] sm:$0xff]
    %v151 = vld [vmem:[#allocation5 + $0x130] sm:$0xff]
    %v152 = vld [vmem:[#allocation5 + $0x138] sm:$0xff]
    %v153 = vld [vmem:[#allocation5 + $0x140] sm:$0xff]
    %v154 = vld [vmem:[#allocation5 + $0x148] sm:$0xff]
    %v155 = vld [vmem:[#allocation5 + $0x150] sm:$0xff]
    %v156 = vld [vmem:[#allocation5 + $0x158] sm:$0xff]
    %v157 = vld [vmem:[#allocation5 + $0x160] sm:$0xff]
    %v158 = vld [vmem:[#allocation5 + $0x168] sm:$0xff]
    %v159 = vld [vmem:[#allocation5 + $0x170] sm:$0xff]
    %v160 = vld [vmem:[#allocation5 + $0x178] sm:$0xff]
    %v161 = vld [vmem:[#allocation5 + $0x180] sm:$0xff]
    %v162 = vld [vmem:[#allocation5 + $0x188] sm:$0xff]
    %v163 = vld [vmem:[#allocation5 + $0x190] sm:$0xff]
    %v164 = vld [vmem:[#allocation5 + $0x198] sm:$0xff]
    %v165 = vld [vmem:[#allocation5 + $0x1a0] sm:$0xff]
    %v166 = vld [vmem:[#allocation5 + $0x1a8] sm:$0xff]
    %v167 = vld [vmem:[#allocation5 + $0x1b0] sm:$0xff]
    %v168 = vld [vmem:[#allocation5 + $0x1b8] sm:$0xff]
    %v169 = vld [vmem:[#allocation5 + $0x1c0] sm:$0xff]
    %v170 = vld [vmem:[#allocation5 + $0x1c8] sm:$0xff]
    %v171 = vld [vmem:[#allocation5 + $0x1d0] sm:$0xff]
    %v172 = vld [vmem:[#allocation5 + $0x1d8] sm:$0xff]
    %v173 = vld [vmem:[#allocation5 + $0x1e0] sm:$0xff]
    %v174 = vld [vmem:[#allocation5 + $0x1e8] sm:$0xff]
    %v175 = vld [vmem:[#allocation5 + $0x1f0] sm:$0xff]
    %v176 = vld [vmem:[#allocation5 + $0x1f8] sm:$0xff]
    %v241 = vunpack.c.l.b16 %v113
    %v242 = vunpack.c.h.b16 %v113
    %v243 = vunpack.c.l.b16 %v114
    %v244 = vunpack.c.h.b16 %v114
    %v245 = vunpack.c.l.b16 %v115
    %v246 = vunpack.c.h.b16 %v115
    %v247 = vunpack.c.l.b16 %v116
    %v248 = vunpack.c.h.b16 %v116
    %v249 = vunpack.c.l.b16 %v117
    %v250 = vunpack.c.h.b16 %v117
    %v251 = vunpack.c.l.b16 %v118
    %v252 = vunpack.c.h.b16 %v118
    %v253 = vunpack.c.l.b16 %v119
    %v254 = vunpack.c.h.b16 %v119
    %v255 = vunpack.c.l.b16 %v120
    %v256 = vunpack.c.h.b16 %v120
    %v257 = vunpack.c.l.b16 %v121
    %v258 = vunpack.c.h.b16 %v121
    %v259 = vunpack.c.l.b16 %v122
    %v260 = vunpack.c.h.b16 %v122
    %v261 = vunpack.c.l.b16 %v123
    %v262 = vunpack.c.h.b16 %v123
    %v263 = vunpack.c.l.b16 %v124
    %v264 = vunpack.c.h.b16 %v124
    %v265 = vunpack.c.l.b16 %v125
    %v266 = vunpack.c.h.b16 %v125
    %v267 = vunpack.c.l.b16 %v126
    %v268 = vunpack.c.h.b16 %v126
    %v269 = vunpack.c.l.b16 %v127
    %v270 = vunpack.c.h.b16 %v127
    %v271 = vunpack.c.l.b16 %v128
    %v272 = vunpack.c.h.b16 %v128
    %v273 = vunpack.c.l.b16 %v129
    %v274 = vunpack.c.h.b16 %v129
    %v275 = vunpack.c.l.b16 %v130
    %v276 = vunpack.c.h.b16 %v130
    %v277 = vunpack.c.l.b16 %v131
    %v278 = vunpack.c.h.b16 %v131
    %v279 = vunpack.c.l.b16 %v132
    %v280 = vunpack.c.h.b16 %v132
    %v281 = vunpack.c.l.b16 %v133
    %v282 = vunpack.c.h.b16 %v133
    %v283 = vunpack.c.l.b16 %v134
    %v284 = vunpack.c.h.b16 %v134
    %v285 = vunpack.c.l.b16 %v135
    %v286 = vunpack.c.h.b16 %v135
    %v287 = vunpack.c.l.b16 %v136
    %v288 = vunpack.c.h.b16 %v136
    %v289 = vunpack.c.l.b16 %v137
    %v290 = vunpack.c.h.b16 %v137
    %v291 = vunpack.c.l.b16 %v138
    %v292 = vunpack.c.h.b16 %v138
    %v293 = vunpack.c.l.b16 %v139
    %v294 = vunpack.c.h.b16 %v139
    %v295 = vunpack.c.l.b16 %v140
    %v296 = vunpack.c.h.b16 %v140
    %v297 = vunpack.c.l.b16 %v141
    %v298 = vunpack.c.h.b16 %v141
    %v299 = vunpack.c.l.b16 %v142
    %v300 = vunpack.c.h.b16 %v142
    %v301 = vunpack.c.l.b16 %v143
    %v302 = vunpack.c.h.b16 %v143
    %v303 = vunpack.c.l.b16 %v144
    %v304 = vunpack.c.h.b16 %v144
    %v305 = vunpack.c.l.b16 %v145
    %v306 = vunpack.c.h.b16 %v145
    %v307 = vunpack.c.l.b16 %v146
    %v308 = vunpack.c.h.b16 %v146
    %v309 = vunpack.c.l.b16 %v147
    %v310 = vunpack.c.h.b16 %v147
    %v311 = vunpack.c.l.b16 %v148
    %v312 = vunpack.c.h.b16 %v148
    %v313 = vunpack.c.l.b16 %v149
    %v314 = vunpack.c.h.b16 %v149
    %v315 = vunpack.c.l.b16 %v150
    %v316 = vunpack.c.h.b16 %v150
    %v317 = vunpack.c.l.b16 %v151
    %v318 = vunpack.c.h.b16 %v151
    %v319 = vunpack.c.l.b16 %v152
    %v320 = vunpack.c.h.b16 %v152
    %v321 = vunpack.c.l.b16 %v153
    %v322 = vunpack.c.h.b16 %v153
    %v323 = vunpack.c.l.b16 %v154
    %v324 = vunpack.c.h.b16 %v154
    %v325 = vunpack.c.l.b16 %v155
    %v326 = vunpack.c.h.b16 %v155
    %v327 = vunpack.c.l.b16 %v156
    %v328 = vunpack.c.h.b16 %v156
    %v329 = vunpack.c.l.b16 %v157
    %v330 = vunpack.c.h.b16 %v157
    %v331 = vunpack.c.l.b16 %v158
    %v332 = vunpack.c.h.b16 %v158
    %v333 = vunpack.c.l.b16 %v159
    %v334 = vunpack.c.h.b16 %v159
    %v335 = vunpack.c.l.b16 %v160
    %v336 = vunpack.c.h.b16 %v160
    %v337 = vunpack.c.l.b16 %v161
    %v338 = vunpack.c.h.b16 %v161
    %v339 = vunpack.c.l.b16 %v162
    %v340 = vunpack.c.h.b16 %v162
    %v341 = vunpack.c.l.b16 %v163
    %v342 = vunpack.c.h.b16 %v163
    %v343 = vunpack.c.l.b16 %v164
    %v344 = vunpack.c.h.b16 %v164
    %v345 = vunpack.c.l.b16 %v165
    %v346 = vunpack.c.h.b16 %v165
    %v347 = vunpack.c.l.b16 %v166
    %v348 = vunpack.c.h.b16 %v166
    %v349 = vunpack.c.l.b16 %v167
    %v350 = vunpack.c.h.b16 %v167
    %v351 = vunpack.c.l.b16 %v168
    %v352 = vunpack.c.h.b16 %v168
    %v353 = vunpack.c.l.b16 %v169
    %v354 = vunpack.c.h.b16 %v169
    %v355 = vunpack.c.l.b16 %v170
    %v356 = vunpack.c.h.b16 %v170
    %v357 = vunpack.c.l.b16 %v171
    %v358 = vunpack.c.h.b16 %v171
    %v359 = vunpack.c.l.b16 %v172
    %v360 = vunpack.c.h.b16 %v172
    %v361 = vunpack.c.l.b16 %v173
    %v362 = vunpack.c.h.b16 %v173
    %v363 = vunpack.c.l.b16 %v174
    %v364 = vunpack.c.h.b16 %v174
    %v365 = vunpack.c.l.b16 %v175
    %v366 = vunpack.c.h.b16 %v175
    %v367 = vunpack.c.l.b16 %v176
    %v368 = vunpack.c.h.b16 %v176
    %v369 = vpack.c.b16 %v273, %v241
    %v370 = vpack.c.b16 %v274, %v242
    %v371 = vpack.c.b16 %v275, %v243
    %v372 = vpack.c.b16 %v276, %v244
    %v373 = vpack.c.b16 %v277, %v245
    %v374 = vpack.c.b16 %v278, %v246
    %v375 = vpack.c.b16 %v279, %v247
    %v376 = vpack.c.b16 %v280, %v248
    %v377 = vpack.c.b16 %v281, %v249
    %v378 = vpack.c.b16 %v282, %v250
    %v379 = vpack.c.b16 %v283, %v251
    %v380 = vpack.c.b16 %v284, %v252
    %v381 = vpack.c.b16 %v285, %v253
    %v382 = vpack.c.b16 %v286, %v254
    %v383 = vpack.c.b16 %v287, %v255
    %v384 = vpack.c.b16 %v288, %v256
    %v385 = vpack.c.b16 %v289, %v257
    %v386 = vpack.c.b16 %v290, %v258
    %v387 = vpack.c.b16 %v291, %v259
    %v388 = vpack.c.b16 %v292, %v260
    %v389 = vpack.c.b16 %v293, %v261
    %v390 = vpack.c.b16 %v294, %v262
    %v391 = vpack.c.b16 %v295, %v263
    %v392 = vpack.c.b16 %v296, %v264
    %v393 = vpack.c.b16 %v297, %v265
    %v394 = vpack.c.b16 %v298, %v266
    %v395 = vpack.c.b16 %v299, %v267
    %v396 = vpack.c.b16 %v300, %v268
    %v397 = vpack.c.b16 %v301, %v269
    %v398 = vpack.c.b16 %v302, %v270
    %v399 = vpack.c.b16 %v303, %v271
    %v400 = vpack.c.b16 %v304, %v272
    %v401 = vpack.c.b16 %v337, %v305
    %v402 = vpack.c.b16 %v338, %v306
    %v403 = vpack.c.b16 %v339, %v307
    %v404 = vpack.c.b16 %v340, %v308
    %v405 = vpack.c.b16 %v341, %v309
    %v406 = vpack.c.b16 %v342, %v310
    %v407 = vpack.c.b16 %v343, %v311
    %v408 = vpack.c.b16 %v344, %v312
    %v409 = vpack.c.b16 %v345, %v313
    %v410 = vpack.c.b16 %v346, %v314
    %v411 = vpack.c.b16 %v347, %v315
    %v412 = vpack.c.b16 %v348, %v316
    %v413 = vpack.c.b16 %v349, %v317
    %v414 = vpack.c.b16 %v350, %v318
    %v415 = vpack.c.b16 %v351, %v319
    %v416 = vpack.c.b16 %v352, %v320
    %v417 = vpack.c.b16 %v353, %v321
    %v418 = vpack.c.b16 %v354, %v322
    %v419 = vpack.c.b16 %v355, %v323
    %v420 = vpack.c.b16 %v356, %v324
    %v421 = vpack.c.b16 %v357, %v325
    %v422 = vpack.c.b16 %v358, %v326
    %v423 = vpack.c.b16 %v359, %v327
    %v424 = vpack.c.b16 %v360, %v328
    %v425 = vpack.c.b16 %v361, %v329
    %v426 = vpack.c.b16 %v362, %v330
    %v427 = vpack.c.b16 %v363, %v331
    %v428 = vpack.c.b16 %v364, %v332
    %v429 = vpack.c.b16 %v365, %v333
    %v430 = vpack.c.b16 %v366, %v334
    %v431 = vpack.c.b16 %v367, %v335
    %v432 = vpack.c.b16 %v368, %v336
    %v498 = vsel %vm84, %v112, 0
    %500 = vmatprep.subr.bf16.mxu0 0
    %501 = vmatpush1.bf16.msra.mxu0 0
    %502 = vmatprep.subr.bf16.mxu0 0
    %503 = vmatpush1.bf16.msra.mxu0 0
    %504 = vmatprep.subr.bf16.mxu0 0
    %505 = vmatpush1.bf16.msra.mxu0 0
    %506 = vmatprep.subr.bf16.mxu0 0
    %507 = vmatpush1.bf16.msra.mxu0 0
    %508 = vmatprep.subr.bf16.mxu0 0
    %509 = vmatpush1.bf16.msra.mxu0 0
    %510 = vmatprep.subr.bf16.mxu0 0
    %511 = vmatpush1.bf16.msra.mxu0 0
    %512 = vmatprep.subr.bf16.mxu0 %v402
    %513 = vmatpush1.bf16.msra.mxu0 %v401
    %514 = vmatprep.subr.bf16.mxu0 %v370
    %515 = vmatpush1.bf16.msra.mxu0 %v369
    %516 = vmatprep.subr.bf16.mxu0 0
    %517 = vmatpush2.bf16.msra.mxu0 0
    %518 = vmatprep.subr.bf16.mxu0 0
    %519 = vmatpush2.bf16.msra.mxu0 0
    %520 = vmatprep.subr.bf16.mxu0 0
    %521 = vmatpush2.bf16.msra.mxu0 0
    %522 = vmatprep.subr.bf16.mxu0 0
    %523 = vmatpush2.bf16.msra.mxu0 0
    %524 = vmatprep.subr.bf16.mxu0 0
    %525 = vmatpush2.bf16.msra.mxu0 0
    %526 = vmatprep.subr.bf16.mxu0 0
    %527 = vmatpush2.bf16.msra.mxu0 0
    %528 = vmatprep.subr.bf16.mxu0 0
    %529 = vmatpush2.bf16.msra.mxu0 0
    %530 = vmatprep.subr.bf16.mxu0 0
    %531 = vmatpush2.bf16.msra.mxu0 0
    %532 = vmatprep.mubr.bf16.mxu0 0
    %533 = vmatmul.mubr.bf16.gmra.mxu0 %v498
    %v534 = vpop.f32.mrf.mxu0
    %v535 = vadd.f32 0.0, %v534
    %v536 = vpop.f32.mrf.mxu0
    %v537 = vadd.f32 0.0, %v536
    %v538 = vpop.f32.mrf.mxu0
    %v539 = vadd.f32 0.0, %v538
    %v540 = vpop.f32.mrf.mxu0
    %v541 = vadd.f32 0.0, %v540
    %542 = vdwg.mxu0
    %543 = vmatprep.subr.bf16.mxu0 0
    %544 = vmatpush1.bf16.msra.mxu0 0
    %545 = vmatprep.subr.bf16.mxu0 0
    %546 = vmatpush1.bf16.msra.mxu0 0
    %547 = vmatprep.subr.bf16.mxu0 0
    %548 = vmatpush1.bf16.msra.mxu0 0
    %549 = vmatprep.subr.bf16.mxu0 0
    %550 = vmatpush1.bf16.msra.mxu0 0
    %551 = vmatprep.subr.bf16.mxu0 0
    %552 = vmatpush1.bf16.msra.mxu0 0
    %553 = vmatprep.subr.bf16.mxu0 0
    %554 = vmatpush1.bf16.msra.mxu0 0
    %555 = vmatprep.subr.bf16.mxu0 %v404
    %556 = vmatpush1.bf16.msra.mxu0 %v403
    %557 = vmatprep.subr.bf16.mxu0 %v372
    %558 = vmatpush1.bf16.msra.mxu0 %v371
    %559 = vmatprep.subr.bf16.mxu0 0
    %560 = vmatpush2.bf16.msra.mxu0 0
    %561 = vmatprep.subr.bf16.mxu0 0
    %562 = vmatpush2.bf16.msra.mxu0 0
    %563 = vmatprep.subr.bf16.mxu0 0
    %564 = vmatpush2.bf16.msra.mxu0 0
    %565 = vmatprep.subr.bf16.mxu0 0
    %566 = vmatpush2.bf16.msra.mxu0 0
    %567 = vmatprep.subr.bf16.mxu0 0
    %568 = vmatpush2.bf16.msra.mxu0 0
    %569 = vmatprep.subr.bf16.mxu0 0
    %570 = vmatpush2.bf16.msra.mxu0 0
    %571 = vmatprep.subr.bf16.mxu0 0
    %572 = vmatpush2.bf16.msra.mxu0 0
    %573 = vmatprep.subr.bf16.mxu0 0
    %574 = vmatpush2.bf16.msra.mxu0 0
    %575 = vmatprep.mubr.bf16.mxu0 0
    %576 = vmatmul.mubr.bf16.gmra.mxu0 %v498
    %v577 = vpop.f32.mrf.mxu0
    %v578 = vadd.f32 0.0, %v577
    %v579 = vpop.f32.mrf.mxu0
    %v580 = vadd.f32 0.0, %v579
    %v581 = vpop.f32.mrf.mxu0
    %v582 = vadd.f32 0.0, %v581
    %v583 = vpop.f32.mrf.mxu0
    %v584 = vadd.f32 0.0, %v583
    %585 = vdwg.mxu0
    %586 = vmatprep.subr.bf16.mxu0 0
    %587 = vmatpush1.bf16.msra.mxu0 0
    %588 = vmatprep.subr.bf16.mxu0 0
    %589 = vmatpush1.bf16.msra.mxu0 0
    %590 = vmatprep.subr.bf16.mxu0 0
    %591 = vmatpush1.bf16.msra.mxu0 0
    %592 = vmatprep.subr.bf16.mxu0 0
    %593 = vmatpush1.bf16.msra.mxu0 0
    %594 = vmatprep.subr.bf16.mxu0 0
    %595 = vmatpush1.bf16.msra.mxu0 0
    %596 = vmatprep.subr.bf16.mxu0 0
    %597 = vmatpush1.bf16.msra.mxu0 0
    %598 = vmatprep.subr.bf16.mxu0 %v406
    %599 = vmatpush1.bf16.msra.mxu0 %v405
    %600 = vmatprep.subr.bf16.mxu0 %v374
    %601 = vmatpush1.bf16.msra.mxu0 %v373
    %602 = vmatprep.subr.bf16.mxu0 0
    %603 = vmatpush2.bf16.msra.mxu0 0
    %604 = vmatprep.subr.bf16.mxu0 0
    %605 = vmatpush2.bf16.msra.mxu0 0
    %606 = vmatprep.subr.bf16.mxu0 0
    %607 = vmatpush2.bf16.msra.mxu0 0
    %608 = vmatprep.subr.bf16.mxu0 0
    %609 = vmatpush2.bf16.msra.mxu0 0
    %610 = vmatprep.subr.bf16.mxu0 0
    %611 = vmatpush2.bf16.msra.mxu0 0
    %612 = vmatprep.subr.bf16.mxu0 0
    %613 = vmatpush2.bf16.msra.mxu0 0
    %614 = vmatprep.subr.bf16.mxu0 0
    %615 = vmatpush2.bf16.msra.mxu0 0
    %616 = vmatprep.subr.bf16.mxu0 0
    %617 = vmatpush2.bf16.msra.mxu0 0
    %618 = vmatprep.mubr.bf16.mxu0 0
    %619 = vmatmul.mubr.bf16.gmra.mxu0 %v498
    %v620 = vpop.f32.mrf.mxu0
    %v621 = vadd.f32 0.0, %v620
    %v622 = vpop.f32.mrf.mxu0
    %v623 = vadd.f32 0.0, %v622
    %v624 = vpop.f32.mrf.mxu0
    %v625 = vadd.f32 0.0, %v624
    %v626 = vpop.f32.mrf.mxu0
    %v627 = vadd.f32 0.0, %v626
    %628 = vdwg.mxu0
    %629 = vmatprep.subr.bf16.mxu0 0
    %630 = vmatpush1.bf16.msra.mxu0 0
    %631 = vmatprep.subr.bf16.mxu0 0
    %632 = vmatpush1.bf16.msra.mxu0 0
    %633 = vmatprep.subr.bf16.mxu0 0
    %634 = vmatpush1.bf16.msra.mxu0 0
    %635 = vmatprep.subr.bf16.mxu0 0
    %636 = vmatpush1.bf16.msra.mxu0 0
    %637 = vmatprep.subr.bf16.mxu0 0
    %638 = vmatpush1.bf16.msra.mxu0 0
    %639 = vmatprep.subr.bf16.mxu0 0
    %640 = vmatpush1.bf16.msra.mxu0 0
    %641 = vmatprep.subr.bf16.mxu0 %v408
    %642 = vmatpush1.bf16.msra.mxu0 %v407
    %643 = vmatprep.subr.bf16.mxu0 %v376
    %644 = vmatpush1.bf16.msra.mxu0 %v375
    %645 = vmatprep.subr.bf16.mxu0 0
    %646 = vmatpush2.bf16.msra.mxu0 0
    %647 = vmatprep.subr.bf16.mxu0 0
    %648 = vmatpush2.bf16.msra.mxu0 0
    %649 = vmatprep.subr.bf16.mxu0 0
    %650 = vmatpush2.bf16.msra.mxu0 0
    %651 = vmatprep.subr.bf16.mxu0 0
    %652 = vmatpush2.bf16.msra.mxu0 0
    %653 = vmatprep.subr.bf16.mxu0 0
    %654 = vmatpush2.bf16.msra.mxu0 0
    %655 = vmatprep.subr.bf16.mxu0 0
    %656 = vmatpush2.bf16.msra.mxu0 0
    %657 = vmatprep.subr.bf16.mxu0 0
    %658 = vmatpush2.bf16.msra.mxu0 0
    %659 = vmatprep.subr.bf16.mxu0 0
    %660 = vmatpush2.bf16.msra.mxu0 0
    %661 = vmatprep.mubr.bf16.mxu0 0
    %662 = vmatmul.mubr.bf16.gmra.mxu0 %v498
    %v663 = vpop.f32.mrf.mxu0
    %v664 = vadd.f32 0.0, %v663
    %v665 = vpop.f32.mrf.mxu0
    %v666 = vadd.f32 0.0, %v665
    %v667 = vpop.f32.mrf.mxu0
    %v668 = vadd.f32 0.0, %v667
    %v669 = vpop.f32.mrf.mxu0
    %v670 = vadd.f32 0.0, %v669
    %671 = vdwg.mxu0
    %672 = vmatprep.subr.bf16.mxu0 0
    %673 = vmatpush1.bf16.msra.mxu0 0
    %674 = vmatprep.subr.bf16.mxu0 0
    %675 = vmatpush1.bf16.msra.mxu0 0
    %676 = vmatprep.subr.bf16.mxu0 0
    %677 = vmatpush1.bf16.msra.mxu0 0
    %678 = vmatprep.subr.bf16.mxu0 0
    %679 = vmatpush1.bf16.msra.mxu0 0
    %680 = vmatprep.subr.bf16.mxu0 0
    %681 = vmatpush1.bf16.msra.mxu0 0
    %682 = vmatprep.subr.bf16.mxu0 0
    %683 = vmatpush1.bf16.msra.mxu0 0
    %684 = vmatprep.subr.bf16.mxu0 %v410
    %685 = vmatpush1.bf16.msra.mxu0 %v409
    %686 = vmatprep.subr.bf16.mxu0 %v378
    %687 = vmatpush1.bf16.msra.mxu0 %v377
    %688 = vmatprep.subr.bf16.mxu0 0
    %689 = vmatpush2.bf16.msra.mxu0 0
    %690 = vmatprep.subr.bf16.mxu0 0
    %691 = vmatpush2.bf16.msra.mxu0 0
    %692 = vmatprep.subr.bf16.mxu0 0
    %693 = vmatpush2.bf16.msra.mxu0 0
    %694 = vmatprep.subr.bf16.mxu0 0
    %695 = vmatpush2.bf16.msra.mxu0 0
    %696 = vmatprep.subr.bf16.mxu0 0
    %697 = vmatpush2.bf16.msra.mxu0 0
    %698 = vmatprep.subr.bf16.mxu0 0
    %699 = vmatpush2.bf16.msra.mxu0 0
    %700 = vmatprep.subr.bf16.mxu0 0
    %701 = vmatpush2.bf16.msra.mxu0 0
    %702 = vmatprep.subr.bf16.mxu0 0
    %703 = vmatpush2.bf16.msra.mxu0 0
    %704 = vmatprep.mubr.bf16.mxu0 0
    %705 = vmatmul.mubr.bf16.gmra.mxu0 %v498
    %v706 = vpop.f32.mrf.mxu0
    %v707 = vadd.f32 0.0, %v706
    %v708 = vpop.f32.mrf.mxu0
    %v709 = vadd.f32 0.0, %v708
    %v710 = vpop.f32.mrf.mxu0
    %v711 = vadd.f32 0.0, %v710
    %v712 = vpop.f32.mrf.mxu0
    %v713 = vadd.f32 0.0, %v712
    %714 = vdwg.mxu0
    %715 = vmatprep.subr.bf16.mxu0 0
    %716 = vmatpush1.bf16.msra.mxu0 0
    %717 = vmatprep.subr.bf16.mxu0 0
    %718 = vmatpush1.bf16.msra.mxu0 0
    %719 = vmatprep.subr.bf16.mxu0 0
    %720 = vmatpush1.bf16.msra.mxu0 0
    %721 = vmatprep.subr.bf16.mxu0 0
    %722 = vmatpush1.bf16.msra.mxu0 0
    %723 = vmatprep.subr.bf16.mxu0 0
    %724 = vmatpush1.bf16.msra.mxu0 0
    %725 = vmatprep.subr.bf16.mxu0 0
    %726 = vmatpush1.bf16.msra.mxu0 0
    %727 = vmatprep.subr.bf16.mxu0 %v412
    %728 = vmatpush1.bf16.msra.mxu0 %v411
    %729 = vmatprep.subr.bf16.mxu0 %v380
    %730 = vmatpush1.bf16.msra.mxu0 %v379
    %731 = vmatprep.subr.bf16.mxu0 0
    %732 = vmatpush2.bf16.msra.mxu0 0
    %733 = vmatprep.subr.bf16.mxu0 0
    %734 = vmatpush2.bf16.msra.mxu0 0
    %735 = vmatprep.subr.bf16.mxu0 0
    %736 = vmatpush2.bf16.msra.mxu0 0
    %737 = vmatprep.subr.bf16.mxu0 0
    %738 = vmatpush2.bf16.msra.mxu0 0
    %739 = vmatprep.subr.bf16.mxu0 0
    %740 = vmatpush2.bf16.msra.mxu0 0
    %741 = vmatprep.subr.bf16.mxu0 0
    %742 = vmatpush2.bf16.msra.mxu0 0
    %743 = vmatprep.subr.bf16.mxu0 0
    %744 = vmatpush2.bf16.msra.mxu0 0
    %745 = vmatprep.subr.bf16.mxu0 0
    %746 = vmatpush2.bf16.msra.mxu0 0
    %747 = vmatprep.mubr.bf16.mxu0 0
    %748 = vmatmul.mubr.bf16.gmra.mxu0 %v498
    %v749 = vpop.f32.mrf.mxu0
    %v750 = vadd.f32 0.0, %v749
    %v751 = vpop.f32.mrf.mxu0
    %v752 = vadd.f32 0.0, %v751
    %v753 = vpop.f32.mrf.mxu0
    %v754 = vadd.f32 0.0, %v753
    %v755 = vpop.f32.mrf.mxu0
    %v756 = vadd.f32 0.0, %v755
    %757 = vdwg.mxu0
    %758 = vmatprep.subr.bf16.mxu0 0
    %759 = vmatpush1.bf16.msra.mxu0 0
    %760 = vmatprep.subr.bf16.mxu0 0
    %761 = vmatpush1.bf16.msra.mxu0 0
    %762 = vmatprep.subr.bf16.mxu0 0
    %763 = vmatpush1.bf16.msra.mxu0 0
    %764 = vmatprep.subr.bf16.mxu0 0
    %765 = vmatpush1.bf16.msra.mxu0 0
    %766 = vmatprep.subr.bf16.mxu0 0
    %767 = vmatpush1.bf16.msra.mxu0 0
    %768 = vmatprep.subr.bf16.mxu0 0
    %769 = vmatpush1.bf16.msra.mxu0 0
    %770 = vmatprep.subr.bf16.mxu0 %v414
    %771 = vmatpush1.bf16.msra.mxu0 %v413
    %772 = vmatprep.subr.bf16.mxu0 %v382
    %773 = vmatpush1.bf16.msra.mxu0 %v381
    %774 = vmatprep.subr.bf16.mxu0 0
    %775 = vmatpush2.bf16.msra.mxu0 0
    %776 = vmatprep.subr.bf16.mxu0 0
    %777 = vmatpush2.bf16.msra.mxu0 0
    %778 = vmatprep.subr.bf16.mxu0 0
    %779 = vmatpush2.bf16.msra.mxu0 0
    %780 = vmatprep.subr.bf16.mxu0 0
    %781 = vmatpush2.bf16.msra.mxu0 0
    %782 = vmatprep.subr.bf16.mxu0 0
    %783 = vmatpush2.bf16.msra.mxu0 0
    %784 = vmatprep.subr.bf16.mxu0 0
    %785 = vmatpush2.bf16.msra.mxu0 0
    %786 = vmatprep.subr.bf16.mxu0 0
    %787 = vmatpush2.bf16.msra.mxu0 0
    %788 = vmatprep.subr.bf16.mxu0 0
    %789 = vmatpush2.bf16.msra.mxu0 0
    %790 = vmatprep.mubr.bf16.mxu0 0
    %791 = vmatmul.mubr.bf16.gmra.mxu0 %v498
    %v792 = vpop.f32.mrf.mxu0
    %v793 = vadd.f32 0.0, %v792
    %v794 = vpop.f32.mrf.mxu0
    %v795 = vadd.f32 0.0, %v794
    %v796 = vpop.f32.mrf.mxu0
    %v797 = vadd.f32 0.0, %v796
    %v798 = vpop.f32.mrf.mxu0
    %v799 = vadd.f32 0.0, %v798
    %800 = vdwg.mxu0
    %801 = vmatprep.subr.bf16.mxu0 0
    %802 = vmatpush1.bf16.msra.mxu0 0
    %803 = vmatprep.subr.bf16.mxu0 0
    %804 = vmatpush1.bf16.msra.mxu0 0
    %805 = vmatprep.subr.bf16.mxu0 0
    %806 = vmatpush1.bf16.msra.mxu0 0
    %807 = vmatprep.subr.bf16.mxu0 0
    %808 = vmatpush1.bf16.msra.mxu0 0
    %809 = vmatprep.subr.bf16.mxu0 0
    %810 = vmatpush1.bf16.msra.mxu0 0
    %811 = vmatprep.subr.bf16.mxu0 0
    %812 = vmatpush1.bf16.msra.mxu0 0
    %813 = vmatprep.subr.bf16.mxu0 %v416
    %814 = vmatpush1.bf16.msra.mxu0 %v415
    %815 = vmatprep.subr.bf16.mxu0 %v384
    %816 = vmatpush1.bf16.msra.mxu0 %v383
    %817 = vmatprep.subr.bf16.mxu0 0
    %818 = vmatpush2.bf16.msra.mxu0 0
    %819 = vmatprep.subr.bf16.mxu0 0
    %820 = vmatpush2.bf16.msra.mxu0 0
    %821 = vmatprep.subr.bf16.mxu0 0
    %822 = vmatpush2.bf16.msra.mxu0 0
    %823 = vmatprep.subr.bf16.mxu0 0
    %824 = vmatpush2.bf16.msra.mxu0 0
    %825 = vmatprep.subr.bf16.mxu0 0
    %826 = vmatpush2.bf16.msra.mxu0 0
    %827 = vmatprep.subr.bf16.mxu0 0
    %828 = vmatpush2.bf16.msra.mxu0 0
    %829 = vmatprep.subr.bf16.mxu0 0
    %830 = vmatpush2.bf16.msra.mxu0 0
    %831 = vmatprep.subr.bf16.mxu0 0
    %832 = vmatpush2.bf16.msra.mxu0 0
    %833 = vmatprep.mubr.bf16.mxu0 0
    %834 = vmatmul.mubr.bf16.gmra.mxu0 %v498
    %v835 = vpop.f32.mrf.mxu0
    %v836 = vadd.f32 0.0, %v835
    %v837 = vpop.f32.mrf.mxu0
    %v838 = vadd.f32 0.0, %v837
    %v839 = vpop.f32.mrf.mxu0
    %v840 = vadd.f32 0.0, %v839
    %v841 = vpop.f32.mrf.mxu0
    %v842 = vadd.f32 0.0, %v841
    %843 = vdwg.mxu0
    %844 = vmatprep.subr.bf16.mxu0 0
    %845 = vmatpush1.bf16.msra.mxu0 0
    %846 = vmatprep.subr.bf16.mxu0 0
    %847 = vmatpush1.bf16.msra.mxu0 0
    %848 = vmatprep.subr.bf16.mxu0 0
    %849 = vmatpush1.bf16.msra.mxu0 0
    %850 = vmatprep.subr.bf16.mxu0 0
    %851 = vmatpush1.bf16.msra.mxu0 0
    %852 = vmatprep.subr.bf16.mxu0 0
    %853 = vmatpush1.bf16.msra.mxu0 0
    %854 = vmatprep.subr.bf16.mxu0 0
    %855 = vmatpush1.bf16.msra.mxu0 0
    %856 = vmatprep.subr.bf16.mxu0 %v418
    %857 = vmatpush1.bf16.msra.mxu0 %v417
    %858 = vmatprep.subr.bf16.mxu0 %v386
    %859 = vmatpush1.bf16.msra.mxu0 %v385
    %860 = vmatprep.subr.bf16.mxu0 0
    %861 = vmatpush2.bf16.msra.mxu0 0
    %862 = vmatprep.subr.bf16.mxu0 0
    %863 = vmatpush2.bf16.msra.mxu0 0
    %864 = vmatprep.subr.bf16.mxu0 0
    %865 = vmatpush2.bf16.msra.mxu0 0
    %866 = vmatprep.subr.bf16.mxu0 0
    %867 = vmatpush2.bf16.msra.mxu0 0
    %868 = vmatprep.subr.bf16.mxu0 0
    %869 = vmatpush2.bf16.msra.mxu0 0
    %870 = vmatprep.subr.bf16.mxu0 0
    %871 = vmatpush2.bf16.msra.mxu0 0
    %872 = vmatprep.subr.bf16.mxu0 0
    %873 = vmatpush2.bf16.msra.mxu0 0
    %874 = vmatprep.subr.bf16.mxu0 0
    %875 = vmatpush2.bf16.msra.mxu0 0
    %876 = vmatprep.mubr.bf16.mxu0 0
    %877 = vmatmul.mubr.bf16.gmra.mxu0 %v498
    %v878 = vpop.f32.mrf.mxu0
    %v879 = vadd.f32 0.0, %v878
    %v880 = vpop.f32.mrf.mxu0
    %v881 = vadd.f32 0.0, %v880
    %v882 = vpop.f32.mrf.mxu0
    %v883 = vadd.f32 0.0, %v882
    %v884 = vpop.f32.mrf.mxu0
    %v885 = vadd.f32 0.0, %v884
    %886 = vdwg.mxu0
    %887 = vmatprep.subr.bf16.mxu0 0
    %888 = vmatpush1.bf16.msra.mxu0 0
    %889 = vmatprep.subr.bf16.mxu0 0
    %890 = vmatpush1.bf16.msra.mxu0 0
    %891 = vmatprep.subr.bf16.mxu0 0
    %892 = vmatpush1.bf16.msra.mxu0 0
    %893 = vmatprep.subr.bf16.mxu0 0
    %894 = vmatpush1.bf16.msra.mxu0 0
    %895 = vmatprep.subr.bf16.mxu0 0
    %896 = vmatpush1.bf16.msra.mxu0 0
    %897 = vmatprep.subr.bf16.mxu0 0
    %898 = vmatpush1.bf16.msra.mxu0 0
    %899 = vmatprep.subr.bf16.mxu0 %v420
    %900 = vmatpush1.bf16.msra.mxu0 %v419
    %901 = vmatprep.subr.bf16.mxu0 %v388
    %902 = vmatpush1.bf16.msra.mxu0 %v387
    %903 = vmatprep.subr.bf16.mxu0 0
    %904 = vmatpush2.bf16.msra.mxu0 0
    %905 = vmatprep.subr.bf16.mxu0 0
    %906 = vmatpush2.bf16.msra.mxu0 0
    %907 = vmatprep.subr.bf16.mxu0 0
    %908 = vmatpush2.bf16.msra.mxu0 0
    %909 = vmatprep.subr.bf16.mxu0 0
    %910 = vmatpush2.bf16.msra.mxu0 0
    %911 = vmatprep.subr.bf16.mxu0 0
    %912 = vmatpush2.bf16.msra.mxu0 0
    %913 = vmatprep.subr.bf16.mxu0 0
    %914 = vmatpush2.bf16.msra.mxu0 0
    %915 = vmatprep.subr.bf16.mxu0 0
    %916 = vmatpush2.bf16.msra.mxu0 0
    %917 = vmatprep.subr.bf16.mxu0 0
    %918 = vmatpush2.bf16.msra.mxu0 0
    %919 = vmatprep.mubr.bf16.mxu0 0
    %920 = vmatmul.mubr.bf16.gmra.mxu0 %v498
    %v921 = vpop.f32.mrf.mxu0
    %v922 = vadd.f32 0.0, %v921
    %v923 = vpop.f32.mrf.mxu0
    %v924 = vadd.f32 0.0, %v923
    %v925 = vpop.f32.mrf.mxu0
    %v926 = vadd.f32 0.0, %v925
    %v927 = vpop.f32.mrf.mxu0
    %v928 = vadd.f32 0.0, %v927
    %929 = vdwg.mxu0
    %930 = vmatprep.subr.bf16.mxu0 0
    %931 = vmatpush1.bf16.msra.mxu0 0
    %932 = vmatprep.subr.bf16.mxu0 0
    %933 = vmatpush1.bf16.msra.mxu0 0
    %934 = vmatprep.subr.bf16.mxu0 0
    %935 = vmatpush1.bf16.msra.mxu0 0
    %936 = vmatprep.subr.bf16.mxu0 0
    %937 = vmatpush1.bf16.msra.mxu0 0
    %938 = vmatprep.subr.bf16.mxu0 0
    %939 = vmatpush1.bf16.msra.mxu0 0
    %940 = vmatprep.subr.bf16.mxu0 0
    %941 = vmatpush1.bf16.msra.mxu0 0
    %942 = vmatprep.subr.bf16.mxu0 %v422
    %943 = vmatpush1.bf16.msra.mxu0 %v421
    %944 = vmatprep.subr.bf16.mxu0 %v390
    %945 = vmatpush1.bf16.msra.mxu0 %v389
    %946 = vmatprep.subr.bf16.mxu0 0
    %947 = vmatpush2.bf16.msra.mxu0 0
    %948 = vmatprep.subr.bf16.mxu0 0
    %949 = vmatpush2.bf16.msra.mxu0 0
    %950 = vmatprep.subr.bf16.mxu0 0
    %951 = vmatpush2.bf16.msra.mxu0 0
    %952 = vmatprep.subr.bf16.mxu0 0
    %953 = vmatpush2.bf16.msra.mxu0 0
    %954 = vmatprep.subr.bf16.mxu0 0
    %955 = vmatpush2.bf16.msra.mxu0 0
    %956 = vmatprep.subr.bf16.mxu0 0
    %957 = vmatpush2.bf16.msra.mxu0 0
    %958 = vmatprep.subr.bf16.mxu0 0
    %959 = vmatpush2.bf16.msra.mxu0 0
    %960 = vmatprep.subr.bf16.mxu0 0
    %961 = vmatpush2.bf16.msra.mxu0 0
    %962 = vmatprep.mubr.bf16.mxu0 0
    %963 = vmatmul.mubr.bf16.gmra.mxu0 %v498
    %v964 = vpop.f32.mrf.mxu0
    %v965 = vadd.f32 0.0, %v964
    %v966 = vpop.f32.mrf.mxu0
    %v967 = vadd.f32 0.0, %v966
    %v968 = vpop.f32.mrf.mxu0
    %v969 = vadd.f32 0.0, %v968
    %v970 = vpop.f32.mrf.mxu0
    %v971 = vadd.f32 0.0, %v970
    %972 = vdwg.mxu0
    %973 = vmatprep.subr.bf16.mxu0 0
    %974 = vmatpush1.bf16.msra.mxu0 0
    %975 = vmatprep.subr.bf16.mxu0 0
    %976 = vmatpush1.bf16.msra.mxu0 0
    %977 = vmatprep.subr.bf16.mxu0 0
    %978 = vmatpush1.bf16.msra.mxu0 0
    %979 = vmatprep.subr.bf16.mxu0 0
    %980 = vmatpush1.bf16.msra.mxu0 0
    %981 = vmatprep.subr.bf16.mxu0 0
    %982 = vmatpush1.bf16.msra.mxu0 0
    %983 = vmatprep.subr.bf16.mxu0 0
    %984 = vmatpush1.bf16.msra.mxu0 0
    %985 = vmatprep.subr.bf16.mxu0 %v424
    %986 = vmatpush1.bf16.msra.mxu0 %v423
    %987 = vmatprep.subr.bf16.mxu0 %v392
    %988 = vmatpush1.bf16.msra.mxu0 %v391
    %989 = vmatprep.subr.bf16.mxu0 0
    %990 = vmatpush2.bf16.msra.mxu0 0
    %991 = vmatprep.subr.bf16.mxu0 0
    %992 = vmatpush2.bf16.msra.mxu0 0
    %993 = vmatprep.subr.bf16.mxu0 0
    %994 = vmatpush2.bf16.msra.mxu0 0
    %995 = vmatprep.subr.bf16.mxu0 0
    %996 = vmatpush2.bf16.msra.mxu0 0
    %997 = vmatprep.subr.bf16.mxu0 0
    %998 = vmatpush2.bf16.msra.mxu0 0
    %999 = vmatprep.subr.bf16.mxu0 0
    %1000 = vmatpush2.bf16.msra.mxu0 0
    %1001 = vmatprep.subr.bf16.mxu0 0
    %1002 = vmatpush2.bf16.msra.mxu0 0
    %1003 = vmatprep.subr.bf16.mxu0 0
    %1004 = vmatpush2.bf16.msra.mxu0 0
    %1005 = vmatprep.mubr.bf16.mxu0 0
    %1006 = vmatmul.mubr.bf16.gmra.mxu0 %v498
    %v1007 = vpop.f32.mrf.mxu0
    %v1008 = vadd.f32 0.0, %v1007
    %v1009 = vpop.f32.mrf.mxu0
    %v1010 = vadd.f32 0.0, %v1009
    %v1011 = vpop.f32.mrf.mxu0
    %v1012 = vadd.f32 0.0, %v1011
    %v1013 = vpop.f32.mrf.mxu0
    %v1014 = vadd.f32 0.0, %v1013
    %1015 = vdwg.mxu0
    %1016 = vmatprep.subr.bf16.mxu0 0
    %1017 = vmatpush1.bf16.msra.mxu0 0
    %1018 = vmatprep.subr.bf16.mxu0 0
    %1019 = vmatpush1.bf16.msra.mxu0 0
    %1020 = vmatprep.subr.bf16.mxu0 0
    %1021 = vmatpush1.bf16.msra.mxu0 0
    %1022 = vmatprep.subr.bf16.mxu0 0
    %1023 = vmatpush1.bf16.msra.mxu0 0
    %1024 = vmatprep.subr.bf16.mxu0 0
    %1025 = vmatpush1.bf16.msra.mxu0 0
    %1026 = vmatprep.subr.bf16.mxu0 0
    %1027 = vmatpush1.bf16.msra.mxu0 0
    %1028 = vmatprep.subr.bf16.mxu0 %v426
    %1029 = vmatpush1.bf16.msra.mxu0 %v425
    %1030 = vmatprep.subr.bf16.mxu0 %v394
    %1031 = vmatpush1.bf16.msra.mxu0 %v393
    %1032 = vmatprep.subr.bf16.mxu0 0
    %1033 = vmatpush2.bf16.msra.mxu0 0
    %1034 = vmatprep.subr.bf16.mxu0 0
    %1035 = vmatpush2.bf16.msra.mxu0 0
    %1036 = vmatprep.subr.bf16.mxu0 0
    %1037 = vmatpush2.bf16.msra.mxu0 0
    %1038 = vmatprep.subr.bf16.mxu0 0
    %1039 = vmatpush2.bf16.msra.mxu0 0
    %1040 = vmatprep.subr.bf16.mxu0 0
    %1041 = vmatpush2.bf16.msra.mxu0 0
    %1042 = vmatprep.subr.bf16.mxu0 0
    %1043 = vmatpush2.bf16.msra.mxu0 0
    %1044 = vmatprep.subr.bf16.mxu0 0
    %1045 = vmatpush2.bf16.msra.mxu0 0
    %1046 = vmatprep.subr.bf16.mxu0 0
    %1047 = vmatpush2.bf16.msra.mxu0 0
    %1048 = vmatprep.mubr.bf16.mxu0 0
    %1049 = vmatmul.mubr.bf16.gmra.mxu0 %v498
    %v1050 = vpop.f32.mrf.mxu0
    %v1051 = vadd.f32 0.0, %v1050
    %v1052 = vpop.f32.mrf.mxu0
    %v1053 = vadd.f32 0.0, %v1052
    %v1054 = vpop.f32.mrf.mxu0
    %v1055 = vadd.f32 0.0, %v1054
    %v1056 = vpop.f32.mrf.mxu0
    %v1057 = vadd.f32 0.0, %v1056
    %1058 = vdwg.mxu0
    %1059 = vmatprep.subr.bf16.mxu0 0
    %1060 = vmatpush1.bf16.msra.mxu0 0
    %1061 = vmatprep.subr.bf16.mxu0 0
    %1062 = vmatpush1.bf16.msra.mxu0 0
    %1063 = vmatprep.subr.bf16.mxu0 0
    %1064 = vmatpush1.bf16.msra.mxu0 0
    %1065 = vmatprep.subr.bf16.mxu0 0
    %1066 = vmatpush1.bf16.msra.mxu0 0
    %1067 = vmatprep.subr.bf16.mxu0 0
    %1068 = vmatpush1.bf16.msra.mxu0 0
    %1069 = vmatprep.subr.bf16.mxu0 0
    %1070 = vmatpush1.bf16.msra.mxu0 0
    %1071 = vmatprep.subr.bf16.mxu0 %v428
    %1072 = vmatpush1.bf16.msra.mxu0 %v427
    %1073 = vmatprep.subr.bf16.mxu0 %v396
    %1074 = vmatpush1.bf16.msra.mxu0 %v395
    %1075 = vmatprep.subr.bf16.mxu0 0
    %1076 = vmatpush2.bf16.msra.mxu0 0
    %1077 = vmatprep.subr.bf16.mxu0 0
    %1078 = vmatpush2.bf16.msra.mxu0 0
    %1079 = vmatprep.subr.bf16.mxu0 0
    %1080 = vmatpush2.bf16.msra.mxu0 0
    %1081 = vmatprep.subr.bf16.mxu0 0
    %1082 = vmatpush2.bf16.msra.mxu0 0
    %1083 = vmatprep.subr.bf16.mxu0 0
    %1084 = vmatpush2.bf16.msra.mxu0 0
    %1085 = vmatprep.subr.bf16.mxu0 0
    %1086 = vmatpush2.bf16.msra.mxu0 0
    %1087 = vmatprep.subr.bf16.mxu0 0
    %1088 = vmatpush2.bf16.msra.mxu0 0
    %1089 = vmatprep.subr.bf16.mxu0 0
    %1090 = vmatpush2.bf16.msra.mxu0 0
    %1091 = vmatprep.mubr.bf16.mxu0 0
    %1092 = vmatmul.mubr.bf16.gmra.mxu0 %v498
    %v1093 = vpop.f32.mrf.mxu0
    %v1094 = vadd.f32 0.0, %v1093
    %v1095 = vpop.f32.mrf.mxu0
    %v1096 = vadd.f32 0.0, %v1095
    %v1097 = vpop.f32.mrf.mxu0
    %v1098 = vadd.f32 0.0, %v1097
    %v1099 = vpop.f32.mrf.mxu0
    %v1100 = vadd.f32 0.0, %v1099
    %1101 = vdwg.mxu0
    %1102 = vmatprep.subr.bf16.mxu0 0
    %1103 = vmatpush1.bf16.msra.mxu0 0
    %1104 = vmatprep.subr.bf16.mxu0 0
    %1105 = vmatpush1.bf16.msra.mxu0 0
    %1106 = vmatprep.subr.bf16.mxu0 0
    %1107 = vmatpush1.bf16.msra.mxu0 0
    %1108 = vmatprep.subr.bf16.mxu0 0
    %1109 = vmatpush1.bf16.msra.mxu0 0
    %1110 = vmatprep.subr.bf16.mxu0 0
    %1111 = vmatpush1.bf16.msra.mxu0 0
    %1112 = vmatprep.subr.bf16.mxu0 0
    %1113 = vmatpush1.bf16.msra.mxu0 0
    %1114 = vmatprep.subr.bf16.mxu0 %v430
    %1115 = vmatpush1.bf16.msra.mxu0 %v429
    %1116 = vmatprep.subr.bf16.mxu0 %v398
    %1117 = vmatpush1.bf16.msra.mxu0 %v397
    %1118 = vmatprep.subr.bf16.mxu0 0
    %1119 = vmatpush2.bf16.msra.mxu0 0
    %1120 = vmatprep.subr.bf16.mxu0 0
    %1121 = vmatpush2.bf16.msra.mxu0 0
    %1122 = vmatprep.subr.bf16.mxu0 0
    %1123 = vmatpush2.bf16.msra.mxu0 0
    %1124 = vmatprep.subr.bf16.mxu0 0
    %1125 = vmatpush2.bf16.msra.mxu0 0
    %1126 = vmatprep.subr.bf16.mxu0 0
    %1127 = vmatpush2.bf16.msra.mxu0 0
    %1128 = vmatprep.subr.bf16.mxu0 0
    %1129 = vmatpush2.bf16.msra.mxu0 0
    %1130 = vmatprep.subr.bf16.mxu0 0
    %1131 = vmatpush2.bf16.msra.mxu0 0
    %1132 = vmatprep.subr.bf16.mxu0 0
    %1133 = vmatpush2.bf16.msra.mxu0 0
    %1134 = vmatprep.mubr.bf16.mxu0 0
    %1135 = vmatmul.mubr.bf16.gmra.mxu0 %v498
    %v1136 = vpop.f32.mrf.mxu0
    %v1137 = vadd.f32 0.0, %v1136
    %v1138 = vpop.f32.mrf.mxu0
    %v1139 = vadd.f32 0.0, %v1138
    %v1140 = vpop.f32.mrf.mxu0
    %v1141 = vadd.f32 0.0, %v1140
    %v1142 = vpop.f32.mrf.mxu0
    %v1143 = vadd.f32 0.0, %v1142
    %1144 = vdwg.mxu0
    %1145 = vmatprep.subr.bf16.mxu0 0
    %1146 = vmatpush1.bf16.msra.mxu0 0
    %1147 = vmatprep.subr.bf16.mxu0 0
    %1148 = vmatpush1.bf16.msra.mxu0 0
    %1149 = vmatprep.subr.bf16.mxu0 0
    %1150 = vmatpush1.bf16.msra.mxu0 0
    %1151 = vmatprep.subr.bf16.mxu0 0
    %1152 = vmatpush1.bf16.msra.mxu0 0
    %1153 = vmatprep.subr.bf16.mxu0 0
    %1154 = vmatpush1.bf16.msra.mxu0 0
    %1155 = vmatprep.subr.bf16.mxu0 0
    %1156 = vmatpush1.bf16.msra.mxu0 0
    %1157 = vmatprep.subr.bf16.mxu0 %v432
    %1158 = vmatpush1.bf16.msra.mxu0 %v431
    %1159 = vmatprep.subr.bf16.mxu0 %v400
    %1160 = vmatpush1.bf16.msra.mxu0 %v399
    %1161 = vmatprep.subr.bf16.mxu0 0
    %1162 = vmatpush2.bf16.msra.mxu0 0
    %1163 = vmatprep.subr.bf16.mxu0 0
    %1164 = vmatpush2.bf16.msra.mxu0 0
    %1165 = vmatprep.subr.bf16.mxu0 0
    %1166 = vmatpush2.bf16.msra.mxu0 0
    %1167 = vmatprep.subr.bf16.mxu0 0
    %1168 = vmatpush2.bf16.msra.mxu0 0
    %1169 = vmatprep.subr.bf16.mxu0 0
    %1170 = vmatpush2.bf16.msra.mxu0 0
    %1171 = vmatprep.subr.bf16.mxu0 0
    %1172 = vmatpush2.bf16.msra.mxu0 0
    %1173 = vmatprep.subr.bf16.mxu0 0
    %1174 = vmatpush2.bf16.msra.mxu0 0
    %1175 = vmatprep.subr.bf16.mxu0 0
    %1176 = vmatpush2.bf16.msra.mxu0 0
    %1177 = vmatprep.mubr.bf16.mxu0 0
    %1178 = vmatmul.mubr.bf16.gmra.mxu0 %v498
    %v1179 = vpop.f32.mrf.mxu0
    %v1180 = vadd.f32 0.0, %v1179
    %v1181 = vpop.f32.mrf.mxu0
    %v1182 = vadd.f32 0.0, %v1181
    %v1183 = vpop.f32.mrf.mxu0
    %v1184 = vadd.f32 0.0, %v1183
    %v1185 = vpop.f32.mrf.mxu0
    %v1186 = vadd.f32 0.0, %v1185
    %1187 = vdwg.mxu0
    %v1188 = vpack.c.bf16 %v539, %v535
    %v1189 = vpack.c.bf16 %v541, %v537
    %v1190 = vpack.c.bf16 %v582, %v578
    %v1191 = vpack.c.bf16 %v584, %v580
    %v1192 = vpack.c.bf16 %v625, %v621
    %v1193 = vpack.c.bf16 %v627, %v623
    %v1194 = vpack.c.bf16 %v668, %v664
    %v1195 = vpack.c.bf16 %v670, %v666
    %v1196 = vpack.c.bf16 %v711, %v707
    %v1197 = vpack.c.bf16 %v713, %v709
    %v1198 = vpack.c.bf16 %v754, %v750
    %v1199 = vpack.c.bf16 %v756, %v752
    %v1200 = vpack.c.bf16 %v797, %v793
    %v1201 = vpack.c.bf16 %v799, %v795
    %v1202 = vpack.c.bf16 %v840, %v836
    %v1203 = vpack.c.bf16 %v842, %v838
    %v1204 = vpack.c.bf16 %v883, %v879
    %v1205 = vpack.c.bf16 %v885, %v881
    %v1206 = vpack.c.bf16 %v926, %v922
    %v1207 = vpack.c.bf16 %v928, %v924
    %v1208 = vpack.c.bf16 %v969, %v965
    %v1209 = vpack.c.bf16 %v971, %v967
    %v1210 = vpack.c.bf16 %v1012, %v1008
    %v1211 = vpack.c.bf16 %v1014, %v1010
    %v1212 = vpack.c.bf16 %v1055, %v1051
    %v1213 = vpack.c.bf16 %v1057, %v1053
    %v1214 = vpack.c.bf16 %v1098, %v1094
    %v1215 = vpack.c.bf16 %v1100, %v1096
    %v1216 = vpack.c.bf16 %v1141, %v1137
    %v1217 = vpack.c.bf16 %v1143, %v1139
    %v1218 = vpack.c.bf16 %v1184, %v1180
    %v1219 = vpack.c.bf16 %v1186, %v1182
    %v1220 = vld [vmem:[#allocation7] sm:$0xff]
    %v1221 = vld [vmem:[#allocation7 + $0x8] sm:$0xff]
    %v1222 = vld [vmem:[#allocation7 + $0x10] sm:$0xff]
    %v1223 = vld [vmem:[#allocation7 + $0x18] sm:$0xff]
    %v1228 = vlaneseq
    %v1229 = vshrl.u32 %v1228, 7
    %v1230 = vsub.s32 0, %v1229
    %v1231 = vrot.slane %v1220, %v1230
    %v1232 = vlaneseq
    %v1233 = vshrl.u32 %v1232, 7
    %v1234 = vsub.s32 1, %v1233
    %v1235 = vrot.slane %v1220, %v1234
    %v1236 = vlaneseq
    %v1237 = vshrl.u32 %v1236, 7
    %v1238 = vsub.s32 2, %v1237
    %v1239 = vrot.slane %v1220, %v1238
    %v1240 = vlaneseq
    %v1241 = vshrl.u32 %v1240, 7
    %v1242 = vsub.s32 3, %v1241
    %v1243 = vrot.slane %v1220, %v1242
    %v1244 = vlaneseq
    %v1245 = vshrl.u32 %v1244, 7
    %v1246 = vsub.s32 4, %v1245
    %v1247 = vrot.slane %v1220, %v1246
    %v1248 = vlaneseq
    %v1249 = vshrl.u32 %v1248, 7
    %v1250 = vsub.s32 5, %v1249
    %v1251 = vrot.slane %v1220, %v1250
    %v1252 = vlaneseq
    %v1253 = vshrl.u32 %v1252, 7
    %v1254 = vsub.s32 6, %v1253
    %v1255 = vrot.slane %v1220, %v1254
    %v1256 = vlaneseq
    %v1257 = vshrl.u32 %v1256, 7
    %v1258 = vsub.s32 7, %v1257
    %v1259 = vrot.slane %v1220, %v1258
    %v1260 = vlaneseq
    %v1261 = vshrl.u32 %v1260, 7
    %v1262 = vsub.s32 0, %v1261
    %v1263 = vrot.slane %v1221, %v1262
    %v1264 = vlaneseq
    %v1265 = vshrl.u32 %v1264, 7
    %v1266 = vsub.s32 1, %v1265
    %v1267 = vrot.slane %v1221, %v1266
    %v1268 = vlaneseq
    %v1269 = vshrl.u32 %v1268, 7
    %v1270 = vsub.s32 2, %v1269
    %v1271 = vrot.slane %v1221, %v1270
    %v1272 = vlaneseq
    %v1273 = vshrl.u32 %v1272, 7
    %v1274 = vsub.s32 3, %v1273
    %v1275 = vrot.slane %v1221, %v1274
    %v1276 = vlaneseq
    %v1277 = vshrl.u32 %v1276, 7
    %v1278 = vsub.s32 4, %v1277
    %v1279 = vrot.slane %v1221, %v1278
    %v1280 = vlaneseq
    %v1281 = vshrl.u32 %v1280, 7
    %v1282 = vsub.s32 5, %v1281
    %v1283 = vrot.slane %v1221, %v1282
    %v1284 = vlaneseq
    %v1285 = vshrl.u32 %v1284, 7
    %v1286 = vsub.s32 6, %v1285
    %v1287 = vrot.slane %v1221, %v1286
    %v1288 = vlaneseq
    %v1289 = vshrl.u32 %v1288, 7
    %v1290 = vsub.s32 7, %v1289
    %v1291 = vrot.slane %v1221, %v1290
    %v1292 = vlaneseq
    %v1293 = vshrl.u32 %v1292, 7
    %v1294 = vsub.s32 0, %v1293
    %v1295 = vrot.slane %v1222, %v1294
    %v1296 = vlaneseq
    %v1297 = vshrl.u32 %v1296, 7
    %v1298 = vsub.s32 1, %v1297
    %v1299 = vrot.slane %v1222, %v1298
    %v1300 = vlaneseq
    %v1301 = vshrl.u32 %v1300, 7
    %v1302 = vsub.s32 2, %v1301
    %v1303 = vrot.slane %v1222, %v1302
    %v1304 = vlaneseq
    %v1305 = vshrl.u32 %v1304, 7
    %v1306 = vsub.s32 3, %v1305
    %v1307 = vrot.slane %v1222, %v1306
    %v1308 = vlaneseq
    %v1309 = vshrl.u32 %v1308, 7
    %v1310 = vsub.s32 4, %v1309
    %v1311 = vrot.slane %v1222, %v1310
    %v1312 = vlaneseq
    %v1313 = vshrl.u32 %v1312, 7
    %v1314 = vsub.s32 5, %v1313
    %v1315 = vrot.slane %v1222, %v1314
    %v1316 = vlaneseq
    %v1317 = vshrl.u32 %v1316, 7
    %v1318 = vsub.s32 6, %v1317
    %v1319 = vrot.slane %v1222, %v1318
    %v1320 = vlaneseq
    %v1321 = vshrl.u32 %v1320, 7
    %v1322 = vsub.s32 7, %v1321
    %v1323 = vrot.slane %v1222, %v1322
    %v1324 = vlaneseq
    %v1325 = vshrl.u32 %v1324, 7
    %v1326 = vsub.s32 0, %v1325
    %v1327 = vrot.slane %v1223, %v1326
    %v1328 = vlaneseq
    %v1329 = vshrl.u32 %v1328, 7
    %v1330 = vsub.s32 1, %v1329
    %v1331 = vrot.slane %v1223, %v1330
    %v1332 = vlaneseq
    %v1333 = vshrl.u32 %v1332, 7
    %v1334 = vsub.s32 2, %v1333
    %v1335 = vrot.slane %v1223, %v1334
    %v1336 = vlaneseq
    %v1337 = vshrl.u32 %v1336, 7
    %v1338 = vsub.s32 3, %v1337
    %v1339 = vrot.slane %v1223, %v1338
    %v1340 = vlaneseq
    %v1341 = vshrl.u32 %v1340, 7
    %v1342 = vsub.s32 4, %v1341
    %v1343 = vrot.slane %v1223, %v1342
    %v1344 = vlaneseq
    %v1345 = vshrl.u32 %v1344, 7
    %v1346 = vsub.s32 5, %v1345
    %v1347 = vrot.slane %v1223, %v1346
    %v1348 = vlaneseq
    %v1349 = vshrl.u32 %v1348, 7
    %v1350 = vsub.s32 6, %v1349
    %v1351 = vrot.slane %v1223, %v1350
    %v1352 = vlaneseq
    %v1353 = vshrl.u32 %v1352, 7
    %v1354 = vsub.s32 7, %v1353
    %v1355 = vrot.slane %v1223, %v1354
    %v1388 = vpack.c.bf16 %v1231, %v1231
    %v1389 = vpack.c.bf16 %v1235, %v1235
    %v1390 = vpack.c.bf16 %v1239, %v1239
    %v1391 = vpack.c.bf16 %v1243, %v1243
    %v1392 = vpack.c.bf16 %v1247, %v1247
    %v1393 = vpack.c.bf16 %v1251, %v1251
    %v1394 = vpack.c.bf16 %v1255, %v1255
    %v1395 = vpack.c.bf16 %v1259, %v1259
    %v1396 = vpack.c.bf16 %v1263, %v1263
    %v1397 = vpack.c.bf16 %v1267, %v1267
    %v1398 = vpack.c.bf16 %v1271, %v1271
    %v1399 = vpack.c.bf16 %v1275, %v1275
    %v1400 = vpack.c.bf16 %v1279, %v1279
    %v1401 = vpack.c.bf16 %v1283, %v1283
    %v1402 = vpack.c.bf16 %v1287, %v1287
    %v1403 = vpack.c.bf16 %v1291, %v1291
    %v1404 = vpack.c.bf16 %v1295, %v1295
    %v1405 = vpack.c.bf16 %v1299, %v1299
    %v1406 = vpack.c.bf16 %v1303, %v1303
    %v1407 = vpack.c.bf16 %v1307, %v1307
    %v1408 = vpack.c.bf16 %v1311, %v1311
    %v1409 = vpack.c.bf16 %v1315, %v1315
    %v1410 = vpack.c.bf16 %v1319, %v1319
    %v1411 = vpack.c.bf16 %v1323, %v1323
    %v1412 = vpack.c.bf16 %v1327, %v1327
    %v1413 = vpack.c.bf16 %v1331, %v1331
    %v1414 = vpack.c.bf16 %v1335, %v1335
    %v1415 = vpack.c.bf16 %v1339, %v1339
    %v1416 = vpack.c.bf16 %v1343, %v1343
    %v1417 = vpack.c.bf16 %v1347, %v1347
    %v1418 = vpack.c.bf16 %v1351, %v1351
    %v1419 = vpack.c.bf16 %v1355, %v1355
    %v1421 = vpack.i.b16 %v1388, %v1388
    %v1423 = vlaneseq
    %v1424 = vshrl.u32 %v1423, 7
    %v1425 = vsub.s32 0, %v1424
    %v1426 = vrot.slane %v1421, %v1425
    %v1428 = vpack.i.b16 %v1389, %v1389
    %v1430 = vlaneseq
    %v1431 = vshrl.u32 %v1430, 7
    %v1432 = vsub.s32 0, %v1431
    %v1433 = vrot.slane %v1428, %v1432
    %v1435 = vpack.i.b16 %v1390, %v1390
    %v1437 = vlaneseq
    %v1438 = vshrl.u32 %v1437, 7
    %v1439 = vsub.s32 0, %v1438
    %v1440 = vrot.slane %v1435, %v1439
    %v1442 = vpack.i.b16 %v1391, %v1391
    %v1444 = vlaneseq
    %v1445 = vshrl.u32 %v1444, 7
    %v1446 = vsub.s32 0, %v1445
    %v1447 = vrot.slane %v1442, %v1446
    %v1449 = vpack.i.b16 %v1392, %v1392
    %v1451 = vlaneseq
    %v1452 = vshrl.u32 %v1451, 7
    %v1453 = vsub.s32 0, %v1452
    %v1454 = vrot.slane %v1449, %v1453
    %v1456 = vpack.i.b16 %v1393, %v1393
    %v1458 = vlaneseq
    %v1459 = vshrl.u32 %v1458, 7
    %v1460 = vsub.s32 0, %v1459
    %v1461 = vrot.slane %v1456, %v1460
    %v1463 = vpack.i.b16 %v1394, %v1394
    %v1465 = vlaneseq
    %v1466 = vshrl.u32 %v1465, 7
    %v1467 = vsub.s32 0, %v1466
    %v1468 = vrot.slane %v1463, %v1467
    %v1470 = vpack.i.b16 %v1395, %v1395
    %v1472 = vlaneseq
    %v1473 = vshrl.u32 %v1472, 7
    %v1474 = vsub.s32 0, %v1473
    %v1475 = vrot.slane %v1470, %v1474
    %v1477 = vpack.i.b16 %v1396, %v1396
    %v1479 = vlaneseq
    %v1480 = vshrl.u32 %v1479, 7
    %v1481 = vsub.s32 0, %v1480
    %v1482 = vrot.slane %v1477, %v1481
    %v1484 = vpack.i.b16 %v1397, %v1397
    %v1486 = vlaneseq
    %v1487 = vshrl.u32 %v1486, 7
    %v1488 = vsub.s32 0, %v1487
    %v1489 = vrot.slane %v1484, %v1488
    %v1491 = vpack.i.b16 %v1398, %v1398
    %v1493 = vlaneseq
    %v1494 = vshrl.u32 %v1493, 7
    %v1495 = vsub.s32 0, %v1494
    %v1496 = vrot.slane %v1491, %v1495
    %v1498 = vpack.i.b16 %v1399, %v1399
    %v1500 = vlaneseq
    %v1501 = vshrl.u32 %v1500, 7
    %v1502 = vsub.s32 0, %v1501
    %v1503 = vrot.slane %v1498, %v1502
    %v1505 = vpack.i.b16 %v1400, %v1400
    %v1507 = vlaneseq
    %v1508 = vshrl.u32 %v1507, 7
    %v1509 = vsub.s32 0, %v1508
    %v1510 = vrot.slane %v1505, %v1509
    %v1512 = vpack.i.b16 %v1401, %v1401
    %v1514 = vlaneseq
    %v1515 = vshrl.u32 %v1514, 7
    %v1516 = vsub.s32 0, %v1515
    %v1517 = vrot.slane %v1512, %v1516
    %v1519 = vpack.i.b16 %v1402, %v1402
    %v1521 = vlaneseq
    %v1522 = vshrl.u32 %v1521, 7
    %v1523 = vsub.s32 0, %v1522
    %v1524 = vrot.slane %v1519, %v1523
    %v1526 = vpack.i.b16 %v1403, %v1403
    %v1528 = vlaneseq
    %v1529 = vshrl.u32 %v1528, 7
    %v1530 = vsub.s32 0, %v1529
    %v1531 = vrot.slane %v1526, %v1530
    %v1533 = vpack.i.b16 %v1404, %v1404
    %v1535 = vlaneseq
    %v1536 = vshrl.u32 %v1535, 7
    %v1537 = vsub.s32 0, %v1536
    %v1538 = vrot.slane %v1533, %v1537
    %v1540 = vpack.i.b16 %v1405, %v1405
    %v1542 = vlaneseq
    %v1543 = vshrl.u32 %v1542, 7
    %v1544 = vsub.s32 0, %v1543
    %v1545 = vrot.slane %v1540, %v1544
    %v1547 = vpack.i.b16 %v1406, %v1406
    %v1549 = vlaneseq
    %v1550 = vshrl.u32 %v1549, 7
    %v1551 = vsub.s32 0, %v1550
    %v1552 = vrot.slane %v1547, %v1551
    %v1554 = vpack.i.b16 %v1407, %v1407
    %v1556 = vlaneseq
    %v1557 = vshrl.u32 %v1556, 7
    %v1558 = vsub.s32 0, %v1557
    %v1559 = vrot.slane %v1554, %v1558
    %v1561 = vpack.i.b16 %v1408, %v1408
    %v1563 = vlaneseq
    %v1564 = vshrl.u32 %v1563, 7
    %v1565 = vsub.s32 0, %v1564
    %v1566 = vrot.slane %v1561, %v1565
    %v1568 = vpack.i.b16 %v1409, %v1409
    %v1570 = vlaneseq
    %v1571 = vshrl.u32 %v1570, 7
    %v1572 = vsub.s32 0, %v1571
    %v1573 = vrot.slane %v1568, %v1572
    %v1575 = vpack.i.b16 %v1410, %v1410
    %v1577 = vlaneseq
    %v1578 = vshrl.u32 %v1577, 7
    %v1579 = vsub.s32 0, %v1578
    %v1580 = vrot.slane %v1575, %v1579
    %v1582 = vpack.i.b16 %v1411, %v1411
    %v1584 = vlaneseq
    %v1585 = vshrl.u32 %v1584, 7
    %v1586 = vsub.s32 0, %v1585
    %v1587 = vrot.slane %v1582, %v1586
    %v1589 = vpack.i.b16 %v1412, %v1412
    %v1591 = vlaneseq
    %v1592 = vshrl.u32 %v1591, 7
    %v1593 = vsub.s32 0, %v1592
    %v1594 = vrot.slane %v1589, %v1593
    %v1596 = vpack.i.b16 %v1413, %v1413
    %v1598 = vlaneseq
    %v1599 = vshrl.u32 %v1598, 7
    %v1600 = vsub.s32 0, %v1599
    %v1601 = vrot.slane %v1596, %v1600
    %v1603 = vpack.i.b16 %v1414, %v1414
    %v1605 = vlaneseq
    %v1606 = vshrl.u32 %v1605, 7
    %v1607 = vsub.s32 0, %v1606
    %v1608 = vrot.slane %v1603, %v1607
    %v1610 = vpack.i.b16 %v1415, %v1415
    %v1612 = vlaneseq
    %v1613 = vshrl.u32 %v1612, 7
    %v1614 = vsub.s32 0, %v1613
    %v1615 = vrot.slane %v1610, %v1614
    %v1617 = vpack.i.b16 %v1416, %v1416
    %v1619 = vlaneseq
    %v1620 = vshrl.u32 %v1619, 7
    %v1621 = vsub.s32 0, %v1620
    %v1622 = vrot.slane %v1617, %v1621
    %v1624 = vpack.i.b16 %v1417, %v1417
    %v1626 = vlaneseq
    %v1627 = vshrl.u32 %v1626, 7
    %v1628 = vsub.s32 0, %v1627
    %v1629 = vrot.slane %v1624, %v1628
    %v1631 = vpack.i.b16 %v1418, %v1418
    %v1633 = vlaneseq
    %v1634 = vshrl.u32 %v1633, 7
    %v1635 = vsub.s32 0, %v1634
    %v1636 = vrot.slane %v1631, %v1635
    %v1638 = vpack.i.b16 %v1419, %v1419
    %v1640 = vlaneseq
    %v1641 = vshrl.u32 %v1640, 7
    %v1642 = vsub.s32 0, %v1641
    %v1643 = vrot.slane %v1638, %v1642
    %v1644 = vadd.bf16 %v1188, %v1426
    %v1645 = vadd.bf16 %v1189, %v1433
    %v1646 = vadd.bf16 %v1190, %v1440
    %v1647 = vadd.bf16 %v1191, %v1447
    %v1648 = vadd.bf16 %v1192, %v1454
    %v1649 = vadd.bf16 %v1193, %v1461
    %v1650 = vadd.bf16 %v1194, %v1468
    %v1651 = vadd.bf16 %v1195, %v1475
    %v1652 = vadd.bf16 %v1196, %v1482
    %v1653 = vadd.bf16 %v1197, %v1489
    %v1654 = vadd.bf16 %v1198, %v1496
    %v1655 = vadd.bf16 %v1199, %v1503
    %v1656 = vadd.bf16 %v1200, %v1510
    %v1657 = vadd.bf16 %v1201, %v1517
    %v1658 = vadd.bf16 %v1202, %v1524
    %v1659 = vadd.bf16 %v1203, %v1531
    %v1660 = vadd.bf16 %v1204, %v1538
    %v1661 = vadd.bf16 %v1205, %v1545
    %v1662 = vadd.bf16 %v1206, %v1552
    %v1663 = vadd.bf16 %v1207, %v1559
    %v1664 = vadd.bf16 %v1208, %v1566
    %v1665 = vadd.bf16 %v1209, %v1573
    %v1666 = vadd.bf16 %v1210, %v1580
    %v1667 = vadd.bf16 %v1211, %v1587
    %v1668 = vadd.bf16 %v1212, %v1594
    %v1669 = vadd.bf16 %v1213, %v1601
    %v1670 = vadd.bf16 %v1214, %v1608
    %v1671 = vadd.bf16 %v1215, %v1615
    %v1672 = vadd.bf16 %v1216, %v1622
    %v1673 = vadd.bf16 %v1217, %v1629
    %v1674 = vadd.bf16 %v1218, %v1636
    %v1675 = vadd.bf16 %v1219, %v1643
    %v1676 = vmul.bf16 %v1644, %v1644
    %v1677 = vmul.bf16 %v1645, %v1645
    %v1678 = vmul.bf16 %v1646, %v1646
    %v1679 = vmul.bf16 %v1647, %v1647
    %v1680 = vmul.bf16 %v1648, %v1648
    %v1681 = vmul.bf16 %v1649, %v1649
    %v1682 = vmul.bf16 %v1650, %v1650
    %v1683 = vmul.bf16 %v1651, %v1651
    %v1684 = vmul.bf16 %v1652, %v1652
    %v1685 = vmul.bf16 %v1653, %v1653
    %v1686 = vmul.bf16 %v1654, %v1654
    %v1687 = vmul.bf16 %v1655, %v1655
    %v1688 = vmul.bf16 %v1656, %v1656
    %v1689 = vmul.bf16 %v1657, %v1657
    %v1690 = vmul.bf16 %v1658, %v1658
    %v1691 = vmul.bf16 %v1659, %v1659
    %v1692 = vmul.bf16 %v1660, %v1660
    %v1693 = vmul.bf16 %v1661, %v1661
    %v1694 = vmul.bf16 %v1662, %v1662
    %v1695 = vmul.bf16 %v1663, %v1663
    %v1696 = vmul.bf16 %v1664, %v1664
    %v1697 = vmul.bf16 %v1665, %v1665
    %v1698 = vmul.bf16 %v1666, %v1666
    %v1699 = vmul.bf16 %v1667, %v1667
    %v1700 = vmul.bf16 %v1668, %v1668
    %v1701 = vmul.bf16 %v1669, %v1669
    %v1702 = vmul.bf16 %v1670, %v1670
    %v1703 = vmul.bf16 %v1671, %v1671
    %v1704 = vmul.bf16 %v1672, %v1672
    %v1705 = vmul.bf16 %v1673, %v1673
    %v1706 = vmul.bf16 %v1674, %v1674
    %v1707 = vmul.bf16 %v1675, %v1675
    %v1708 = vmul.bf16 %v1644, %v1676
    %v1709 = vmul.bf16 %v1645, %v1677
    %v1710 = vmul.bf16 %v1646, %v1678
    %v1711 = vmul.bf16 %v1647, %v1679
    %v1712 = vmul.bf16 %v1648, %v1680
    %v1713 = vmul.bf16 %v1649, %v1681
    %v1714 = vmul.bf16 %v1650, %v1682
    %v1715 = vmul.bf16 %v1651, %v1683
    %v1716 = vmul.bf16 %v1652, %v1684
    %v1717 = vmul.bf16 %v1653, %v1685
    %v1718 = vmul.bf16 %v1654, %v1686
    %v1719 = vmul.bf16 %v1655, %v1687
    %v1720 = vmul.bf16 %v1656, %v1688
    %v1721 = vmul.bf16 %v1657, %v1689
    %v1722 = vmul.bf16 %v1658, %v1690
    %v1723 = vmul.bf16 %v1659, %v1691
    %v1724 = vmul.bf16 %v1660, %v1692
    %v1725 = vmul.bf16 %v1661, %v1693
    %v1726 = vmul.bf16 %v1662, %v1694
    %v1727 = vmul.bf16 %v1663, %v1695
    %v1728 = vmul.bf16 %v1664, %v1696
    %v1729 = vmul.bf16 %v1665, %v1697
    %v1730 = vmul.bf16 %v1666, %v1698
    %v1731 = vmul.bf16 %v1667, %v1699
    %v1732 = vmul.bf16 %v1668, %v1700
    %v1733 = vmul.bf16 %v1669, %v1701
    %v1734 = vmul.bf16 %v1670, %v1702
    %v1735 = vmul.bf16 %v1671, %v1703
    %v1736 = vmul.bf16 %v1672, %v1704
    %v1737 = vmul.bf16 %v1673, %v1705
    %v1738 = vmul.bf16 %v1674, %v1706
    %v1739 = vmul.bf16 %v1675, %v1707
    %v1740 = vmul.bf16 %v1708, 1027030327
    %v1741 = vmul.bf16 %v1709, 1027030327
    %v1742 = vmul.bf16 %v1710, 1027030327
    %v1743 = vmul.bf16 %v1711, 1027030327
    %v1744 = vmul.bf16 %v1712, 1027030327
    %v1745 = vmul.bf16 %v1713, 1027030327
    %v1746 = vmul.bf16 %v1714, 1027030327
    %v1747 = vmul.bf16 %v1715, 1027030327
    %v1748 = vmul.bf16 %v1716, 1027030327
    %v1749 = vmul.bf16 %v1717, 1027030327
    %v1750 = vmul.bf16 %v1718, 1027030327
    %v1751 = vmul.bf16 %v1719, 1027030327
    %v1752 = vmul.bf16 %v1720, 1027030327
    %v1753 = vmul.bf16 %v1721, 1027030327
    %v1754 = vmul.bf16 %v1722, 1027030327
    %v1755 = vmul.bf16 %v1723, 1027030327
    %v1756 = vmul.bf16 %v1724, 1027030327
    %v1757 = vmul.bf16 %v1725, 1027030327
    %v1758 = vmul.bf16 %v1726, 1027030327
    %v1759 = vmul.bf16 %v1727, 1027030327
    %v1760 = vmul.bf16 %v1728, 1027030327
    %v1761 = vmul.bf16 %v1729, 1027030327
    %v1762 = vmul.bf16 %v1730, 1027030327
    %v1763 = vmul.bf16 %v1731, 1027030327
    %v1764 = vmul.bf16 %v1732, 1027030327
    %v1765 = vmul.bf16 %v1733, 1027030327
    %v1766 = vmul.bf16 %v1734, 1027030327
    %v1767 = vmul.bf16 %v1735, 1027030327
    %v1768 = vmul.bf16 %v1736, 1027030327
    %v1769 = vmul.bf16 %v1737, 1027030327
    %v1770 = vmul.bf16 %v1738, 1027030327
    %v1771 = vmul.bf16 %v1739, 1027030327
    %v1772 = vadd.bf16 %v1644, %v1740
    %v1773 = vadd.bf16 %v1645, %v1741
    %v1774 = vadd.bf16 %v1646, %v1742
    %v1775 = vadd.bf16 %v1647, %v1743
    %v1776 = vadd.bf16 %v1648, %v1744
    %v1777 = vadd.bf16 %v1649, %v1745
    %v1778 = vadd.bf16 %v1650, %v1746
    %v1779 = vadd.bf16 %v1651, %v1747
    %v1780 = vadd.bf16 %v1652, %v1748
    %v1781 = vadd.bf16 %v1653, %v1749
    %v1782 = vadd.bf16 %v1654, %v1750
    %v1783 = vadd.bf16 %v1655, %v1751
    %v1784 = vadd.bf16 %v1656, %v1752
    %v1785 = vadd.bf16 %v1657, %v1753
    %v1786 = vadd.bf16 %v1658, %v1754
    %v1787 = vadd.bf16 %v1659, %v1755
    %v1788 = vadd.bf16 %v1660, %v1756
    %v1789 = vadd.bf16 %v1661, %v1757
    %v1790 = vadd.bf16 %v1662, %v1758
    %v1791 = vadd.bf16 %v1663, %v1759
    %v1792 = vadd.bf16 %v1664, %v1760
    %v1793 = vadd.bf16 %v1665, %v1761
    %v1794 = vadd.bf16 %v1666, %v1762
    %v1795 = vadd.bf16 %v1667, %v1763
    %v1796 = vadd.bf16 %v1668, %v1764
    %v1797 = vadd.bf16 %v1669, %v1765
    %v1798 = vadd.bf16 %v1670, %v1766
    %v1799 = vadd.bf16 %v1671, %v1767
    %v1800 = vadd.bf16 %v1672, %v1768
    %v1801 = vadd.bf16 %v1673, %v1769
    %v1802 = vadd.bf16 %v1674, %v1770
    %v1803 = vadd.bf16 %v1675, %v1771
    %v1804 = vmul.bf16 %v1772, 1061961548
    %v1805 = vmul.bf16 %v1773, 1061961548
    %v1806 = vmul.bf16 %v1774, 1061961548
    %v1807 = vmul.bf16 %v1775, 1061961548
    %v1808 = vmul.bf16 %v1776, 1061961548
    %v1809 = vmul.bf16 %v1777, 1061961548
    %v1810 = vmul.bf16 %v1778, 1061961548
    %v1811 = vmul.bf16 %v1779, 1061961548
    %v1812 = vmul.bf16 %v1780, 1061961548
    %v1813 = vmul.bf16 %v1781, 1061961548
    %v1814 = vmul.bf16 %v1782, 1061961548
    %v1815 = vmul.bf16 %v1783, 1061961548
    %v1816 = vmul.bf16 %v1784, 1061961548
    %v1817 = vmul.bf16 %v1785, 1061961548
    %v1818 = vmul.bf16 %v1786, 1061961548
    %v1819 = vmul.bf16 %v1787, 1061961548
    %v1820 = vmul.bf16 %v1788, 1061961548
    %v1821 = vmul.bf16 %v1789, 1061961548
    %v1822 = vmul.bf16 %v1790, 1061961548
    %v1823 = vmul.bf16 %v1791, 1061961548
    %v1824 = vmul.bf16 %v1792, 1061961548
    %v1825 = vmul.bf16 %v1793, 1061961548
    %v1826 = vmul.bf16 %v1794, 1061961548
    %v1827 = vmul.bf16 %v1795, 1061961548
    %v1828 = vmul.bf16 %v1796, 1061961548
    %v1829 = vmul.bf16 %v1797, 1061961548
    %v1830 = vmul.bf16 %v1798, 1061961548
    %v1831 = vmul.bf16 %v1799, 1061961548
    %v1832 = vmul.bf16 %v1800, 1061961548
    %v1833 = vmul.bf16 %v1801, 1061961548
    %v1834 = vmul.bf16 %v1802, 1061961548
    %v1835 = vmul.bf16 %v1803, 1061961548
    %v1836 = vtanh.bf16.pop %v1804
    %v1837 = vtanh.bf16.pop %v1805
    %v1838 = vtanh.bf16.pop %v1806
    %v1839 = vtanh.bf16.pop %v1807
    %v1840 = vtanh.bf16.pop %v1808
    %v1841 = vtanh.bf16.pop %v1809
    %v1842 = vtanh.bf16.pop %v1810
    %v1843 = vtanh.bf16.pop %v1811
    %v1844 = vtanh.bf16.pop %v1812
    %v1845 = vtanh.bf16.pop %v1813
    %v1846 = vtanh.bf16.pop %v1814
    %v1847 = vtanh.bf16.pop %v1815
    %v1848 = vtanh.bf16.pop %v1816
    %v1849 = vtanh.bf16.pop %v1817
    %v1850 = vtanh.bf16.pop %v1818
    %v1851 = vtanh.bf16.pop %v1819
    %v1852 = vtanh.bf16.pop %v1820
    %v1853 = vtanh.bf16.pop %v1821
    %v1854 = vtanh.bf16.pop %v1822
    %v1855 = vtanh.bf16.pop %v1823
    %v1856 = vtanh.bf16.pop %v1824
    %v1857 = vtanh.bf16.pop %v1825
    %v1858 = vtanh.bf16.pop %v1826
    %v1859 = vtanh.bf16.pop %v1827
    %v1860 = vtanh.bf16.pop %v1828
    %v1861 = vtanh.bf16.pop %v1829
    %v1862 = vtanh.bf16.pop %v1830
    %v1863 = vtanh.bf16.pop %v1831
    %v1864 = vtanh.bf16.pop %v1832
    %v1865 = vtanh.bf16.pop %v1833
    %v1866 = vtanh.bf16.pop %v1834
    %v1867 = vtanh.bf16.pop %v1835
    %v1868 = vadd.bf16 %v1836, 1065369472
    %v1869 = vadd.bf16 %v1837, 1065369472
    %v1870 = vadd.bf16 %v1838, 1065369472
    %v1871 = vadd.bf16 %v1839, 1065369472
    %v1872 = vadd.bf16 %v1840, 1065369472
    %v1873 = vadd.bf16 %v1841, 1065369472
    %v1874 = vadd.bf16 %v1842, 1065369472
    %v1875 = vadd.bf16 %v1843, 1065369472
    %v1876 = vadd.bf16 %v1844, 1065369472
    %v1877 = vadd.bf16 %v1845, 1065369472
    %v1878 = vadd.bf16 %v1846, 1065369472
    %v1879 = vadd.bf16 %v1847, 1065369472
    %v1880 = vadd.bf16 %v1848, 1065369472
    %v1881 = vadd.bf16 %v1849, 1065369472
    %v1882 = vadd.bf16 %v1850, 1065369472
    %v1883 = vadd.bf16 %v1851, 1065369472
    %v1884 = vadd.bf16 %v1852, 1065369472
    %v1885 = vadd.bf16 %v1853, 1065369472
    %v1886 = vadd.bf16 %v1854, 1065369472
    %v1887 = vadd.bf16 %v1855, 1065369472
    %v1888 = vadd.bf16 %v1856, 1065369472
    %v1889 = vadd.bf16 %v1857, 1065369472
    %v1890 = vadd.bf16 %v1858, 1065369472
    %v1891 = vadd.bf16 %v1859, 1065369472
    %v1892 = vadd.bf16 %v1860, 1065369472
    %v1893 = vadd.bf16 %v1861, 1065369472
    %v1894 = vadd.bf16 %v1862, 1065369472
    %v1895 = vadd.bf16 %v1863, 1065369472
    %v1896 = vadd.bf16 %v1864, 1065369472
    %v1897 = vadd.bf16 %v1865, 1065369472
    %v1898 = vadd.bf16 %v1866, 1065369472
    %v1899 = vadd.bf16 %v1867, 1065369472
    %v1900 = vmul.bf16 %v1868, 1056980736
    %v1901 = vmul.bf16 %v1869, 1056980736
    %v1902 = vmul.bf16 %v1870, 1056980736
    %v1903 = vmul.bf16 %v1871, 1056980736
    %v1904 = vmul.bf16 %v1872, 1056980736
    %v1905 = vmul.bf16 %v1873, 1056980736
    %v1906 = vmul.bf16 %v1874, 1056980736
    %v1907 = vmul.bf16 %v1875, 1056980736
    %v1908 = vmul.bf16 %v1876, 1056980736
    %v1909 = vmul.bf16 %v1877, 1056980736
    %v1910 = vmul.bf16 %v1878, 1056980736
    %v1911 = vmul.bf16 %v1879, 1056980736
    %v1912 = vmul.bf16 %v1880, 1056980736
    %v1913 = vmul.bf16 %v1881, 1056980736
    %v1914 = vmul.bf16 %v1882, 1056980736
    %v1915 = vmul.bf16 %v1883, 1056980736
    %v1916 = vmul.bf16 %v1884, 1056980736
    %v1917 = vmul.bf16 %v1885, 1056980736
    %v1918 = vmul.bf16 %v1886, 1056980736
    %v1919 = vmul.bf16 %v1887, 1056980736
    %v1920 = vmul.bf16 %v1888, 1056980736
    %v1921 = vmul.bf16 %v1889, 1056980736
    %v1922 = vmul.bf16 %v1890, 1056980736
    %v1923 = vmul.bf16 %v1891, 1056980736
    %v1924 = vmul.bf16 %v1892, 1056980736
    %v1925 = vmul.bf16 %v1893, 1056980736
    %v1926 = vmul.bf16 %v1894, 1056980736
    %v1927 = vmul.bf16 %v1895, 1056980736
    %v1928 = vmul.bf16 %v1896, 1056980736
    %v1929 = vmul.bf16 %v1897, 1056980736
    %v1930 = vmul.bf16 %v1898, 1056980736
    %v1931 = vmul.bf16 %v1899, 1056980736
    %v1932 = vmul.bf16 %v1644, %v1900
    %v1933 = vmul.bf16 %v1645, %v1901
    %v1934 = vmul.bf16 %v1646, %v1902
    %v1935 = vmul.bf16 %v1647, %v1903
    %v1936 = vmul.bf16 %v1648, %v1904
    %v1937 = vmul.bf16 %v1649, %v1905
    %v1938 = vmul.bf16 %v1650, %v1906
    %v1939 = vmul.bf16 %v1651, %v1907
    %v1940 = vmul.bf16 %v1652, %v1908
    %v1941 = vmul.bf16 %v1653, %v1909
    %v1942 = vmul.bf16 %v1654, %v1910
    %v1943 = vmul.bf16 %v1655, %v1911
    %v1944 = vmul.bf16 %v1656, %v1912
    %v1945 = vmul.bf16 %v1657, %v1913
    %v1946 = vmul.bf16 %v1658, %v1914
    %v1947 = vmul.bf16 %v1659, %v1915
    %v1948 = vmul.bf16 %v1660, %v1916
    %v1949 = vmul.bf16 %v1661, %v1917
    %v1950 = vmul.bf16 %v1662, %v1918
    %v1951 = vmul.bf16 %v1663, %v1919
    %v1952 = vmul.bf16 %v1664, %v1920
    %v1953 = vmul.bf16 %v1665, %v1921
    %v1954 = vmul.bf16 %v1666, %v1922
    %v1955 = vmul.bf16 %v1667, %v1923
    %v1956 = vmul.bf16 %v1668, %v1924
    %v1957 = vmul.bf16 %v1669, %v1925
    %v1958 = vmul.bf16 %v1670, %v1926
    %v1959 = vmul.bf16 %v1671, %v1927
    %v1960 = vmul.bf16 %v1672, %v1928
    %v1961 = vmul.bf16 %v1673, %v1929
    %v1962 = vmul.bf16 %v1674, %v1930
    %v1963 = vmul.bf16 %v1675, %v1931
    %v1964 = vld [vmem:[#allocation8] sm:$0xf]
    %v1965 = vld [vmem:[#allocation8 + $0x4] sm:$0xf]
    %v1966 = vld [vmem:[#allocation8 + $0x8] sm:$0xf]
    %v1967 = vld [vmem:[#allocation8 + $0xc] sm:$0xf]
    %v1968 = vld [vmem:[#allocation8 + $0x10] sm:$0xf]
    %v1969 = vld [vmem:[#allocation8 + $0x14] sm:$0xf]
    %v1970 = vld [vmem:[#allocation8 + $0x18] sm:$0xf]
    %v1971 = vld [vmem:[#allocation8 + $0x1c] sm:$0xf]
    %v1972 = vld [vmem:[#allocation8 + $0x20] sm:$0xf]
    %v1973 = vld [vmem:[#allocation8 + $0x24] sm:$0xf]
    %v1974 = vld [vmem:[#allocation8 + $0x28] sm:$0xf]
    %v1975 = vld [vmem:[#allocation8 + $0x2c] sm:$0xf]
    %v1976 = vld [vmem:[#allocation8 + $0x30] sm:$0xf]
    %v1977 = vld [vmem:[#allocation8 + $0x34] sm:$0xf]
    %v1978 = vld [vmem:[#allocation8 + $0x38] sm:$0xf]
    %v1979 = vld [vmem:[#allocation8 + $0x3c] sm:$0xf]
    %v1980 = vld [vmem:[#allocation8 + $0x40] sm:$0xf]
    %v1981 = vld [vmem:[#allocation8 + $0x44] sm:$0xf]
    %v1982 = vld [vmem:[#allocation8 + $0x48] sm:$0xf]
    %v1983 = vld [vmem:[#allocation8 + $0x4c] sm:$0xf]
    %v1984 = vld [vmem:[#allocation8 + $0x50] sm:$0xf]
    %v1985 = vld [vmem:[#allocation8 + $0x54] sm:$0xf]
    %v1986 = vld [vmem:[#allocation8 + $0x58] sm:$0xf]
    %v1987 = vld [vmem:[#allocation8 + $0x5c] sm:$0xf]
    %v1988 = vld [vmem:[#allocation8 + $0x60] sm:$0xf]
    %v1989 = vld [vmem:[#allocation8 + $0x64] sm:$0xf]
    %v1990 = vld [vmem:[#allocation8 + $0x68] sm:$0xf]
    %v1991 = vld [vmem:[#allocation8 + $0x6c] sm:$0xf]
    %v1992 = vld [vmem:[#allocation8 + $0x70] sm:$0xf]
    %v1993 = vld [vmem:[#allocation8 + $0x74] sm:$0xf]
    %v1994 = vld [vmem:[#allocation8 + $0x78] sm:$0xf]
    %v1995 = vld [vmem:[#allocation8 + $0x7c] sm:$0xf]
    %v1996 = vld [vmem:[#allocation8 + $0x80] sm:$0xf]
    %v1997 = vld [vmem:[#allocation8 + $0x84] sm:$0xf]
    %v1998 = vld [vmem:[#allocation8 + $0x88] sm:$0xf]
    %v1999 = vld [vmem:[#allocation8 + $0x8c] sm:$0xf]
    %v2000 = vld [vmem:[#allocation8 + $0x90] sm:$0xf]
    %v2001 = vld [vmem:[#allocation8 + $0x94] sm:$0xf]
    %v2002 = vld [vmem:[#allocation8 + $0x98] sm:$0xf]
    %v2003 = vld [vmem:[#allocation8 + $0x9c] sm:$0xf]
    %v2004 = vld [vmem:[#allocation8 + $0xa0] sm:$0xf]
    %v2005 = vld [vmem:[#allocation8 + $0xa4] sm:$0xf]
    %v2006 = vld [vmem:[#allocation8 + $0xa8] sm:$0xf]
    %v2007 = vld [vmem:[#allocation8 + $0xac] sm:$0xf]
    %v2008 = vld [vmem:[#allocation8 + $0xb0] sm:$0xf]
    %v2009 = vld [vmem:[#allocation8 + $0xb4] sm:$0xf]
    %v2010 = vld [vmem:[#allocation8 + $0xb8] sm:$0xf]
    %v2011 = vld [vmem:[#allocation8 + $0xbc] sm:$0xf]
    %v2012 = vld [vmem:[#allocation8 + $0xc0] sm:$0xf]
    %v2013 = vld [vmem:[#allocation8 + $0xc4] sm:$0xf]
    %v2014 = vld [vmem:[#allocation8 + $0xc8] sm:$0xf]
    %v2015 = vld [vmem:[#allocation8 + $0xcc] sm:$0xf]
    %v2016 = vld [vmem:[#allocation8 + $0xd0] sm:$0xf]
    %v2017 = vld [vmem:[#allocation8 + $0xd4] sm:$0xf]
    %v2018 = vld [vmem:[#allocation8 + $0xd8] sm:$0xf]
    %v2019 = vld [vmem:[#allocation8 + $0xdc] sm:$0xf]
    %v2020 = vld [vmem:[#allocation8 + $0xe0] sm:$0xf]
    %v2021 = vld [vmem:[#allocation8 + $0xe4] sm:$0xf]
    %v2022 = vld [vmem:[#allocation8 + $0xe8] sm:$0xf]
    %v2023 = vld [vmem:[#allocation8 + $0xec] sm:$0xf]
    %v2024 = vld [vmem:[#allocation8 + $0xf0] sm:$0xf]
    %v2025 = vld [vmem:[#allocation8 + $0xf4] sm:$0xf]
    %v2026 = vld [vmem:[#allocation8 + $0xf8] sm:$0xf]
    %v2027 = vld [vmem:[#allocation8 + $0xfc] sm:$0xf]
    %v2028 = vld [vmem:[#allocation8 + $0x100] sm:$0xf]
    %v2029 = vld [vmem:[#allocation8 + $0x104] sm:$0xf]
    %v2030 = vld [vmem:[#allocation8 + $0x108] sm:$0xf]
    %v2031 = vld [vmem:[#allocation8 + $0x10c] sm:$0xf]
    %v2032 = vld [vmem:[#allocation8 + $0x110] sm:$0xf]
    %v2033 = vld [vmem:[#allocation8 + $0x114] sm:$0xf]
    %v2034 = vld [vmem:[#allocation8 + $0x118] sm:$0xf]
    %v2035 = vld [vmem:[#allocation8 + $0x11c] sm:$0xf]
    %v2036 = vld [vmem:[#allocation8 + $0x120] sm:$0xf]
    %v2037 = vld [vmem:[#allocation8 + $0x124] sm:$0xf]
    %v2038 = vld [vmem:[#allocation8 + $0x128] sm:$0xf]
    %v2039 = vld [vmem:[#allocation8 + $0x12c] sm:$0xf]
    %v2040 = vld [vmem:[#allocation8 + $0x130] sm:$0xf]
    %v2041 = vld [vmem:[#allocation8 + $0x134] sm:$0xf]
    %v2042 = vld [vmem:[#allocation8 + $0x138] sm:$0xf]
    %v2043 = vld [vmem:[#allocation8 + $0x13c] sm:$0xf]
    %v2044 = vld [vmem:[#allocation8 + $0x140] sm:$0xf]
    %v2045 = vld [vmem:[#allocation8 + $0x144] sm:$0xf]
    %v2046 = vld [vmem:[#allocation8 + $0x148] sm:$0xf]
    %v2047 = vld [vmem:[#allocation8 + $0x14c] sm:$0xf]
    %v2048 = vld [vmem:[#allocation8 + $0x150] sm:$0xf]
    %v2049 = vld [vmem:[#allocation8 + $0x154] sm:$0xf]
    %v2050 = vld [vmem:[#allocation8 + $0x158] sm:$0xf]
    %v2051 = vld [vmem:[#allocation8 + $0x15c] sm:$0xf]
    %v2052 = vld [vmem:[#allocation8 + $0x160] sm:$0xf]
    %v2053 = vld [vmem:[#allocation8 + $0x164] sm:$0xf]
    %v2054 = vld [vmem:[#allocation8 + $0x168] sm:$0xf]
    %v2055 = vld [vmem:[#allocation8 + $0x16c] sm:$0xf]
    %v2056 = vld [vmem:[#allocation8 + $0x170] sm:$0xf]
    %v2057 = vld [vmem:[#allocation8 + $0x174] sm:$0xf]
    %v2058 = vld [vmem:[#allocation8 + $0x178] sm:$0xf]
    %v2059 = vld [vmem:[#allocation8 + $0x17c] sm:$0xf]
    %v2060 = vld [vmem:[#allocation8 + $0x180] sm:$0xf]
    %v2061 = vld [vmem:[#allocation8 + $0x184] sm:$0xf]
    %v2062 = vld [vmem:[#allocation8 + $0x188] sm:$0xf]
    %v2063 = vld [vmem:[#allocation8 + $0x18c] sm:$0xf]
    %v2064 = vld [vmem:[#allocation8 + $0x190] sm:$0xf]
    %v2065 = vld [vmem:[#allocation8 + $0x194] sm:$0xf]
    %v2066 = vld [vmem:[#allocation8 + $0x198] sm:$0xf]
    %v2067 = vld [vmem:[#allocation8 + $0x19c] sm:$0xf]
    %v2068 = vld [vmem:[#allocation8 + $0x1a0] sm:$0xf]
    %v2069 = vld [vmem:[#allocation8 + $0x1a4] sm:$0xf]
    %v2070 = vld [vmem:[#allocation8 + $0x1a8] sm:$0xf]
    %v2071 = vld [vmem:[#allocation8 + $0x1ac] sm:$0xf]
    %v2072 = vld [vmem:[#allocation8 + $0x1b0] sm:$0xf]
    %v2073 = vld [vmem:[#allocation8 + $0x1b4] sm:$0xf]
    %v2074 = vld [vmem:[#allocation8 + $0x1b8] sm:$0xf]
    %v2075 = vld [vmem:[#allocation8 + $0x1bc] sm:$0xf]
    %v2076 = vld [vmem:[#allocation8 + $0x1c0] sm:$0xf]
    %v2077 = vld [vmem:[#allocation8 + $0x1c4] sm:$0xf]
    %v2078 = vld [vmem:[#allocation8 + $0x1c8] sm:$0xf]
    %v2079 = vld [vmem:[#allocation8 + $0x1cc] sm:$0xf]
    %v2080 = vld [vmem:[#allocation8 + $0x1d0] sm:$0xf]
    %v2081 = vld [vmem:[#allocation8 + $0x1d4] sm:$0xf]
    %v2082 = vld [vmem:[#allocation8 + $0x1d8] sm:$0xf]
    %v2083 = vld [vmem:[#allocation8 + $0x1dc] sm:$0xf]
    %v2084 = vld [vmem:[#allocation8 + $0x1e0] sm:$0xf]
    %v2085 = vld [vmem:[#allocation8 + $0x1e4] sm:$0xf]
    %v2086 = vld [vmem:[#allocation8 + $0x1e8] sm:$0xf]
    %v2087 = vld [vmem:[#allocation8 + $0x1ec] sm:$0xf]
    %v2088 = vld [vmem:[#allocation8 + $0x1f0] sm:$0xf]
    %v2089 = vld [vmem:[#allocation8 + $0x1f4] sm:$0xf]
    %v2090 = vld [vmem:[#allocation8 + $0x1f8] sm:$0xf]
    %v2091 = vld [vmem:[#allocation8 + $0x1fc] sm:$0xf]
    %v2092 = vld [vmem:[#allocation8 + $0x200] sm:$0xf]
    %v2093 = vld [vmem:[#allocation8 + $0x204] sm:$0xf]
    %v2094 = vld [vmem:[#allocation8 + $0x208] sm:$0xf]
    %v2095 = vld [vmem:[#allocation8 + $0x20c] sm:$0xf]
    %v2096 = vld [vmem:[#allocation8 + $0x210] sm:$0xf]
    %v2097 = vld [vmem:[#allocation8 + $0x214] sm:$0xf]
    %v2098 = vld [vmem:[#allocation8 + $0x218] sm:$0xf]
    %v2099 = vld [vmem:[#allocation8 + $0x21c] sm:$0xf]
    %v2100 = vld [vmem:[#allocation8 + $0x220] sm:$0xf]
    %v2101 = vld [vmem:[#allocation8 + $0x224] sm:$0xf]
    %v2102 = vld [vmem:[#allocation8 + $0x228] sm:$0xf]
    %v2103 = vld [vmem:[#allocation8 + $0x22c] sm:$0xf]
    %v2104 = vld [vmem:[#allocation8 + $0x230] sm:$0xf]
    %v2105 = vld [vmem:[#allocation8 + $0x234] sm:$0xf]
    %v2106 = vld [vmem:[#allocation8 + $0x238] sm:$0xf]
    %v2107 = vld [vmem:[#allocation8 + $0x23c] sm:$0xf]
    %v2108 = vld [vmem:[#allocation8 + $0x240] sm:$0xf]
    %v2109 = vld [vmem:[#allocation8 + $0x244] sm:$0xf]
    %v2110 = vld [vmem:[#allocation8 + $0x248] sm:$0xf]
    %v2111 = vld [vmem:[#allocation8 + $0x24c] sm:$0xf]
    %v2112 = vld [vmem:[#allocation8 + $0x250] sm:$0xf]
    %v2113 = vld [vmem:[#allocation8 + $0x254] sm:$0xf]
    %v2114 = vld [vmem:[#allocation8 + $0x258] sm:$0xf]
    %v2115 = vld [vmem:[#allocation8 + $0x25c] sm:$0xf]
    %v2116 = vld [vmem:[#allocation8 + $0x260] sm:$0xf]
    %v2117 = vld [vmem:[#allocation8 + $0x264] sm:$0xf]
    %v2118 = vld [vmem:[#allocation8 + $0x268] sm:$0xf]
    %v2119 = vld [vmem:[#allocation8 + $0x26c] sm:$0xf]
    %v2120 = vld [vmem:[#allocation8 + $0x270] sm:$0xf]
    %v2121 = vld [vmem:[#allocation8 + $0x274] sm:$0xf]
    %v2122 = vld [vmem:[#allocation8 + $0x278] sm:$0xf]
    %v2123 = vld [vmem:[#allocation8 + $0x27c] sm:$0xf]
    %v2124 = vld [vmem:[#allocation8 + $0x280] sm:$0xf]
    %v2125 = vld [vmem:[#allocation8 + $0x284] sm:$0xf]
    %v2126 = vld [vmem:[#allocation8 + $0x288] sm:$0xf]
    %v2127 = vld [vmem:[#allocation8 + $0x28c] sm:$0xf]
    %v2128 = vld [vmem:[#allocation8 + $0x290] sm:$0xf]
    %v2129 = vld [vmem:[#allocation8 + $0x294] sm:$0xf]
    %v2130 = vld [vmem:[#allocation8 + $0x298] sm:$0xf]
    %v2131 = vld [vmem:[#allocation8 + $0x29c] sm:$0xf]
    %v2132 = vld [vmem:[#allocation8 + $0x2a0] sm:$0xf]
    %v2133 = vld [vmem:[#allocation8 + $0x2a4] sm:$0xf]
    %v2134 = vld [vmem:[#allocation8 + $0x2a8] sm:$0xf]
    %v2135 = vld [vmem:[#allocation8 + $0x2ac] sm:$0xf]
    %v2136 = vld [vmem:[#allocation8 + $0x2b0] sm:$0xf]
    %v2137 = vld [vmem:[#allocation8 + $0x2b4] sm:$0xf]
    %v2138 = vld [vmem:[#allocation8 + $0x2b8] sm:$0xf]
    %v2139 = vld [vmem:[#allocation8 + $0x2bc] sm:$0xf]
    %v2140 = vld [vmem:[#allocation8 + $0x2c0] sm:$0xf]
    %v2141 = vld [vmem:[#allocation8 + $0x2c4] sm:$0xf]
    %v2142 = vld [vmem:[#allocation8 + $0x2c8] sm:$0xf]
    %v2143 = vld [vmem:[#allocation8 + $0x2cc] sm:$0xf]
    %v2144 = vld [vmem:[#allocation8 + $0x2d0] sm:$0xf]
    %v2145 = vld [vmem:[#allocation8 + $0x2d4] sm:$0xf]
    %v2146 = vld [vmem:[#allocation8 + $0x2d8] sm:$0xf]
    %v2147 = vld [vmem:[#allocation8 + $0x2dc] sm:$0xf]
    %v2148 = vld [vmem:[#allocation8 + $0x2e0] sm:$0xf]
    %v2149 = vld [vmem:[#allocation8 + $0x2e4] sm:$0xf]
    %v2150 = vld [vmem:[#allocation8 + $0x2e8] sm:$0xf]
    %v2151 = vld [vmem:[#allocation8 + $0x2ec] sm:$0xf]
    %v2152 = vld [vmem:[#allocation8 + $0x2f0] sm:$0xf]
    %v2153 = vld [vmem:[#allocation8 + $0x2f4] sm:$0xf]
    %v2154 = vld [vmem:[#allocation8 + $0x2f8] sm:$0xf]
    %v2155 = vld [vmem:[#allocation8 + $0x2fc] sm:$0xf]
    %v2156 = vld [vmem:[#allocation8 + $0x300] sm:$0xf]
    %v2157 = vld [vmem:[#allocation8 + $0x304] sm:$0xf]
    %v2158 = vld [vmem:[#allocation8 + $0x308] sm:$0xf]
    %v2159 = vld [vmem:[#allocation8 + $0x30c] sm:$0xf]
    %v2160 = vld [vmem:[#allocation8 + $0x310] sm:$0xf]
    %v2161 = vld [vmem:[#allocation8 + $0x314] sm:$0xf]
    %v2162 = vld [vmem:[#allocation8 + $0x318] sm:$0xf]
    %v2163 = vld [vmem:[#allocation8 + $0x31c] sm:$0xf]
    %v2164 = vld [vmem:[#allocation8 + $0x320] sm:$0xf]
    %v2165 = vld [vmem:[#allocation8 + $0x324] sm:$0xf]
    %v2166 = vld [vmem:[#allocation8 + $0x328] sm:$0xf]
    %v2167 = vld [vmem:[#allocation8 + $0x32c] sm:$0xf]
    %v2168 = vld [vmem:[#allocation8 + $0x330] sm:$0xf]
    %v2169 = vld [vmem:[#allocation8 + $0x334] sm:$0xf]
    %v2170 = vld [vmem:[#allocation8 + $0x338] sm:$0xf]
    %v2171 = vld [vmem:[#allocation8 + $0x33c] sm:$0xf]
    %v2172 = vld [vmem:[#allocation8 + $0x340] sm:$0xf]
    %v2173 = vld [vmem:[#allocation8 + $0x344] sm:$0xf]
    %v2174 = vld [vmem:[#allocation8 + $0x348] sm:$0xf]
    %v2175 = vld [vmem:[#allocation8 + $0x34c] sm:$0xf]
    %v2176 = vld [vmem:[#allocation8 + $0x350] sm:$0xf]
    %v2177 = vld [vmem:[#allocation8 + $0x354] sm:$0xf]
    %v2178 = vld [vmem:[#allocation8 + $0x358] sm:$0xf]
    %v2179 = vld [vmem:[#allocation8 + $0x35c] sm:$0xf]
    %v2180 = vld [vmem:[#allocation8 + $0x360] sm:$0xf]
    %v2181 = vld [vmem:[#allocation8 + $0x364] sm:$0xf]
    %v2182 = vld [vmem:[#allocation8 + $0x368] sm:$0xf]
    %v2183 = vld [vmem:[#allocation8 + $0x36c] sm:$0xf]
    %v2184 = vld [vmem:[#allocation8 + $0x370] sm:$0xf]
    %v2185 = vld [vmem:[#allocation8 + $0x374] sm:$0xf]
    %v2186 = vld [vmem:[#allocation8 + $0x378] sm:$0xf]
    %v2187 = vld [vmem:[#allocation8 + $0x37c] sm:$0xf]
    %v2188 = vld [vmem:[#allocation8 + $0x380] sm:$0xf]
    %v2189 = vld [vmem:[#allocation8 + $0x384] sm:$0xf]
    %v2190 = vld [vmem:[#allocation8 + $0x388] sm:$0xf]
    %v2191 = vld [vmem:[#allocation8 + $0x38c] sm:$0xf]
    %v2192 = vld [vmem:[#allocation8 + $0x390] sm:$0xf]
    %v2193 = vld [vmem:[#allocation8 + $0x394] sm:$0xf]
    %v2194 = vld [vmem:[#allocation8 + $0x398] sm:$0xf]
    %v2195 = vld [vmem:[#allocation8 + $0x39c] sm:$0xf]
    %v2196 = vld [vmem:[#allocation8 + $0x3a0] sm:$0xf]
    %v2197 = vld [vmem:[#allocation8 + $0x3a4] sm:$0xf]
    %v2198 = vld [vmem:[#allocation8 + $0x3a8] sm:$0xf]
    %v2199 = vld [vmem:[#allocation8 + $0x3ac] sm:$0xf]
    %v2200 = vld [vmem:[#allocation8 + $0x3b0] sm:$0xf]
    %v2201 = vld [vmem:[#allocation8 + $0x3b4] sm:$0xf]
    %v2202 = vld [vmem:[#allocation8 + $0x3b8] sm:$0xf]
    %v2203 = vld [vmem:[#allocation8 + $0x3bc] sm:$0xf]
    %v2204 = vld [vmem:[#allocation8 + $0x3c0] sm:$0xf]
    %v2205 = vld [vmem:[#allocation8 + $0x3c4] sm:$0xf]
    %v2206 = vld [vmem:[#allocation8 + $0x3c8] sm:$0xf]
    %v2207 = vld [vmem:[#allocation8 + $0x3cc] sm:$0xf]
    %v2208 = vld [vmem:[#allocation8 + $0x3d0] sm:$0xf]
    %v2209 = vld [vmem:[#allocation8 + $0x3d4] sm:$0xf]
    %v2210 = vld [vmem:[#allocation8 + $0x3d8] sm:$0xf]
    %v2211 = vld [vmem:[#allocation8 + $0x3dc] sm:$0xf]
    %v2212 = vld [vmem:[#allocation8 + $0x3e0] sm:$0xf]
    %v2213 = vld [vmem:[#allocation8 + $0x3e4] sm:$0xf]
    %v2214 = vld [vmem:[#allocation8 + $0x3e8] sm:$0xf]
    %v2215 = vld [vmem:[#allocation8 + $0x3ec] sm:$0xf]
    %v2216 = vld [vmem:[#allocation8 + $0x3f0] sm:$0xf]
    %v2217 = vld [vmem:[#allocation8 + $0x3f4] sm:$0xf]
    %v2218 = vld [vmem:[#allocation8 + $0x3f8] sm:$0xf]
    %v2219 = vld [vmem:[#allocation8 + $0x3fc] sm:$0xf]
    %v2220 = vld [vmem:[#allocation8 + $0x400] sm:$0xf]
    %v2221 = vld [vmem:[#allocation8 + $0x404] sm:$0xf]
    %v2222 = vld [vmem:[#allocation8 + $0x408] sm:$0xf]
    %v2223 = vld [vmem:[#allocation8 + $0x40c] sm:$0xf]
    %v2224 = vld [vmem:[#allocation8 + $0x410] sm:$0xf]
    %v2225 = vld [vmem:[#allocation8 + $0x414] sm:$0xf]
    %v2226 = vld [vmem:[#allocation8 + $0x418] sm:$0xf]
    %v2227 = vld [vmem:[#allocation8 + $0x41c] sm:$0xf]
    %v2228 = vld [vmem:[#allocation8 + $0x420] sm:$0xf]
    %v2229 = vld [vmem:[#allocation8 + $0x424] sm:$0xf]
    %v2230 = vld [vmem:[#allocation8 + $0x428] sm:$0xf]
    %v2231 = vld [vmem:[#allocation8 + $0x42c] sm:$0xf]
    %v2232 = vld [vmem:[#allocation8 + $0x430] sm:$0xf]
    %v2233 = vld [vmem:[#allocation8 + $0x434] sm:$0xf]
    %v2234 = vld [vmem:[#allocation8 + $0x438] sm:$0xf]
    %v2235 = vld [vmem:[#allocation8 + $0x43c] sm:$0xf]
    %v2236 = vld [vmem:[#allocation8 + $0x440] sm:$0xf]
    %v2237 = vld [vmem:[#allocation8 + $0x444] sm:$0xf]
    %v2238 = vld [vmem:[#allocation8 + $0x448] sm:$0xf]
    %v2239 = vld [vmem:[#allocation8 + $0x44c] sm:$0xf]
    %v2240 = vld [vmem:[#allocation8 + $0x450] sm:$0xf]
    %v2241 = vld [vmem:[#allocation8 + $0x454] sm:$0xf]
    %v2242 = vld [vmem:[#allocation8 + $0x458] sm:$0xf]
    %v2243 = vld [vmem:[#allocation8 + $0x45c] sm:$0xf]
    %v2244 = vld [vmem:[#allocation8 + $0x460] sm:$0xf]
    %v2245 = vld [vmem:[#allocation8 + $0x464] sm:$0xf]
    %v2246 = vld [vmem:[#allocation8 + $0x468] sm:$0xf]
    %v2247 = vld [vmem:[#allocation8 + $0x46c] sm:$0xf]
    %v2248 = vld [vmem:[#allocation8 + $0x470] sm:$0xf]
    %v2249 = vld [vmem:[#allocation8 + $0x474] sm:$0xf]
    %v2250 = vld [vmem:[#allocation8 + $0x478] sm:$0xf]
    %v2251 = vld [vmem:[#allocation8 + $0x47c] sm:$0xf]
    %v2252 = vld [vmem:[#allocation8 + $0x480] sm:$0xf]
    %v2253 = vld [vmem:[#allocation8 + $0x484] sm:$0xf]
    %v2254 = vld [vmem:[#allocation8 + $0x488] sm:$0xf]
    %v2255 = vld [vmem:[#allocation8 + $0x48c] sm:$0xf]
    %v2256 = vld [vmem:[#allocation8 + $0x490] sm:$0xf]
    %v2257 = vld [vmem:[#allocation8 + $0x494] sm:$0xf]
    %v2258 = vld [vmem:[#allocation8 + $0x498] sm:$0xf]
    %v2259 = vld [vmem:[#allocation8 + $0x49c] sm:$0xf]
    %v2260 = vld [vmem:[#allocation8 + $0x4a0] sm:$0xf]
    %v2261 = vld [vmem:[#allocation8 + $0x4a4] sm:$0xf]
    %v2262 = vld [vmem:[#allocation8 + $0x4a8] sm:$0xf]
    %v2263 = vld [vmem:[#allocation8 + $0x4ac] sm:$0xf]
    %v2264 = vld [vmem:[#allocation8 + $0x4b0] sm:$0xf]
    %v2265 = vld [vmem:[#allocation8 + $0x4b4] sm:$0xf]
    %v2266 = vld [vmem:[#allocation8 + $0x4b8] sm:$0xf]
    %v2267 = vld [vmem:[#allocation8 + $0x4bc] sm:$0xf]
    %v2268 = vld [vmem:[#allocation8 + $0x4c0] sm:$0xf]
    %v2269 = vld [vmem:[#allocation8 + $0x4c4] sm:$0xf]
    %v2270 = vld [vmem:[#allocation8 + $0x4c8] sm:$0xf]
    %v2271 = vld [vmem:[#allocation8 + $0x4cc] sm:$0xf]
    %v2272 = vld [vmem:[#allocation8 + $0x4d0] sm:$0xf]
    %v2273 = vld [vmem:[#allocation8 + $0x4d4] sm:$0xf]
    %v2274 = vld [vmem:[#allocation8 + $0x4d8] sm:$0xf]
    %v2275 = vld [vmem:[#allocation8 + $0x4dc] sm:$0xf]
    %v2276 = vld [vmem:[#allocation8 + $0x4e0] sm:$0xf]
    %v2277 = vld [vmem:[#allocation8 + $0x4e4] sm:$0xf]
    %v2278 = vld [vmem:[#allocation8 + $0x4e8] sm:$0xf]
    %v2279 = vld [vmem:[#allocation8 + $0x4ec] sm:$0xf]
    %v2280 = vld [vmem:[#allocation8 + $0x4f0] sm:$0xf]
    %v2281 = vld [vmem:[#allocation8 + $0x4f4] sm:$0xf]
    %v2282 = vld [vmem:[#allocation8 + $0x4f8] sm:$0xf]
    %v2283 = vld [vmem:[#allocation8 + $0x4fc] sm:$0xf]
    %v2284 = vld [vmem:[#allocation8 + $0x500] sm:$0xf]
    %v2285 = vld [vmem:[#allocation8 + $0x504] sm:$0xf]
    %v2286 = vld [vmem:[#allocation8 + $0x508] sm:$0xf]
    %v2287 = vld [vmem:[#allocation8 + $0x50c] sm:$0xf]
    %v2288 = vld [vmem:[#allocation8 + $0x510] sm:$0xf]
    %v2289 = vld [vmem:[#allocation8 + $0x514] sm:$0xf]
    %v2290 = vld [vmem:[#allocation8 + $0x518] sm:$0xf]
    %v2291 = vld [vmem:[#allocation8 + $0x51c] sm:$0xf]
    %v2292 = vld [vmem:[#allocation8 + $0x520] sm:$0xf]
    %v2293 = vld [vmem:[#allocation8 + $0x524] sm:$0xf]
    %v2294 = vld [vmem:[#allocation8 + $0x528] sm:$0xf]
    %v2295 = vld [vmem:[#allocation8 + $0x52c] sm:$0xf]
    %v2296 = vld [vmem:[#allocation8 + $0x530] sm:$0xf]
    %v2297 = vld [vmem:[#allocation8 + $0x534] sm:$0xf]
    %v2298 = vld [vmem:[#allocation8 + $0x538] sm:$0xf]
    %v2299 = vld [vmem:[#allocation8 + $0x53c] sm:$0xf]
    %v2300 = vld [vmem:[#allocation8 + $0x540] sm:$0xf]
    %v2301 = vld [vmem:[#allocation8 + $0x544] sm:$0xf]
    %v2302 = vld [vmem:[#allocation8 + $0x548] sm:$0xf]
    %v2303 = vld [vmem:[#allocation8 + $0x54c] sm:$0xf]
    %v2304 = vld [vmem:[#allocation8 + $0x550] sm:$0xf]
    %v2305 = vld [vmem:[#allocation8 + $0x554] sm:$0xf]
    %v2306 = vld [vmem:[#allocation8 + $0x558] sm:$0xf]
    %v2307 = vld [vmem:[#allocation8 + $0x55c] sm:$0xf]
    %v2308 = vld [vmem:[#allocation8 + $0x560] sm:$0xf]
    %v2309 = vld [vmem:[#allocation8 + $0x564] sm:$0xf]
    %v2310 = vld [vmem:[#allocation8 + $0x568] sm:$0xf]
    %v2311 = vld [vmem:[#allocation8 + $0x56c] sm:$0xf]
    %v2312 = vld [vmem:[#allocation8 + $0x570] sm:$0xf]
    %v2313 = vld [vmem:[#allocation8 + $0x574] sm:$0xf]
    %v2314 = vld [vmem:[#allocation8 + $0x578] sm:$0xf]
    %v2315 = vld [vmem:[#allocation8 + $0x57c] sm:$0xf]
    %v2316 = vld [vmem:[#allocation8 + $0x580] sm:$0xf]
    %v2317 = vld [vmem:[#allocation8 + $0x584] sm:$0xf]
    %v2318 = vld [vmem:[#allocation8 + $0x588] sm:$0xf]
    %v2319 = vld [vmem:[#allocation8 + $0x58c] sm:$0xf]
    %v2320 = vld [vmem:[#allocation8 + $0x590] sm:$0xf]
    %v2321 = vld [vmem:[#allocation8 + $0x594] sm:$0xf]
    %v2322 = vld [vmem:[#allocation8 + $0x598] sm:$0xf]
    %v2323 = vld [vmem:[#allocation8 + $0x59c] sm:$0xf]
    %v2324 = vld [vmem:[#allocation8 + $0x5a0] sm:$0xf]
    %v2325 = vld [vmem:[#allocation8 + $0x5a4] sm:$0xf]
    %v2326 = vld [vmem:[#allocation8 + $0x5a8] sm:$0xf]
    %v2327 = vld [vmem:[#allocation8 + $0x5ac] sm:$0xf]
    %v2328 = vld [vmem:[#allocation8 + $0x5b0] sm:$0xf]
    %v2329 = vld [vmem:[#allocation8 + $0x5b4] sm:$0xf]
    %v2330 = vld [vmem:[#allocation8 + $0x5b8] sm:$0xf]
    %v2331 = vld [vmem:[#allocation8 + $0x5bc] sm:$0xf]
    %v2332 = vld [vmem:[#allocation8 + $0x5c0] sm:$0xf]
    %v2333 = vld [vmem:[#allocation8 + $0x5c4] sm:$0xf]
    %v2334 = vld [vmem:[#allocation8 + $0x5c8] sm:$0xf]
    %v2335 = vld [vmem:[#allocation8 + $0x5cc] sm:$0xf]
    %v2336 = vld [vmem:[#allocation8 + $0x5d0] sm:$0xf]
    %v2337 = vld [vmem:[#allocation8 + $0x5d4] sm:$0xf]
    %v2338 = vld [vmem:[#allocation8 + $0x5d8] sm:$0xf]
    %v2339 = vld [vmem:[#allocation8 + $0x5dc] sm:$0xf]
    %v2340 = vld [vmem:[#allocation8 + $0x5e0] sm:$0xf]
    %v2341 = vld [vmem:[#allocation8 + $0x5e4] sm:$0xf]
    %v2342 = vld [vmem:[#allocation8 + $0x5e8] sm:$0xf]
    %v2343 = vld [vmem:[#allocation8 + $0x5ec] sm:$0xf]
    %v2344 = vld [vmem:[#allocation8 + $0x5f0] sm:$0xf]
    %v2345 = vld [vmem:[#allocation8 + $0x5f4] sm:$0xf]
    %v2346 = vld [vmem:[#allocation8 + $0x5f8] sm:$0xf]
    %v2347 = vld [vmem:[#allocation8 + $0x5fc] sm:$0xf]
    %v2348 = vld [vmem:[#allocation8 + $0x600] sm:$0xf]
    %v2349 = vld [vmem:[#allocation8 + $0x604] sm:$0xf]
    %v2350 = vld [vmem:[#allocation8 + $0x608] sm:$0xf]
    %v2351 = vld [vmem:[#allocation8 + $0x60c] sm:$0xf]
    %v2352 = vld [vmem:[#allocation8 + $0x610] sm:$0xf]
    %v2353 = vld [vmem:[#allocation8 + $0x614] sm:$0xf]
    %v2354 = vld [vmem:[#allocation8 + $0x618] sm:$0xf]
    %v2355 = vld [vmem:[#allocation8 + $0x61c] sm:$0xf]
    %v2356 = vld [vmem:[#allocation8 + $0x620] sm:$0xf]
    %v2357 = vld [vmem:[#allocation8 + $0x624] sm:$0xf]
    %v2358 = vld [vmem:[#allocation8 + $0x628] sm:$0xf]
    %v2359 = vld [vmem:[#allocation8 + $0x62c] sm:$0xf]
    %v2360 = vld [vmem:[#allocation8 + $0x630] sm:$0xf]
    %v2361 = vld [vmem:[#allocation8 + $0x634] sm:$0xf]
    %v2362 = vld [vmem:[#allocation8 + $0x638] sm:$0xf]
    %v2363 = vld [vmem:[#allocation8 + $0x63c] sm:$0xf]
    %v2364 = vld [vmem:[#allocation8 + $0x640] sm:$0xf]
    %v2365 = vld [vmem:[#allocation8 + $0x644] sm:$0xf]
    %v2366 = vld [vmem:[#allocation8 + $0x648] sm:$0xf]
    %v2367 = vld [vmem:[#allocation8 + $0x64c] sm:$0xf]
    %v2368 = vld [vmem:[#allocation8 + $0x650] sm:$0xf]
    %v2369 = vld [vmem:[#allocation8 + $0x654] sm:$0xf]
    %v2370 = vld [vmem:[#allocation8 + $0x658] sm:$0xf]
    %v2371 = vld [vmem:[#allocation8 + $0x65c] sm:$0xf]
    %v2372 = vld [vmem:[#allocation8 + $0x660] sm:$0xf]
    %v2373 = vld [vmem:[#allocation8 + $0x664] sm:$0xf]
    %v2374 = vld [vmem:[#allocation8 + $0x668] sm:$0xf]
    %v2375 = vld [vmem:[#allocation8 + $0x66c] sm:$0xf]
    %v2376 = vld [vmem:[#allocation8 + $0x670] sm:$0xf]
    %v2377 = vld [vmem:[#allocation8 + $0x674] sm:$0xf]
    %v2378 = vld [vmem:[#allocation8 + $0x678] sm:$0xf]
    %v2379 = vld [vmem:[#allocation8 + $0x67c] sm:$0xf]
    %v2380 = vld [vmem:[#allocation8 + $0x680] sm:$0xf]
    %v2381 = vld [vmem:[#allocation8 + $0x684] sm:$0xf]
    %v2382 = vld [vmem:[#allocation8 + $0x688] sm:$0xf]
    %v2383 = vld [vmem:[#allocation8 + $0x68c] sm:$0xf]
    %v2384 = vld [vmem:[#allocation8 + $0x690] sm:$0xf]
    %v2385 = vld [vmem:[#allocation8 + $0x694] sm:$0xf]
    %v2386 = vld [vmem:[#allocation8 + $0x698] sm:$0xf]
    %v2387 = vld [vmem:[#allocation8 + $0x69c] sm:$0xf]
    %v2388 = vld [vmem:[#allocation8 + $0x6a0] sm:$0xf]
    %v2389 = vld [vmem:[#allocation8 + $0x6a4] sm:$0xf]
    %v2390 = vld [vmem:[#allocation8 + $0x6a8] sm:$0xf]
    %v2391 = vld [vmem:[#allocation8 + $0x6ac] sm:$0xf]
    %v2392 = vld [vmem:[#allocation8 + $0x6b0] sm:$0xf]
    %v2393 = vld [vmem:[#allocation8 + $0x6b4] sm:$0xf]
    %v2394 = vld [vmem:[#allocation8 + $0x6b8] sm:$0xf]
    %v2395 = vld [vmem:[#allocation8 + $0x6bc] sm:$0xf]
    %v2396 = vld [vmem:[#allocation8 + $0x6c0] sm:$0xf]
    %v2397 = vld [vmem:[#allocation8 + $0x6c4] sm:$0xf]
    %v2398 = vld [vmem:[#allocation8 + $0x6c8] sm:$0xf]
    %v2399 = vld [vmem:[#allocation8 + $0x6cc] sm:$0xf]
    %v2400 = vld [vmem:[#allocation8 + $0x6d0] sm:$0xf]
    %v2401 = vld [vmem:[#allocation8 + $0x6d4] sm:$0xf]
    %v2402 = vld [vmem:[#allocation8 + $0x6d8] sm:$0xf]
    %v2403 = vld [vmem:[#allocation8 + $0x6dc] sm:$0xf]
    %v2404 = vld [vmem:[#allocation8 + $0x6e0] sm:$0xf]
    %v2405 = vld [vmem:[#allocation8 + $0x6e4] sm:$0xf]
    %v2406 = vld [vmem:[#allocation8 + $0x6e8] sm:$0xf]
    %v2407 = vld [vmem:[#allocation8 + $0x6ec] sm:$0xf]
    %v2408 = vld [vmem:[#allocation8 + $0x6f0] sm:$0xf]
    %v2409 = vld [vmem:[#allocation8 + $0x6f4] sm:$0xf]
    %v2410 = vld [vmem:[#allocation8 + $0x6f8] sm:$0xf]
    %v2411 = vld [vmem:[#allocation8 + $0x6fc] sm:$0xf]
    %v2412 = vld [vmem:[#allocation8 + $0x700] sm:$0xf]
    %v2413 = vld [vmem:[#allocation8 + $0x704] sm:$0xf]
    %v2414 = vld [vmem:[#allocation8 + $0x708] sm:$0xf]
    %v2415 = vld [vmem:[#allocation8 + $0x70c] sm:$0xf]
    %v2416 = vld [vmem:[#allocation8 + $0x710] sm:$0xf]
    %v2417 = vld [vmem:[#allocation8 + $0x714] sm:$0xf]
    %v2418 = vld [vmem:[#allocation8 + $0x718] sm:$0xf]
    %v2419 = vld [vmem:[#allocation8 + $0x71c] sm:$0xf]
    %v2420 = vld [vmem:[#allocation8 + $0x720] sm:$0xf]
    %v2421 = vld [vmem:[#allocation8 + $0x724] sm:$0xf]
    %v2422 = vld [vmem:[#allocation8 + $0x728] sm:$0xf]
    %v2423 = vld [vmem:[#allocation8 + $0x72c] sm:$0xf]
    %v2424 = vld [vmem:[#allocation8 + $0x730] sm:$0xf]
    %v2425 = vld [vmem:[#allocation8 + $0x734] sm:$0xf]
    %v2426 = vld [vmem:[#allocation8 + $0x738] sm:$0xf]
    %v2427 = vld [vmem:[#allocation8 + $0x73c] sm:$0xf]
    %v2428 = vld [vmem:[#allocation8 + $0x740] sm:$0xf]
    %v2429 = vld [vmem:[#allocation8 + $0x744] sm:$0xf]
    %v2430 = vld [vmem:[#allocation8 + $0x748] sm:$0xf]
    %v2431 = vld [vmem:[#allocation8 + $0x74c] sm:$0xf]
    %v2432 = vld [vmem:[#allocation8 + $0x750] sm:$0xf]
    %v2433 = vld [vmem:[#allocation8 + $0x754] sm:$0xf]
    %v2434 = vld [vmem:[#allocation8 + $0x758] sm:$0xf]
    %v2435 = vld [vmem:[#allocation8 + $0x75c] sm:$0xf]
    %v2436 = vld [vmem:[#allocation8 + $0x760] sm:$0xf]
    %v2437 = vld [vmem:[#allocation8 + $0x764] sm:$0xf]
    %v2438 = vld [vmem:[#allocation8 + $0x768] sm:$0xf]
    %v2439 = vld [vmem:[#allocation8 + $0x76c] sm:$0xf]
    %v2440 = vld [vmem:[#allocation8 + $0x770] sm:$0xf]
    %v2441 = vld [vmem:[#allocation8 + $0x774] sm:$0xf]
    %v2442 = vld [vmem:[#allocation8 + $0x778] sm:$0xf]
    %v2443 = vld [vmem:[#allocation8 + $0x77c] sm:$0xf]
    %v2444 = vld [vmem:[#allocation8 + $0x780] sm:$0xf]
    %v2445 = vld [vmem:[#allocation8 + $0x784] sm:$0xf]
    %v2446 = vld [vmem:[#allocation8 + $0x788] sm:$0xf]
    %v2447 = vld [vmem:[#allocation8 + $0x78c] sm:$0xf]
    %v2448 = vld [vmem:[#allocation8 + $0x790] sm:$0xf]
    %v2449 = vld [vmem:[#allocation8 + $0x794] sm:$0xf]
    %v2450 = vld [vmem:[#allocation8 + $0x798] sm:$0xf]
    %v2451 = vld [vmem:[#allocation8 + $0x79c] sm:$0xf]
    %v2452 = vld [vmem:[#allocation8 + $0x7a0] sm:$0xf]
    %v2453 = vld [vmem:[#allocation8 + $0x7a4] sm:$0xf]
    %v2454 = vld [vmem:[#allocation8 + $0x7a8] sm:$0xf]
    %v2455 = vld [vmem:[#allocation8 + $0x7ac] sm:$0xf]
    %v2456 = vld [vmem:[#allocation8 + $0x7b0] sm:$0xf]
    %v2457 = vld [vmem:[#allocation8 + $0x7b4] sm:$0xf]
    %v2458 = vld [vmem:[#allocation8 + $0x7b8] sm:$0xf]
    %v2459 = vld [vmem:[#allocation8 + $0x7bc] sm:$0xf]
    %v2460 = vld [vmem:[#allocation8 + $0x7c0] sm:$0xf]
    %v2461 = vld [vmem:[#allocation8 + $0x7c4] sm:$0xf]
    %v2462 = vld [vmem:[#allocation8 + $0x7c8] sm:$0xf]
    %v2463 = vld [vmem:[#allocation8 + $0x7cc] sm:$0xf]
    %v2464 = vld [vmem:[#allocation8 + $0x7d0] sm:$0xf]
    %v2465 = vld [vmem:[#allocation8 + $0x7d4] sm:$0xf]
    %v2466 = vld [vmem:[#allocation8 + $0x7d8] sm:$0xf]
    %v2467 = vld [vmem:[#allocation8 + $0x7dc] sm:$0xf]
    %v2468 = vld [vmem:[#allocation8 + $0x7e0] sm:$0xf]
    %v2469 = vld [vmem:[#allocation8 + $0x7e4] sm:$0xf]
    %v2470 = vld [vmem:[#allocation8 + $0x7e8] sm:$0xf]
    %v2471 = vld [vmem:[#allocation8 + $0x7ec] sm:$0xf]
    %v2472 = vld [vmem:[#allocation8 + $0x7f0] sm:$0xf]
    %v2473 = vld [vmem:[#allocation8 + $0x7f4] sm:$0xf]
    %v2474 = vld [vmem:[#allocation8 + $0x7f8] sm:$0xf]
    %v2475 = vld [vmem:[#allocation8 + $0x7fc] sm:$0xf]
    %v2476 = vld [vmem:[%s4] sm:$0x1]
    %v2478 = vlaneseq
    %v2479 = vshrl.u32 %v2478, 7
    %v2480 = vsub.s32 0, %v2479
    %v2481 = vrot.slane %v2476, %v2480
    %v2995 = vunpack.c.l.b16 %v1964
    %v2996 = vunpack.c.l.b16 %v1965
    %v2997 = vunpack.c.l.b16 %v1966
    %v2998 = vunpack.c.l.b16 %v1967
    %v2999 = vunpack.c.l.b16 %v1968
    %v3000 = vunpack.c.l.b16 %v1969
    %v3001 = vunpack.c.l.b16 %v1970
    %v3002 = vunpack.c.l.b16 %v1971
    %v3003 = vunpack.c.l.b16 %v1972
    %v3004 = vunpack.c.l.b16 %v1973
    %v3005 = vunpack.c.l.b16 %v1974
    %v3006 = vunpack.c.l.b16 %v1975
    %v3007 = vunpack.c.l.b16 %v1976
    %v3008 = vunpack.c.l.b16 %v1977
    %v3009 = vunpack.c.l.b16 %v1978
    %v3010 = vunpack.c.l.b16 %v1979
    %v3011 = vunpack.c.l.b16 %v1980
    %v3012 = vunpack.c.l.b16 %v1981
    %v3013 = vunpack.c.l.b16 %v1982
    %v3014 = vunpack.c.l.b16 %v1983
    %v3015 = vunpack.c.l.b16 %v1984
    %v3016 = vunpack.c.l.b16 %v1985
    %v3017 = vunpack.c.l.b16 %v1986
    %v3018 = vunpack.c.l.b16 %v1987
    %v3019 = vunpack.c.l.b16 %v1988
    %v3020 = vunpack.c.l.b16 %v1989
    %v3021 = vunpack.c.l.b16 %v1990
    %v3022 = vunpack.c.l.b16 %v1991
    %v3023 = vunpack.c.l.b16 %v1992
    %v3024 = vunpack.c.l.b16 %v1993
    %v3025 = vunpack.c.l.b16 %v1994
    %v3026 = vunpack.c.l.b16 %v1995
    %v3027 = vunpack.c.l.b16 %v1996
    %v3028 = vunpack.c.l.b16 %v1997
    %v3029 = vunpack.c.l.b16 %v1998
    %v3030 = vunpack.c.l.b16 %v1999
    %v3031 = vunpack.c.l.b16 %v2000
    %v3032 = vunpack.c.l.b16 %v2001
    %v3033 = vunpack.c.l.b16 %v2002
    %v3034 = vunpack.c.l.b16 %v2003
    %v3035 = vunpack.c.l.b16 %v2004
    %v3036 = vunpack.c.l.b16 %v2005
    %v3037 = vunpack.c.l.b16 %v2006
    %v3038 = vunpack.c.l.b16 %v2007
    %v3039 = vunpack.c.l.b16 %v2008
    %v3040 = vunpack.c.l.b16 %v2009
    %v3041 = vunpack.c.l.b16 %v2010
    %v3042 = vunpack.c.l.b16 %v2011
    %v3043 = vunpack.c.l.b16 %v2012
    %v3044 = vunpack.c.l.b16 %v2013
    %v3045 = vunpack.c.l.b16 %v2014
    %v3046 = vunpack.c.l.b16 %v2015
    %v3047 = vunpack.c.l.b16 %v2016
    %v3048 = vunpack.c.l.b16 %v2017
    %v3049 = vunpack.c.l.b16 %v2018
    %v3050 = vunpack.c.l.b16 %v2019
    %v3051 = vunpack.c.l.b16 %v2020
    %v3052 = vunpack.c.l.b16 %v2021
    %v3053 = vunpack.c.l.b16 %v2022
    %v3054 = vunpack.c.l.b16 %v2023
    %v3055 = vunpack.c.l.b16 %v2024
    %v3056 = vunpack.c.l.b16 %v2025
    %v3057 = vunpack.c.l.b16 %v2026
    %v3058 = vunpack.c.l.b16 %v2027
    %v3059 = vunpack.c.l.b16 %v2028
    %v3060 = vunpack.c.l.b16 %v2029
    %v3061 = vunpack.c.l.b16 %v2030
    %v3062 = vunpack.c.l.b16 %v2031
    %v3063 = vunpack.c.l.b16 %v2032
    %v3064 = vunpack.c.l.b16 %v2033
    %v3065 = vunpack.c.l.b16 %v2034
    %v3066 = vunpack.c.l.b16 %v2035
    %v3067 = vunpack.c.l.b16 %v2036
    %v3068 = vunpack.c.l.b16 %v2037
    %v3069 = vunpack.c.l.b16 %v2038
    %v3070 = vunpack.c.l.b16 %v2039
    %v3071 = vunpack.c.l.b16 %v2040
    %v3072 = vunpack.c.l.b16 %v2041
    %v3073 = vunpack.c.l.b16 %v2042
    %v3074 = vunpack.c.l.b16 %v2043
    %v3075 = vunpack.c.l.b16 %v2044
    %v3076 = vunpack.c.l.b16 %v2045
    %v3077 = vunpack.c.l.b16 %v2046
    %v3078 = vunpack.c.l.b16 %v2047
    %v3079 = vunpack.c.l.b16 %v2048
    %v3080 = vunpack.c.l.b16 %v2049
    %v3081 = vunpack.c.l.b16 %v2050
    %v3082 = vunpack.c.l.b16 %v2051
    %v3083 = vunpack.c.l.b16 %v2052
    %v3084 = vunpack.c.l.b16 %v2053
    %v3085 = vunpack.c.l.b16 %v2054
    %v3086 = vunpack.c.l.b16 %v2055
    %v3087 = vunpack.c.l.b16 %v2056
    %v3088 = vunpack.c.l.b16 %v2057
    %v3089 = vunpack.c.l.b16 %v2058
    %v3090 = vunpack.c.l.b16 %v2059
    %v3091 = vunpack.c.l.b16 %v2060
    %v3092 = vunpack.c.l.b16 %v2061
    %v3093 = vunpack.c.l.b16 %v2062
    %v3094 = vunpack.c.l.b16 %v2063
    %v3095 = vunpack.c.l.b16 %v2064
    %v3096 = vunpack.c.l.b16 %v2065
    %v3097 = vunpack.c.l.b16 %v2066
    %v3098 = vunpack.c.l.b16 %v2067
    %v3099 = vunpack.c.l.b16 %v2068
    %v3100 = vunpack.c.l.b16 %v2069
    %v3101 = vunpack.c.l.b16 %v2070
    %v3102 = vunpack.c.l.b16 %v2071
    %v3103 = vunpack.c.l.b16 %v2072
    %v3104 = vunpack.c.l.b16 %v2073
    %v3105 = vunpack.c.l.b16 %v2074
    %v3106 = vunpack.c.l.b16 %v2075
    %v3107 = vunpack.c.l.b16 %v2076
    %v3108 = vunpack.c.l.b16 %v2077
    %v3109 = vunpack.c.l.b16 %v2078
    %v3110 = vunpack.c.l.b16 %v2079
    %v3111 = vunpack.c.l.b16 %v2080
    %v3112 = vunpack.c.l.b16 %v2081
    %v3113 = vunpack.c.l.b16 %v2082
    %v3114 = vunpack.c.l.b16 %v2083
    %v3115 = vunpack.c.l.b16 %v2084
    %v3116 = vunpack.c.l.b16 %v2085
    %v3117 = vunpack.c.l.b16 %v2086
    %v3118 = vunpack.c.l.b16 %v2087
    %v3119 = vunpack.c.l.b16 %v2088
    %v3120 = vunpack.c.l.b16 %v2089
    %v3121 = vunpack.c.l.b16 %v2090
    %v3122 = vunpack.c.l.b16 %v2091
    %v3123 = vunpack.c.l.b16 %v2092
    %v3124 = vunpack.c.l.b16 %v2093
    %v3125 = vunpack.c.l.b16 %v2094
    %v3126 = vunpack.c.l.b16 %v2095
    %v3127 = vunpack.c.l.b16 %v2096
    %v3128 = vunpack.c.l.b16 %v2097
    %v3129 = vunpack.c.l.b16 %v2098
    %v3130 = vunpack.c.l.b16 %v2099
    %v3131 = vunpack.c.l.b16 %v2100
    %v3132 = vunpack.c.l.b16 %v2101
    %v3133 = vunpack.c.l.b16 %v2102
    %v3134 = vunpack.c.l.b16 %v2103
    %v3135 = vunpack.c.l.b16 %v2104
    %v3136 = vunpack.c.l.b16 %v2105
    %v3137 = vunpack.c.l.b16 %v2106
    %v3138 = vunpack.c.l.b16 %v2107
    %v3139 = vunpack.c.l.b16 %v2108
    %v3140 = vunpack.c.l.b16 %v2109
    %v3141 = vunpack.c.l.b16 %v2110
    %v3142 = vunpack.c.l.b16 %v2111
    %v3143 = vunpack.c.l.b16 %v2112
    %v3144 = vunpack.c.l.b16 %v2113
    %v3145 = vunpack.c.l.b16 %v2114
    %v3146 = vunpack.c.l.b16 %v2115
    %v3147 = vunpack.c.l.b16 %v2116
    %v3148 = vunpack.c.l.b16 %v2117
    %v3149 = vunpack.c.l.b16 %v2118
    %v3150 = vunpack.c.l.b16 %v2119
    %v3151 = vunpack.c.l.b16 %v2120
    %v3152 = vunpack.c.l.b16 %v2121
    %v3153 = vunpack.c.l.b16 %v2122
    %v3154 = vunpack.c.l.b16 %v2123
    %v3155 = vunpack.c.l.b16 %v2124
    %v3156 = vunpack.c.l.b16 %v2125
    %v3157 = vunpack.c.l.b16 %v2126
    %v3158 = vunpack.c.l.b16 %v2127
    %v3159 = vunpack.c.l.b16 %v2128
    %v3160 = vunpack.c.l.b16 %v2129
    %v3161 = vunpack.c.l.b16 %v2130
    %v3162 = vunpack.c.l.b16 %v2131
    %v3163 = vunpack.c.l.b16 %v2132
    %v3164 = vunpack.c.l.b16 %v2133
    %v3165 = vunpack.c.l.b16 %v2134
    %v3166 = vunpack.c.l.b16 %v2135
    %v3167 = vunpack.c.l.b16 %v2136
    %v3168 = vunpack.c.l.b16 %v2137
    %v3169 = vunpack.c.l.b16 %v2138
    %v3170 = vunpack.c.l.b16 %v2139
    %v3171 = vunpack.c.l.b16 %v2140
    %v3172 = vunpack.c.l.b16 %v2141
    %v3173 = vunpack.c.l.b16 %v2142
    %v3174 = vunpack.c.l.b16 %v2143
    %v3175 = vunpack.c.l.b16 %v2144
    %v3176 = vunpack.c.l.b16 %v2145
    %v3177 = vunpack.c.l.b16 %v2146
    %v3178 = vunpack.c.l.b16 %v2147
    %v3179 = vunpack.c.l.b16 %v2148
    %v3180 = vunpack.c.l.b16 %v2149
    %v3181 = vunpack.c.l.b16 %v2150
    %v3182 = vunpack.c.l.b16 %v2151
    %v3183 = vunpack.c.l.b16 %v2152
    %v3184 = vunpack.c.l.b16 %v2153
    %v3185 = vunpack.c.l.b16 %v2154
    %v3186 = vunpack.c.l.b16 %v2155
    %v3187 = vunpack.c.l.b16 %v2156
    %v3188 = vunpack.c.l.b16 %v2157
    %v3189 = vunpack.c.l.b16 %v2158
    %v3190 = vunpack.c.l.b16 %v2159
    %v3191 = vunpack.c.l.b16 %v2160
    %v3192 = vunpack.c.l.b16 %v2161
    %v3193 = vunpack.c.l.b16 %v2162
    %v3194 = vunpack.c.l.b16 %v2163
    %v3195 = vunpack.c.l.b16 %v2164
    %v3196 = vunpack.c.l.b16 %v2165
    %v3197 = vunpack.c.l.b16 %v2166
    %v3198 = vunpack.c.l.b16 %v2167
    %v3199 = vunpack.c.l.b16 %v2168
    %v3200 = vunpack.c.l.b16 %v2169
    %v3201 = vunpack.c.l.b16 %v2170
    %v3202 = vunpack.c.l.b16 %v2171
    %v3203 = vunpack.c.l.b16 %v2172
    %v3204 = vunpack.c.l.b16 %v2173
    %v3205 = vunpack.c.l.b16 %v2174
    %v3206 = vunpack.c.l.b16 %v2175
    %v3207 = vunpack.c.l.b16 %v2176
    %v3208 = vunpack.c.l.b16 %v2177
    %v3209 = vunpack.c.l.b16 %v2178
    %v3210 = vunpack.c.l.b16 %v2179
    %v3211 = vunpack.c.l.b16 %v2180
    %v3212 = vunpack.c.l.b16 %v2181
    %v3213 = vunpack.c.l.b16 %v2182
    %v3214 = vunpack.c.l.b16 %v2183
    %v3215 = vunpack.c.l.b16 %v2184
    %v3216 = vunpack.c.l.b16 %v2185
    %v3217 = vunpack.c.l.b16 %v2186
    %v3218 = vunpack.c.l.b16 %v2187
    %v3219 = vunpack.c.l.b16 %v2188
    %v3220 = vunpack.c.l.b16 %v2189
    %v3221 = vunpack.c.l.b16 %v2190
    %v3222 = vunpack.c.l.b16 %v2191
    %v3223 = vunpack.c.l.b16 %v2192
    %v3224 = vunpack.c.l.b16 %v2193
    %v3225 = vunpack.c.l.b16 %v2194
    %v3226 = vunpack.c.l.b16 %v2195
    %v3227 = vunpack.c.l.b16 %v2196
    %v3228 = vunpack.c.l.b16 %v2197
    %v3229 = vunpack.c.l.b16 %v2198
    %v3230 = vunpack.c.l.b16 %v2199
    %v3231 = vunpack.c.l.b16 %v2200
    %v3232 = vunpack.c.l.b16 %v2201
    %v3233 = vunpack.c.l.b16 %v2202
    %v3234 = vunpack.c.l.b16 %v2203
    %v3235 = vunpack.c.l.b16 %v2204
    %v3236 = vunpack.c.l.b16 %v2205
    %v3237 = vunpack.c.l.b16 %v2206
    %v3238 = vunpack.c.l.b16 %v2207
    %v3239 = vunpack.c.l.b16 %v2208
    %v3240 = vunpack.c.l.b16 %v2209
    %v3241 = vunpack.c.l.b16 %v2210
    %v3242 = vunpack.c.l.b16 %v2211
    %v3243 = vunpack.c.l.b16 %v2212
    %v3244 = vunpack.c.l.b16 %v2213
    %v3245 = vunpack.c.l.b16 %v2214
    %v3246 = vunpack.c.l.b16 %v2215
    %v3247 = vunpack.c.l.b16 %v2216
    %v3248 = vunpack.c.l.b16 %v2217
    %v3249 = vunpack.c.l.b16 %v2218
    %v3250 = vunpack.c.l.b16 %v2219
    %v3251 = vunpack.c.l.b16 %v2220
    %v3252 = vunpack.c.l.b16 %v2221
    %v3253 = vunpack.c.l.b16 %v2222
    %v3254 = vunpack.c.l.b16 %v2223
    %v3255 = vunpack.c.l.b16 %v2224
    %v3256 = vunpack.c.l.b16 %v2225
    %v3257 = vunpack.c.l.b16 %v2226
    %v3258 = vunpack.c.l.b16 %v2227
    %v3259 = vunpack.c.l.b16 %v2228
    %v3260 = vunpack.c.l.b16 %v2229
    %v3261 = vunpack.c.l.b16 %v2230
    %v3262 = vunpack.c.l.b16 %v2231
    %v3263 = vunpack.c.l.b16 %v2232
    %v3264 = vunpack.c.l.b16 %v2233
    %v3265 = vunpack.c.l.b16 %v2234
    %v3266 = vunpack.c.l.b16 %v2235
    %v3267 = vunpack.c.l.b16 %v2236
    %v3268 = vunpack.c.l.b16 %v2237
    %v3269 = vunpack.c.l.b16 %v2238
    %v3270 = vunpack.c.l.b16 %v2239
    %v3271 = vunpack.c.l.b16 %v2240
    %v3272 = vunpack.c.l.b16 %v2241
    %v3273 = vunpack.c.l.b16 %v2242
    %v3274 = vunpack.c.l.b16 %v2243
    %v3275 = vunpack.c.l.b16 %v2244
    %v3276 = vunpack.c.l.b16 %v2245
    %v3277 = vunpack.c.l.b16 %v2246
    %v3278 = vunpack.c.l.b16 %v2247
    %v3279 = vunpack.c.l.b16 %v2248
    %v3280 = vunpack.c.l.b16 %v2249
    %v3281 = vunpack.c.l.b16 %v2250
    %v3282 = vunpack.c.l.b16 %v2251
    %v3283 = vunpack.c.l.b16 %v2252
    %v3284 = vunpack.c.l.b16 %v2253
    %v3285 = vunpack.c.l.b16 %v2254
    %v3286 = vunpack.c.l.b16 %v2255
    %v3287 = vunpack.c.l.b16 %v2256
    %v3288 = vunpack.c.l.b16 %v2257
    %v3289 = vunpack.c.l.b16 %v2258
    %v3290 = vunpack.c.l.b16 %v2259
    %v3291 = vunpack.c.l.b16 %v2260
    %v3292 = vunpack.c.l.b16 %v2261
    %v3293 = vunpack.c.l.b16 %v2262
    %v3294 = vunpack.c.l.b16 %v2263
    %v3295 = vunpack.c.l.b16 %v2264
    %v3296 = vunpack.c.l.b16 %v2265
    %v3297 = vunpack.c.l.b16 %v2266
    %v3298 = vunpack.c.l.b16 %v2267
    %v3299 = vunpack.c.l.b16 %v2268
    %v3300 = vunpack.c.l.b16 %v2269
    %v3301 = vunpack.c.l.b16 %v2270
    %v3302 = vunpack.c.l.b16 %v2271
    %v3303 = vunpack.c.l.b16 %v2272
    %v3304 = vunpack.c.l.b16 %v2273
    %v3305 = vunpack.c.l.b16 %v2274
    %v3306 = vunpack.c.l.b16 %v2275
    %v3307 = vunpack.c.l.b16 %v2276
    %v3308 = vunpack.c.l.b16 %v2277
    %v3309 = vunpack.c.l.b16 %v2278
    %v3310 = vunpack.c.l.b16 %v2279
    %v3311 = vunpack.c.l.b16 %v2280
    %v3312 = vunpack.c.l.b16 %v2281
    %v3313 = vunpack.c.l.b16 %v2282
    %v3314 = vunpack.c.l.b16 %v2283
    %v3315 = vunpack.c.l.b16 %v2284
    %v3316 = vunpack.c.l.b16 %v2285
    %v3317 = vunpack.c.l.b16 %v2286
    %v3318 = vunpack.c.l.b16 %v2287
    %v3319 = vunpack.c.l.b16 %v2288
    %v3320 = vunpack.c.l.b16 %v2289
    %v3321 = vunpack.c.l.b16 %v2290
    %v3322 = vunpack.c.l.b16 %v2291
    %v3323 = vunpack.c.l.b16 %v2292
    %v3324 = vunpack.c.l.b16 %v2293
    %v3325 = vunpack.c.l.b16 %v2294
    %v3326 = vunpack.c.l.b16 %v2295
    %v3327 = vunpack.c.l.b16 %v2296
    %v3328 = vunpack.c.l.b16 %v2297
    %v3329 = vunpack.c.l.b16 %v2298
    %v3330 = vunpack.c.l.b16 %v2299
    %v3331 = vunpack.c.l.b16 %v2300
    %v3332 = vunpack.c.l.b16 %v2301
    %v3333 = vunpack.c.l.b16 %v2302
    %v3334 = vunpack.c.l.b16 %v2303
    %v3335 = vunpack.c.l.b16 %v2304
    %v3336 = vunpack.c.l.b16 %v2305
    %v3337 = vunpack.c.l.b16 %v2306
    %v3338 = vunpack.c.l.b16 %v2307
    %v3339 = vunpack.c.l.b16 %v2308
    %v3340 = vunpack.c.l.b16 %v2309
    %v3341 = vunpack.c.l.b16 %v2310
    %v3342 = vunpack.c.l.b16 %v2311
    %v3343 = vunpack.c.l.b16 %v2312
    %v3344 = vunpack.c.l.b16 %v2313
    %v3345 = vunpack.c.l.b16 %v2314
    %v3346 = vunpack.c.l.b16 %v2315
    %v3347 = vunpack.c.l.b16 %v2316
    %v3348 = vunpack.c.l.b16 %v2317
    %v3349 = vunpack.c.l.b16 %v2318
    %v3350 = vunpack.c.l.b16 %v2319
    %v3351 = vunpack.c.l.b16 %v2320
    %v3352 = vunpack.c.l.b16 %v2321
    %v3353 = vunpack.c.l.b16 %v2322
    %v3354 = vunpack.c.l.b16 %v2323
    %v3355 = vunpack.c.l.b16 %v2324
    %v3356 = vunpack.c.l.b16 %v2325
    %v3357 = vunpack.c.l.b16 %v2326
    %v3358 = vunpack.c.l.b16 %v2327
    %v3359 = vunpack.c.l.b16 %v2328
    %v3360 = vunpack.c.l.b16 %v2329
    %v3361 = vunpack.c.l.b16 %v2330
    %v3362 = vunpack.c.l.b16 %v2331
    %v3363 = vunpack.c.l.b16 %v2332
    %v3364 = vunpack.c.l.b16 %v2333
    %v3365 = vunpack.c.l.b16 %v2334
    %v3366 = vunpack.c.l.b16 %v2335
    %v3367 = vunpack.c.l.b16 %v2336
    %v3368 = vunpack.c.l.b16 %v2337
    %v3369 = vunpack.c.l.b16 %v2338
    %v3370 = vunpack.c.l.b16 %v2339
    %v3371 = vunpack.c.l.b16 %v2340
    %v3372 = vunpack.c.l.b16 %v2341
    %v3373 = vunpack.c.l.b16 %v2342
    %v3374 = vunpack.c.l.b16 %v2343
    %v3375 = vunpack.c.l.b16 %v2344
    %v3376 = vunpack.c.l.b16 %v2345
    %v3377 = vunpack.c.l.b16 %v2346
    %v3378 = vunpack.c.l.b16 %v2347
    %v3379 = vunpack.c.l.b16 %v2348
    %v3380 = vunpack.c.l.b16 %v2349
    %v3381 = vunpack.c.l.b16 %v2350
    %v3382 = vunpack.c.l.b16 %v2351
    %v3383 = vunpack.c.l.b16 %v2352
    %v3384 = vunpack.c.l.b16 %v2353
    %v3385 = vunpack.c.l.b16 %v2354
    %v3386 = vunpack.c.l.b16 %v2355
    %v3387 = vunpack.c.l.b16 %v2356
    %v3388 = vunpack.c.l.b16 %v2357
    %v3389 = vunpack.c.l.b16 %v2358
    %v3390 = vunpack.c.l.b16 %v2359
    %v3391 = vunpack.c.l.b16 %v2360
    %v3392 = vunpack.c.l.b16 %v2361
    %v3393 = vunpack.c.l.b16 %v2362
    %v3394 = vunpack.c.l.b16 %v2363
    %v3395 = vunpack.c.l.b16 %v2364
    %v3396 = vunpack.c.l.b16 %v2365
    %v3397 = vunpack.c.l.b16 %v2366
    %v3398 = vunpack.c.l.b16 %v2367
    %v3399 = vunpack.c.l.b16 %v2368
    %v3400 = vunpack.c.l.b16 %v2369
    %v3401 = vunpack.c.l.b16 %v2370
    %v3402 = vunpack.c.l.b16 %v2371
    %v3403 = vunpack.c.l.b16 %v2372
    %v3404 = vunpack.c.l.b16 %v2373
    %v3405 = vunpack.c.l.b16 %v2374
    %v3406 = vunpack.c.l.b16 %v2375
    %v3407 = vunpack.c.l.b16 %v2376
    %v3408 = vunpack.c.l.b16 %v2377
    %v3409 = vunpack.c.l.b16 %v2378
    %v3410 = vunpack.c.l.b16 %v2379
    %v3411 = vunpack.c.l.b16 %v2380
    %v3412 = vunpack.c.l.b16 %v2381
    %v3413 = vunpack.c.l.b16 %v2382
    %v3414 = vunpack.c.l.b16 %v2383
    %v3415 = vunpack.c.l.b16 %v2384
    %v3416 = vunpack.c.l.b16 %v2385
    %v3417 = vunpack.c.l.b16 %v2386
    %v3418 = vunpack.c.l.b16 %v2387
    %v3419 = vunpack.c.l.b16 %v2388
    %v3420 = vunpack.c.l.b16 %v2389
    %v3421 = vunpack.c.l.b16 %v2390
    %v3422 = vunpack.c.l.b16 %v2391
    %v3423 = vunpack.c.l.b16 %v2392
    %v3424 = vunpack.c.l.b16 %v2393
    %v3425 = vunpack.c.l.b16 %v2394
    %v3426 = vunpack.c.l.b16 %v2395
    %v3427 = vunpack.c.l.b16 %v2396
    %v3428 = vunpack.c.l.b16 %v2397
    %v3429 = vunpack.c.l.b16 %v2398
    %v3430 = vunpack.c.l.b16 %v2399
    %v3431 = vunpack.c.l.b16 %v2400
    %v3432 = vunpack.c.l.b16 %v2401
    %v3433 = vunpack.c.l.b16 %v2402
    %v3434 = vunpack.c.l.b16 %v2403
    %v3435 = vunpack.c.l.b16 %v2404
    %v3436 = vunpack.c.l.b16 %v2405
    %v3437 = vunpack.c.l.b16 %v2406
    %v3438 = vunpack.c.l.b16 %v2407
    %v3439 = vunpack.c.l.b16 %v2408
    %v3440 = vunpack.c.l.b16 %v2409
    %v3441 = vunpack.c.l.b16 %v2410
    %v3442 = vunpack.c.l.b16 %v2411
    %v3443 = vunpack.c.l.b16 %v2412
    %v3444 = vunpack.c.l.b16 %v2413
    %v3445 = vunpack.c.l.b16 %v2414
    %v3446 = vunpack.c.l.b16 %v2415
    %v3447 = vunpack.c.l.b16 %v2416
    %v3448 = vunpack.c.l.b16 %v2417
    %v3449 = vunpack.c.l.b16 %v2418
    %v3450 = vunpack.c.l.b16 %v2419
    %v3451 = vunpack.c.l.b16 %v2420
    %v3452 = vunpack.c.l.b16 %v2421
    %v3453 = vunpack.c.l.b16 %v2422
    %v3454 = vunpack.c.l.b16 %v2423
    %v3455 = vunpack.c.l.b16 %v2424
    %v3456 = vunpack.c.l.b16 %v2425
    %v3457 = vunpack.c.l.b16 %v2426
    %v3458 = vunpack.c.l.b16 %v2427
    %v3459 = vunpack.c.l.b16 %v2428
    %v3460 = vunpack.c.l.b16 %v2429
    %v3461 = vunpack.c.l.b16 %v2430
    %v3462 = vunpack.c.l.b16 %v2431
    %v3463 = vunpack.c.l.b16 %v2432
    %v3464 = vunpack.c.l.b16 %v2433
    %v3465 = vunpack.c.l.b16 %v2434
    %v3466 = vunpack.c.l.b16 %v2435
    %v3467 = vunpack.c.l.b16 %v2436
    %v3468 = vunpack.c.l.b16 %v2437
    %v3469 = vunpack.c.l.b16 %v2438
    %v3470 = vunpack.c.l.b16 %v2439
    %v3471 = vunpack.c.l.b16 %v2440
    %v3472 = vunpack.c.l.b16 %v2441
    %v3473 = vunpack.c.l.b16 %v2442
    %v3474 = vunpack.c.l.b16 %v2443
    %v3475 = vunpack.c.l.b16 %v2444
    %v3476 = vunpack.c.l.b16 %v2445
    %v3477 = vunpack.c.l.b16 %v2446
    %v3478 = vunpack.c.l.b16 %v2447
    %v3479 = vunpack.c.l.b16 %v2448
    %v3480 = vunpack.c.l.b16 %v2449
    %v3481 = vunpack.c.l.b16 %v2450
    %v3482 = vunpack.c.l.b16 %v2451
    %v3483 = vunpack.c.l.b16 %v2452
    %v3484 = vunpack.c.l.b16 %v2453
    %v3485 = vunpack.c.l.b16 %v2454
    %v3486 = vunpack.c.l.b16 %v2455
    %v3487 = vunpack.c.l.b16 %v2456
    %v3488 = vunpack.c.l.b16 %v2457
    %v3489 = vunpack.c.l.b16 %v2458
    %v3490 = vunpack.c.l.b16 %v2459
    %v3491 = vunpack.c.l.b16 %v2460
    %v3492 = vunpack.c.l.b16 %v2461
    %v3493 = vunpack.c.l.b16 %v2462
    %v3494 = vunpack.c.l.b16 %v2463
    %v3495 = vunpack.c.l.b16 %v2464
    %v3496 = vunpack.c.l.b16 %v2465
    %v3497 = vunpack.c.l.b16 %v2466
    %v3498 = vunpack.c.l.b16 %v2467
    %v3499 = vunpack.c.l.b16 %v2468
    %v3500 = vunpack.c.l.b16 %v2469
    %v3501 = vunpack.c.l.b16 %v2470
    %v3502 = vunpack.c.l.b16 %v2471
    %v3503 = vunpack.c.l.b16 %v2472
    %v3504 = vunpack.c.l.b16 %v2473
    %v3505 = vunpack.c.l.b16 %v2474
    %v3506 = vunpack.c.l.b16 %v2475
    %v3507 = vpack.c.b16 %v2996, %v2995
    %v3508 = vpack.c.b16 %v2998, %v2997
    %v3509 = vpack.c.b16 %v3000, %v2999
    %v3510 = vpack.c.b16 %v3002, %v3001
    %v3511 = vpack.c.b16 %v3004, %v3003
    %v3512 = vpack.c.b16 %v3006, %v3005
    %v3513 = vpack.c.b16 %v3008, %v3007
    %v3514 = vpack.c.b16 %v3010, %v3009
    %v3515 = vpack.c.b16 %v3012, %v3011
    %v3516 = vpack.c.b16 %v3014, %v3013
    %v3517 = vpack.c.b16 %v3016, %v3015
    %v3518 = vpack.c.b16 %v3018, %v3017
    %v3519 = vpack.c.b16 %v3020, %v3019
    %v3520 = vpack.c.b16 %v3022, %v3021
    %v3521 = vpack.c.b16 %v3024, %v3023
    %v3522 = vpack.c.b16 %v3026, %v3025
    %v3523 = vpack.c.b16 %v3028, %v3027
    %v3524 = vpack.c.b16 %v3030, %v3029
    %v3525 = vpack.c.b16 %v3032, %v3031
    %v3526 = vpack.c.b16 %v3034, %v3033
    %v3527 = vpack.c.b16 %v3036, %v3035
    %v3528 = vpack.c.b16 %v3038, %v3037
    %v3529 = vpack.c.b16 %v3040, %v3039
    %v3530 = vpack.c.b16 %v3042, %v3041
    %v3531 = vpack.c.b16 %v3044, %v3043
    %v3532 = vpack.c.b16 %v3046, %v3045
    %v3533 = vpack.c.b16 %v3048, %v3047
    %v3534 = vpack.c.b16 %v3050, %v3049
    %v3535 = vpack.c.b16 %v3052, %v3051
    %v3536 = vpack.c.b16 %v3054, %v3053
    %v3537 = vpack.c.b16 %v3056, %v3055
    %v3538 = vpack.c.b16 %v3058, %v3057
    %v3539 = vpack.c.b16 %v3060, %v3059
    %v3540 = vpack.c.b16 %v3062, %v3061
    %v3541 = vpack.c.b16 %v3064, %v3063
    %v3542 = vpack.c.b16 %v3066, %v3065
    %v3543 = vpack.c.b16 %v3068, %v3067
    %v3544 = vpack.c.b16 %v3070, %v3069
    %v3545 = vpack.c.b16 %v3072, %v3071
    %v3546 = vpack.c.b16 %v3074, %v3073
    %v3547 = vpack.c.b16 %v3076, %v3075
    %v3548 = vpack.c.b16 %v3078, %v3077
    %v3549 = vpack.c.b16 %v3080, %v3079
    %v3550 = vpack.c.b16 %v3082, %v3081
    %v3551 = vpack.c.b16 %v3084, %v3083
    %v3552 = vpack.c.b16 %v3086, %v3085
    %v3553 = vpack.c.b16 %v3088, %v3087
    %v3554 = vpack.c.b16 %v3090, %v3089
    %v3555 = vpack.c.b16 %v3092, %v3091
    %v3556 = vpack.c.b16 %v3094, %v3093
    %v3557 = vpack.c.b16 %v3096, %v3095
    %v3558 = vpack.c.b16 %v3098, %v3097
    %v3559 = vpack.c.b16 %v3100, %v3099
    %v3560 = vpack.c.b16 %v3102, %v3101
    %v3561 = vpack.c.b16 %v3104, %v3103
    %v3562 = vpack.c.b16 %v3106, %v3105
    %v3563 = vpack.c.b16 %v3108, %v3107
    %v3564 = vpack.c.b16 %v3110, %v3109
    %v3565 = vpack.c.b16 %v3112, %v3111
    %v3566 = vpack.c.b16 %v3114, %v3113
    %v3567 = vpack.c.b16 %v3116, %v3115
    %v3568 = vpack.c.b16 %v3118, %v3117
    %v3569 = vpack.c.b16 %v3120, %v3119
    %v3570 = vpack.c.b16 %v3122, %v3121
    %v3571 = vpack.c.b16 %v3124, %v3123
    %v3572 = vpack.c.b16 %v3126, %v3125
    %v3573 = vpack.c.b16 %v3128, %v3127
    %v3574 = vpack.c.b16 %v3130, %v3129
    %v3575 = vpack.c.b16 %v3132, %v3131
    %v3576 = vpack.c.b16 %v3134, %v3133
    %v3577 = vpack.c.b16 %v3136, %v3135
    %v3578 = vpack.c.b16 %v3138, %v3137
    %v3579 = vpack.c.b16 %v3140, %v3139
    %v3580 = vpack.c.b16 %v3142, %v3141
    %v3581 = vpack.c.b16 %v3144, %v3143
    %v3582 = vpack.c.b16 %v3146, %v3145
    %v3583 = vpack.c.b16 %v3148, %v3147
    %v3584 = vpack.c.b16 %v3150, %v3149
    %v3585 = vpack.c.b16 %v3152, %v3151
    %v3586 = vpack.c.b16 %v3154, %v3153
    %v3587 = vpack.c.b16 %v3156, %v3155
    %v3588 = vpack.c.b16 %v3158, %v3157
    %v3589 = vpack.c.b16 %v3160, %v3159
    %v3590 = vpack.c.b16 %v3162, %v3161
    %v3591 = vpack.c.b16 %v3164, %v3163
    %v3592 = vpack.c.b16 %v3166, %v3165
    %v3593 = vpack.c.b16 %v3168, %v3167
    %v3594 = vpack.c.b16 %v3170, %v3169
    %v3595 = vpack.c.b16 %v3172, %v3171
    %v3596 = vpack.c.b16 %v3174, %v3173
    %v3597 = vpack.c.b16 %v3176, %v3175
    %v3598 = vpack.c.b16 %v3178, %v3177
    %v3599 = vpack.c.b16 %v3180, %v3179
    %v3600 = vpack.c.b16 %v3182, %v3181
    %v3601 = vpack.c.b16 %v3184, %v3183
    %v3602 = vpack.c.b16 %v3186, %v3185
    %v3603 = vpack.c.b16 %v3188, %v3187
    %v3604 = vpack.c.b16 %v3190, %v3189
    %v3605 = vpack.c.b16 %v3192, %v3191
    %v3606 = vpack.c.b16 %v3194, %v3193
    %v3607 = vpack.c.b16 %v3196, %v3195
    %v3608 = vpack.c.b16 %v3198, %v3197
    %v3609 = vpack.c.b16 %v3200, %v3199
    %v3610 = vpack.c.b16 %v3202, %v3201
    %v3611 = vpack.c.b16 %v3204, %v3203
    %v3612 = vpack.c.b16 %v3206, %v3205
    %v3613 = vpack.c.b16 %v3208, %v3207
    %v3614 = vpack.c.b16 %v3210, %v3209
    %v3615 = vpack.c.b16 %v3212, %v3211
    %v3616 = vpack.c.b16 %v3214, %v3213
    %v3617 = vpack.c.b16 %v3216, %v3215
    %v3618 = vpack.c.b16 %v3218, %v3217
    %v3619 = vpack.c.b16 %v3220, %v3219
    %v3620 = vpack.c.b16 %v3222, %v3221
    %v3621 = vpack.c.b16 %v3224, %v3223
    %v3622 = vpack.c.b16 %v3226, %v3225
    %v3623 = vpack.c.b16 %v3228, %v3227
    %v3624 = vpack.c.b16 %v3230, %v3229
    %v3625 = vpack.c.b16 %v3232, %v3231
    %v3626 = vpack.c.b16 %v3234, %v3233
    %v3627 = vpack.c.b16 %v3236, %v3235
    %v3628 = vpack.c.b16 %v3238, %v3237
    %v3629 = vpack.c.b16 %v3240, %v3239
    %v3630 = vpack.c.b16 %v3242, %v3241
    %v3631 = vpack.c.b16 %v3244, %v3243
    %v3632 = vpack.c.b16 %v3246, %v3245
    %v3633 = vpack.c.b16 %v3248, %v3247
    %v3634 = vpack.c.b16 %v3250, %v3249
    %v3635 = vpack.c.b16 %v3252, %v3251
    %v3636 = vpack.c.b16 %v3254, %v3253
    %v3637 = vpack.c.b16 %v3256, %v3255
    %v3638 = vpack.c.b16 %v3258, %v3257
    %v3639 = vpack.c.b16 %v3260, %v3259
    %v3640 = vpack.c.b16 %v3262, %v3261
    %v3641 = vpack.c.b16 %v3264, %v3263
    %v3642 = vpack.c.b16 %v3266, %v3265
    %v3643 = vpack.c.b16 %v3268, %v3267
    %v3644 = vpack.c.b16 %v3270, %v3269
    %v3645 = vpack.c.b16 %v3272, %v3271
    %v3646 = vpack.c.b16 %v3274, %v3273
    %v3647 = vpack.c.b16 %v3276, %v3275
    %v3648 = vpack.c.b16 %v3278, %v3277
    %v3649 = vpack.c.b16 %v3280, %v3279
    %v3650 = vpack.c.b16 %v3282, %v3281
    %v3651 = vpack.c.b16 %v3284, %v3283
    %v3652 = vpack.c.b16 %v3286, %v3285
    %v3653 = vpack.c.b16 %v3288, %v3287
    %v3654 = vpack.c.b16 %v3290, %v3289
    %v3655 = vpack.c.b16 %v3292, %v3291
    %v3656 = vpack.c.b16 %v3294, %v3293
    %v3657 = vpack.c.b16 %v3296, %v3295
    %v3658 = vpack.c.b16 %v3298, %v3297
    %v3659 = vpack.c.b16 %v3300, %v3299
    %v3660 = vpack.c.b16 %v3302, %v3301
    %v3661 = vpack.c.b16 %v3304, %v3303
    %v3662 = vpack.c.b16 %v3306, %v3305
    %v3663 = vpack.c.b16 %v3308, %v3307
    %v3664 = vpack.c.b16 %v3310, %v3309
    %v3665 = vpack.c.b16 %v3312, %v3311
    %v3666 = vpack.c.b16 %v3314, %v3313
    %v3667 = vpack.c.b16 %v3316, %v3315
    %v3668 = vpack.c.b16 %v3318, %v3317
    %v3669 = vpack.c.b16 %v3320, %v3319
    %v3670 = vpack.c.b16 %v3322, %v3321
    %v3671 = vpack.c.b16 %v3324, %v3323
    %v3672 = vpack.c.b16 %v3326, %v3325
    %v3673 = vpack.c.b16 %v3328, %v3327
    %v3674 = vpack.c.b16 %v3330, %v3329
    %v3675 = vpack.c.b16 %v3332, %v3331
    %v3676 = vpack.c.b16 %v3334, %v3333
    %v3677 = vpack.c.b16 %v3336, %v3335
    %v3678 = vpack.c.b16 %v3338, %v3337
    %v3679 = vpack.c.b16 %v3340, %v3339
    %v3680 = vpack.c.b16 %v3342, %v3341
    %v3681 = vpack.c.b16 %v3344, %v3343
    %v3682 = vpack.c.b16 %v3346, %v3345
    %v3683 = vpack.c.b16 %v3348, %v3347
    %v3684 = vpack.c.b16 %v3350, %v3349
    %v3685 = vpack.c.b16 %v3352, %v3351
    %v3686 = vpack.c.b16 %v3354, %v3353
    %v3687 = vpack.c.b16 %v3356, %v3355
    %v3688 = vpack.c.b16 %v3358, %v3357
    %v3689 = vpack.c.b16 %v3360, %v3359
    %v3690 = vpack.c.b16 %v3362, %v3361
    %v3691 = vpack.c.b16 %v3364, %v3363
    %v3692 = vpack.c.b16 %v3366, %v3365
    %v3693 = vpack.c.b16 %v3368, %v3367
    %v3694 = vpack.c.b16 %v3370, %v3369
    %v3695 = vpack.c.b16 %v3372, %v3371
    %v3696 = vpack.c.b16 %v3374, %v3373
    %v3697 = vpack.c.b16 %v3376, %v3375
    %v3698 = vpack.c.b16 %v3378, %v3377
    %v3699 = vpack.c.b16 %v3380, %v3379
    %v3700 = vpack.c.b16 %v3382, %v3381
    %v3701 = vpack.c.b16 %v3384, %v3383
    %v3702 = vpack.c.b16 %v3386, %v3385
    %v3703 = vpack.c.b16 %v3388, %v3387
    %v3704 = vpack.c.b16 %v3390, %v3389
    %v3705 = vpack.c.b16 %v3392, %v3391
    %v3706 = vpack.c.b16 %v3394, %v3393
    %v3707 = vpack.c.b16 %v3396, %v3395
    %v3708 = vpack.c.b16 %v3398, %v3397
    %v3709 = vpack.c.b16 %v3400, %v3399
    %v3710 = vpack.c.b16 %v3402, %v3401
    %v3711 = vpack.c.b16 %v3404, %v3403
    %v3712 = vpack.c.b16 %v3406, %v3405
    %v3713 = vpack.c.b16 %v3408, %v3407
    %v3714 = vpack.c.b16 %v3410, %v3409
    %v3715 = vpack.c.b16 %v3412, %v3411
    %v3716 = vpack.c.b16 %v3414, %v3413
    %v3717 = vpack.c.b16 %v3416, %v3415
    %v3718 = vpack.c.b16 %v3418, %v3417
    %v3719 = vpack.c.b16 %v3420, %v3419
    %v3720 = vpack.c.b16 %v3422, %v3421
    %v3721 = vpack.c.b16 %v3424, %v3423
    %v3722 = vpack.c.b16 %v3426, %v3425
    %v3723 = vpack.c.b16 %v3428, %v3427
    %v3724 = vpack.c.b16 %v3430, %v3429
    %v3725 = vpack.c.b16 %v3432, %v3431
    %v3726 = vpack.c.b16 %v3434, %v3433
    %v3727 = vpack.c.b16 %v3436, %v3435
    %v3728 = vpack.c.b16 %v3438, %v3437
    %v3729 = vpack.c.b16 %v3440, %v3439
    %v3730 = vpack.c.b16 %v3442, %v3441
    %v3731 = vpack.c.b16 %v3444, %v3443
    %v3732 = vpack.c.b16 %v3446, %v3445
    %v3733 = vpack.c.b16 %v3448, %v3447
    %v3734 = vpack.c.b16 %v3450, %v3449
    %v3735 = vpack.c.b16 %v3452, %v3451
    %v3736 = vpack.c.b16 %v3454, %v3453
    %v3737 = vpack.c.b16 %v3456, %v3455
    %v3738 = vpack.c.b16 %v3458, %v3457
    %v3739 = vpack.c.b16 %v3460, %v3459
    %v3740 = vpack.c.b16 %v3462, %v3461
    %v3741 = vpack.c.b16 %v3464, %v3463
    %v3742 = vpack.c.b16 %v3466, %v3465
    %v3743 = vpack.c.b16 %v3468, %v3467
    %v3744 = vpack.c.b16 %v3470, %v3469
    %v3745 = vpack.c.b16 %v3472, %v3471
    %v3746 = vpack.c.b16 %v3474, %v3473
    %v3747 = vpack.c.b16 %v3476, %v3475
    %v3748 = vpack.c.b16 %v3478, %v3477
    %v3749 = vpack.c.b16 %v3480, %v3479
    %v3750 = vpack.c.b16 %v3482, %v3481
    %v3751 = vpack.c.b16 %v3484, %v3483
    %v3752 = vpack.c.b16 %v3486, %v3485
    %v3753 = vpack.c.b16 %v3488, %v3487
    %v3754 = vpack.c.b16 %v3490, %v3489
    %v3755 = vpack.c.b16 %v3492, %v3491
    %v3756 = vpack.c.b16 %v3494, %v3493
    %v3757 = vpack.c.b16 %v3496, %v3495
    %v3758 = vpack.c.b16 %v3498, %v3497
    %v3759 = vpack.c.b16 %v3500, %v3499
    %v3760 = vpack.c.b16 %v3502, %v3501
    %v3761 = vpack.c.b16 %v3504, %v3503
    %v3762 = vpack.c.b16 %v3506, %v3505
    %4019 = vmatprep.subr.bf16.mxu0 0
    %4020 = vmatpush1.bf16.msra.mxu0 %v3514
    %4021 = vmatprep.subr.bf16.mxu0 0
    %4022 = vmatpush1.bf16.msra.mxu0 %v3513
    %4023 = vmatprep.subr.bf16.mxu0 0
    %4024 = vmatpush1.bf16.msra.mxu0 %v3512
    %4025 = vmatprep.subr.bf16.mxu0 0
    %4026 = vmatpush1.bf16.msra.mxu0 %v3511
    %4027 = vmatprep.subr.bf16.mxu0 0
    %4028 = vmatpush1.bf16.msra.mxu0 %v3510
    %4029 = vmatprep.subr.bf16.mxu0 0
    %4030 = vmatpush1.bf16.msra.mxu0 %v3509
    %4031 = vmatprep.subr.bf16.mxu0 0
    %4032 = vmatpush1.bf16.msra.mxu0 %v3508
    %4033 = vmatprep.subr.bf16.mxu0 0
    %4034 = vmatpush1.bf16.msra.mxu0 %v3507
    %4035 = vmatprep.subr.bf16.mxu0 0
    %4036 = vmatpush2.bf16.msra.mxu0 %v3522
    %4037 = vmatprep.subr.bf16.mxu0 0
    %4038 = vmatpush2.bf16.msra.mxu0 %v3521
    %4039 = vmatprep.subr.bf16.mxu0 0
    %4040 = vmatpush2.bf16.msra.mxu0 %v3520
    %4041 = vmatprep.subr.bf16.mxu0 0
    %4042 = vmatpush2.bf16.msra.mxu0 %v3519
    %4043 = vmatprep.subr.bf16.mxu0 0
    %4044 = vmatpush2.bf16.msra.mxu0 %v3518
    %4045 = vmatprep.subr.bf16.mxu0 0
    %4046 = vmatpush2.bf16.msra.mxu0 %v3517
    %4047 = vmatprep.subr.bf16.mxu0 0
    %4048 = vmatpush2.bf16.msra.mxu0 %v3516
    %4049 = vmatprep.subr.bf16.mxu0 0
    %4050 = vmatpush2.bf16.msra.mxu0 %v3515
    %4051 = vmatprep.mubr.bf16.mxu0 %v1933
    %4052 = vmatmul.mubr.bf16.gmra.mxu0 %v1932
    %v4053 = vpop.f32.mrf.mxu0
    %v4054 = vadd.f32 %v2481, %v4053
    %v4055 = vpop.f32.mrf.mxu0
    %v4056 = vpop.f32.mrf.mxu0
    %v4057 = vadd.f32 %v2481, %v4056
    %v4058 = vpop.f32.mrf.mxu0
    %4059 = vdwg.mxu0
    %4060 = vmatprep.subr.bf16.mxu0 0
    %4061 = vmatpush1.bf16.msra.mxu0 %v3530
    %4062 = vmatprep.subr.bf16.mxu0 0
    %4063 = vmatpush1.bf16.msra.mxu0 %v3529
    %4064 = vmatprep.subr.bf16.mxu0 0
    %4065 = vmatpush1.bf16.msra.mxu0 %v3528
    %4066 = vmatprep.subr.bf16.mxu0 0
    %4067 = vmatpush1.bf16.msra.mxu0 %v3527
    %4068 = vmatprep.subr.bf16.mxu0 0
    %4069 = vmatpush1.bf16.msra.mxu0 %v3526
    %4070 = vmatprep.subr.bf16.mxu0 0
    %4071 = vmatpush1.bf16.msra.mxu0 %v3525
    %4072 = vmatprep.subr.bf16.mxu0 0
    %4073 = vmatpush1.bf16.msra.mxu0 %v3524
    %4074 = vmatprep.subr.bf16.mxu0 0
    %4075 = vmatpush1.bf16.msra.mxu0 %v3523
    %4076 = vmatprep.subr.bf16.mxu0 0
    %4077 = vmatpush2.bf16.msra.mxu0 %v3538
    %4078 = vmatprep.subr.bf16.mxu0 0
    %4079 = vmatpush2.bf16.msra.mxu0 %v3537
    %4080 = vmatprep.subr.bf16.mxu0 0
    %4081 = vmatpush2.bf16.msra.mxu0 %v3536
    %4082 = vmatprep.subr.bf16.mxu0 0
    %4083 = vmatpush2.bf16.msra.mxu0 %v3535
    %4084 = vmatprep.subr.bf16.mxu0 0
    %4085 = vmatpush2.bf16.msra.mxu0 %v3534
    %4086 = vmatprep.subr.bf16.mxu0 0
    %4087 = vmatpush2.bf16.msra.mxu0 %v3533
    %4088 = vmatprep.subr.bf16.mxu0 0
    %4089 = vmatpush2.bf16.msra.mxu0 %v3532
    %4090 = vmatprep.subr.bf16.mxu0 0
    %4091 = vmatpush2.bf16.msra.mxu0 %v3531
    %4092 = vmatprep.mubr.bf16.mxu0 %v1935
    %4093 = vmatmul.mubr.bf16.gmra.mxu0 %v1934
    %v4094 = vpop.f32.mrf.mxu0
    %v4095 = vadd.f32 %v4054, %v4094
    %v4096 = vpop.f32.mrf.mxu0
    %v4097 = vpop.f32.mrf.mxu0
    %v4098 = vadd.f32 %v4057, %v4097
    %v4099 = vpop.f32.mrf.mxu0
    %4100 = vdwg.mxu0
    %4101 = vmatprep.subr.bf16.mxu0 0
    %4102 = vmatpush1.bf16.msra.mxu0 %v3546
    %4103 = vmatprep.subr.bf16.mxu0 0
    %4104 = vmatpush1.bf16.msra.mxu0 %v3545
    %4105 = vmatprep.subr.bf16.mxu0 0
    %4106 = vmatpush1.bf16.msra.mxu0 %v3544
    %4107 = vmatprep.subr.bf16.mxu0 0
    %4108 = vmatpush1.bf16.msra.mxu0 %v3543
    %4109 = vmatprep.subr.bf16.mxu0 0
    %4110 = vmatpush1.bf16.msra.mxu0 %v3542
    %4111 = vmatprep.subr.bf16.mxu0 0
    %4112 = vmatpush1.bf16.msra.mxu0 %v3541
    %4113 = vmatprep.subr.bf16.mxu0 0
    %4114 = vmatpush1.bf16.msra.mxu0 %v3540
    %4115 = vmatprep.subr.bf16.mxu0 0
    %4116 = vmatpush1.bf16.msra.mxu0 %v3539
    %4117 = vmatprep.subr.bf16.mxu0 0
    %4118 = vmatpush2.bf16.msra.mxu0 %v3554
    %4119 = vmatprep.subr.bf16.mxu0 0
    %4120 = vmatpush2.bf16.msra.mxu0 %v3553
    %4121 = vmatprep.subr.bf16.mxu0 0
    %4122 = vmatpush2.bf16.msra.mxu0 %v3552
    %4123 = vmatprep.subr.bf16.mxu0 0
    %4124 = vmatpush2.bf16.msra.mxu0 %v3551
    %4125 = vmatprep.subr.bf16.mxu0 0
    %4126 = vmatpush2.bf16.msra.mxu0 %v3550
    %4127 = vmatprep.subr.bf16.mxu0 0
    %4128 = vmatpush2.bf16.msra.mxu0 %v3549
    %4129 = vmatprep.subr.bf16.mxu0 0
    %4130 = vmatpush2.bf16.msra.mxu0 %v3548
    %4131 = vmatprep.subr.bf16.mxu0 0
    %4132 = vmatpush2.bf16.msra.mxu0 %v3547
    %4133 = vmatprep.mubr.bf16.mxu0 %v1937
    %4134 = vmatmul.mubr.bf16.gmra.mxu0 %v1936
    %v4135 = vpop.f32.mrf.mxu0
    %v4136 = vadd.f32 %v4095, %v4135
    %v4137 = vpop.f32.mrf.mxu0
    %v4138 = vpop.f32.mrf.mxu0
    %v4139 = vadd.f32 %v4098, %v4138
    %v4140 = vpop.f32.mrf.mxu0
    %4141 = vdwg.mxu0
    %4142 = vmatprep.subr.bf16.mxu0 0
    %4143 = vmatpush1.bf16.msra.mxu0 %v3562
    %4144 = vmatprep.subr.bf16.mxu0 0
    %4145 = vmatpush1.bf16.msra.mxu0 %v3561
    %4146 = vmatprep.subr.bf16.mxu0 0
    %4147 = vmatpush1.bf16.msra.mxu0 %v3560
    %4148 = vmatprep.subr.bf16.mxu0 0
    %4149 = vmatpush1.bf16.msra.mxu0 %v3559
    %4150 = vmatprep.subr.bf16.mxu0 0
    %4151 = vmatpush1.bf16.msra.mxu0 %v3558
    %4152 = vmatprep.subr.bf16.mxu0 0
    %4153 = vmatpush1.bf16.msra.mxu0 %v3557
    %4154 = vmatprep.subr.bf16.mxu0 0
    %4155 = vmatpush1.bf16.msra.mxu0 %v3556
    %4156 = vmatprep.subr.bf16.mxu0 0
    %4157 = vmatpush1.bf16.msra.mxu0 %v3555
    %4158 = vmatprep.subr.bf16.mxu0 0
    %4159 = vmatpush2.bf16.msra.mxu0 %v3570
    %4160 = vmatprep.subr.bf16.mxu0 0
    %4161 = vmatpush2.bf16.msra.mxu0 %v3569
    %4162 = vmatprep.subr.bf16.mxu0 0
    %4163 = vmatpush2.bf16.msra.mxu0 %v3568
    %4164 = vmatprep.subr.bf16.mxu0 0
    %4165 = vmatpush2.bf16.msra.mxu0 %v3567
    %4166 = vmatprep.subr.bf16.mxu0 0
    %4167 = vmatpush2.bf16.msra.mxu0 %v3566
    %4168 = vmatprep.subr.bf16.mxu0 0
    %4169 = vmatpush2.bf16.msra.mxu0 %v3565
    %4170 = vmatprep.subr.bf16.mxu0 0
    %4171 = vmatpush2.bf16.msra.mxu0 %v3564
    %4172 = vmatprep.subr.bf16.mxu0 0
    %4173 = vmatpush2.bf16.msra.mxu0 %v3563
    %4174 = vmatprep.mubr.bf16.mxu0 %v1939
    %4175 = vmatmul.mubr.bf16.gmra.mxu0 %v1938
    %v4176 = vpop.f32.mrf.mxu0
    %v4177 = vadd.f32 %v4136, %v4176
    %v4178 = vpop.f32.mrf.mxu0
    %v4179 = vpop.f32.mrf.mxu0
    %v4180 = vadd.f32 %v4139, %v4179
    %v4181 = vpop.f32.mrf.mxu0
    %4182 = vdwg.mxu0
    %4183 = vmatprep.subr.bf16.mxu0 0
    %4184 = vmatpush1.bf16.msra.mxu0 %v3578
    %4185 = vmatprep.subr.bf16.mxu0 0
    %4186 = vmatpush1.bf16.msra.mxu0 %v3577
    %4187 = vmatprep.subr.bf16.mxu0 0
    %4188 = vmatpush1.bf16.msra.mxu0 %v3576
    %4189 = vmatprep.subr.bf16.mxu0 0
    %4190 = vmatpush1.bf16.msra.mxu0 %v3575
    %4191 = vmatprep.subr.bf16.mxu0 0
    %4192 = vmatpush1.bf16.msra.mxu0 %v3574
    %4193 = vmatprep.subr.bf16.mxu0 0
    %4194 = vmatpush1.bf16.msra.mxu0 %v3573
    %4195 = vmatprep.subr.bf16.mxu0 0
    %4196 = vmatpush1.bf16.msra.mxu0 %v3572
    %4197 = vmatprep.subr.bf16.mxu0 0
    %4198 = vmatpush1.bf16.msra.mxu0 %v3571
    %4199 = vmatprep.subr.bf16.mxu0 0
    %4200 = vmatpush2.bf16.msra.mxu0 %v3586
    %4201 = vmatprep.subr.bf16.mxu0 0
    %4202 = vmatpush2.bf16.msra.mxu0 %v3585
    %4203 = vmatprep.subr.bf16.mxu0 0
    %4204 = vmatpush2.bf16.msra.mxu0 %v3584
    %4205 = vmatprep.subr.bf16.mxu0 0
    %4206 = vmatpush2.bf16.msra.mxu0 %v3583
    %4207 = vmatprep.subr.bf16.mxu0 0
    %4208 = vmatpush2.bf16.msra.mxu0 %v3582
    %4209 = vmatprep.subr.bf16.mxu0 0
    %4210 = vmatpush2.bf16.msra.mxu0 %v3581
    %4211 = vmatprep.subr.bf16.mxu0 0
    %4212 = vmatpush2.bf16.msra.mxu0 %v3580
    %4213 = vmatprep.subr.bf16.mxu0 0
    %4214 = vmatpush2.bf16.msra.mxu0 %v3579
    %4215 = vmatprep.mubr.bf16.mxu0 %v1941
    %4216 = vmatmul.mubr.bf16.gmra.mxu0 %v1940
    %v4217 = vpop.f32.mrf.mxu0
    %v4218 = vadd.f32 %v4177, %v4217
    %v4219 = vpop.f32.mrf.mxu0
    %v4220 = vpop.f32.mrf.mxu0
    %v4221 = vadd.f32 %v4180, %v4220
    %v4222 = vpop.f32.mrf.mxu0
    %4223 = vdwg.mxu0
    %4224 = vmatprep.subr.bf16.mxu0 0
    %4225 = vmatpush1.bf16.msra.mxu0 %v3594
    %4226 = vmatprep.subr.bf16.mxu0 0
    %4227 = vmatpush1.bf16.msra.mxu0 %v3593
    %4228 = vmatprep.subr.bf16.mxu0 0
    %4229 = vmatpush1.bf16.msra.mxu0 %v3592
    %4230 = vmatprep.subr.bf16.mxu0 0
    %4231 = vmatpush1.bf16.msra.mxu0 %v3591
    %4232 = vmatprep.subr.bf16.mxu0 0
    %4233 = vmatpush1.bf16.msra.mxu0 %v3590
    %4234 = vmatprep.subr.bf16.mxu0 0
    %4235 = vmatpush1.bf16.msra.mxu0 %v3589
    %4236 = vmatprep.subr.bf16.mxu0 0
    %4237 = vmatpush1.bf16.msra.mxu0 %v3588
    %4238 = vmatprep.subr.bf16.mxu0 0
    %4239 = vmatpush1.bf16.msra.mxu0 %v3587
    %4240 = vmatprep.subr.bf16.mxu0 0
    %4241 = vmatpush2.bf16.msra.mxu0 %v3602
    %4242 = vmatprep.subr.bf16.mxu0 0
    %4243 = vmatpush2.bf16.msra.mxu0 %v3601
    %4244 = vmatprep.subr.bf16.mxu0 0
    %4245 = vmatpush2.bf16.msra.mxu0 %v3600
    %4246 = vmatprep.subr.bf16.mxu0 0
    %4247 = vmatpush2.bf16.msra.mxu0 %v3599
    %4248 = vmatprep.subr.bf16.mxu0 0
    %4249 = vmatpush2.bf16.msra.mxu0 %v3598
    %4250 = vmatprep.subr.bf16.mxu0 0
    %4251 = vmatpush2.bf16.msra.mxu0 %v3597
    %4252 = vmatprep.subr.bf16.mxu0 0
    %4253 = vmatpush2.bf16.msra.mxu0 %v3596
    %4254 = vmatprep.subr.bf16.mxu0 0
    %4255 = vmatpush2.bf16.msra.mxu0 %v3595
    %4256 = vmatprep.mubr.bf16.mxu0 %v1943
    %4257 = vmatmul.mubr.bf16.gmra.mxu0 %v1942
    %v4258 = vpop.f32.mrf.mxu0
    %v4259 = vadd.f32 %v4218, %v4258
    %v4260 = vpop.f32.mrf.mxu0
    %v4261 = vpop.f32.mrf.mxu0
    %v4262 = vadd.f32 %v4221, %v4261
    %v4263 = vpop.f32.mrf.mxu0
    %4264 = vdwg.mxu0
    %4265 = vmatprep.subr.bf16.mxu0 0
    %4266 = vmatpush1.bf16.msra.mxu0 %v3610
    %4267 = vmatprep.subr.bf16.mxu0 0
    %4268 = vmatpush1.bf16.msra.mxu0 %v3609
    %4269 = vmatprep.subr.bf16.mxu0 0
    %4270 = vmatpush1.bf16.msra.mxu0 %v3608
    %4271 = vmatprep.subr.bf16.mxu0 0
    %4272 = vmatpush1.bf16.msra.mxu0 %v3607
    %4273 = vmatprep.subr.bf16.mxu0 0
    %4274 = vmatpush1.bf16.msra.mxu0 %v3606
    %4275 = vmatprep.subr.bf16.mxu0 0
    %4276 = vmatpush1.bf16.msra.mxu0 %v3605
    %4277 = vmatprep.subr.bf16.mxu0 0
    %4278 = vmatpush1.bf16.msra.mxu0 %v3604
    %4279 = vmatprep.subr.bf16.mxu0 0
    %4280 = vmatpush1.bf16.msra.mxu0 %v3603
    %4281 = vmatprep.subr.bf16.mxu0 0
    %4282 = vmatpush2.bf16.msra.mxu0 %v3618
    %4283 = vmatprep.subr.bf16.mxu0 0
    %4284 = vmatpush2.bf16.msra.mxu0 %v3617
    %4285 = vmatprep.subr.bf16.mxu0 0
    %4286 = vmatpush2.bf16.msra.mxu0 %v3616
    %4287 = vmatprep.subr.bf16.mxu0 0
    %4288 = vmatpush2.bf16.msra.mxu0 %v3615
    %4289 = vmatprep.subr.bf16.mxu0 0
    %4290 = vmatpush2.bf16.msra.mxu0 %v3614
    %4291 = vmatprep.subr.bf16.mxu0 0
    %4292 = vmatpush2.bf16.msra.mxu0 %v3613
    %4293 = vmatprep.subr.bf16.mxu0 0
    %4294 = vmatpush2.bf16.msra.mxu0 %v3612
    %4295 = vmatprep.subr.bf16.mxu0 0
    %4296 = vmatpush2.bf16.msra.mxu0 %v3611
    %4297 = vmatprep.mubr.bf16.mxu0 %v1945
    %4298 = vmatmul.mubr.bf16.gmra.mxu0 %v1944
    %v4299 = vpop.f32.mrf.mxu0
    %v4300 = vadd.f32 %v4259, %v4299
    %v4301 = vpop.f32.mrf.mxu0
    %v4302 = vpop.f32.mrf.mxu0
    %v4303 = vadd.f32 %v4262, %v4302
    %v4304 = vpop.f32.mrf.mxu0
    %4305 = vdwg.mxu0
    %4306 = vmatprep.subr.bf16.mxu0 0
    %4307 = vmatpush1.bf16.msra.mxu0 %v3626
    %4308 = vmatprep.subr.bf16.mxu0 0
    %4309 = vmatpush1.bf16.msra.mxu0 %v3625
    %4310 = vmatprep.subr.bf16.mxu0 0
    %4311 = vmatpush1.bf16.msra.mxu0 %v3624
    %4312 = vmatprep.subr.bf16.mxu0 0
    %4313 = vmatpush1.bf16.msra.mxu0 %v3623
    %4314 = vmatprep.subr.bf16.mxu0 0
    %4315 = vmatpush1.bf16.msra.mxu0 %v3622
    %4316 = vmatprep.subr.bf16.mxu0 0
    %4317 = vmatpush1.bf16.msra.mxu0 %v3621
    %4318 = vmatprep.subr.bf16.mxu0 0
    %4319 = vmatpush1.bf16.msra.mxu0 %v3620
    %4320 = vmatprep.subr.bf16.mxu0 0
    %4321 = vmatpush1.bf16.msra.mxu0 %v3619
    %4322 = vmatprep.subr.bf16.mxu0 0
    %4323 = vmatpush2.bf16.msra.mxu0 %v3634
    %4324 = vmatprep.subr.bf16.mxu0 0
    %4325 = vmatpush2.bf16.msra.mxu0 %v3633
    %4326 = vmatprep.subr.bf16.mxu0 0
    %4327 = vmatpush2.bf16.msra.mxu0 %v3632
    %4328 = vmatprep.subr.bf16.mxu0 0
    %4329 = vmatpush2.bf16.msra.mxu0 %v3631
    %4330 = vmatprep.subr.bf16.mxu0 0
    %4331 = vmatpush2.bf16.msra.mxu0 %v3630
    %4332 = vmatprep.subr.bf16.mxu0 0
    %4333 = vmatpush2.bf16.msra.mxu0 %v3629
    %4334 = vmatprep.subr.bf16.mxu0 0
    %4335 = vmatpush2.bf16.msra.mxu0 %v3628
    %4336 = vmatprep.subr.bf16.mxu0 0
    %4337 = vmatpush2.bf16.msra.mxu0 %v3627
    %4338 = vmatprep.mubr.bf16.mxu0 %v1947
    %4339 = vmatmul.mubr.bf16.gmra.mxu0 %v1946
    %v4340 = vpop.f32.mrf.mxu0
    %v4341 = vadd.f32 %v4300, %v4340
    %v4342 = vpop.f32.mrf.mxu0
    %v4343 = vpop.f32.mrf.mxu0
    %v4344 = vadd.f32 %v4303, %v4343
    %v4345 = vpop.f32.mrf.mxu0
    %4346 = vdwg.mxu0
    %4347 = vmatprep.subr.bf16.mxu0 0
    %4348 = vmatpush1.bf16.msra.mxu0 %v3642
    %4349 = vmatprep.subr.bf16.mxu0 0
    %4350 = vmatpush1.bf16.msra.mxu0 %v3641
    %4351 = vmatprep.subr.bf16.mxu0 0
    %4352 = vmatpush1.bf16.msra.mxu0 %v3640
    %4353 = vmatprep.subr.bf16.mxu0 0
    %4354 = vmatpush1.bf16.msra.mxu0 %v3639
    %4355 = vmatprep.subr.bf16.mxu0 0
    %4356 = vmatpush1.bf16.msra.mxu0 %v3638
    %4357 = vmatprep.subr.bf16.mxu0 0
    %4358 = vmatpush1.bf16.msra.mxu0 %v3637
    %4359 = vmatprep.subr.bf16.mxu0 0
    %4360 = vmatpush1.bf16.msra.mxu0 %v3636
    %4361 = vmatprep.subr.bf16.mxu0 0
    %4362 = vmatpush1.bf16.msra.mxu0 %v3635
    %4363 = vmatprep.subr.bf16.mxu0 0
    %4364 = vmatpush2.bf16.msra.mxu0 %v3650
    %4365 = vmatprep.subr.bf16.mxu0 0
    %4366 = vmatpush2.bf16.msra.mxu0 %v3649
    %4367 = vmatprep.subr.bf16.mxu0 0
    %4368 = vmatpush2.bf16.msra.mxu0 %v3648
    %4369 = vmatprep.subr.bf16.mxu0 0
    %4370 = vmatpush2.bf16.msra.mxu0 %v3647
    %4371 = vmatprep.subr.bf16.mxu0 0
    %4372 = vmatpush2.bf16.msra.mxu0 %v3646
    %4373 = vmatprep.subr.bf16.mxu0 0
    %4374 = vmatpush2.bf16.msra.mxu0 %v3645
    %4375 = vmatprep.subr.bf16.mxu0 0
    %4376 = vmatpush2.bf16.msra.mxu0 %v3644
    %4377 = vmatprep.subr.bf16.mxu0 0
    %4378 = vmatpush2.bf16.msra.mxu0 %v3643
    %4379 = vmatprep.mubr.bf16.mxu0 %v1949
    %4380 = vmatmul.mubr.bf16.gmra.mxu0 %v1948
    %v4381 = vpop.f32.mrf.mxu0
    %v4382 = vadd.f32 %v4341, %v4381
    %v4383 = vpop.f32.mrf.mxu0
    %v4384 = vpop.f32.mrf.mxu0
    %v4385 = vadd.f32 %v4344, %v4384
    %v4386 = vpop.f32.mrf.mxu0
    %4387 = vdwg.mxu0
    %4388 = vmatprep.subr.bf16.mxu0 0
    %4389 = vmatpush1.bf16.msra.mxu0 %v3658
    %4390 = vmatprep.subr.bf16.mxu0 0
    %4391 = vmatpush1.bf16.msra.mxu0 %v3657
    %4392 = vmatprep.subr.bf16.mxu0 0
    %4393 = vmatpush1.bf16.msra.mxu0 %v3656
    %4394 = vmatprep.subr.bf16.mxu0 0
    %4395 = vmatpush1.bf16.msra.mxu0 %v3655
    %4396 = vmatprep.subr.bf16.mxu0 0
    %4397 = vmatpush1.bf16.msra.mxu0 %v3654
    %4398 = vmatprep.subr.bf16.mxu0 0
    %4399 = vmatpush1.bf16.msra.mxu0 %v3653
    %4400 = vmatprep.subr.bf16.mxu0 0
    %4401 = vmatpush1.bf16.msra.mxu0 %v3652
    %4402 = vmatprep.subr.bf16.mxu0 0
    %4403 = vmatpush1.bf16.msra.mxu0 %v3651
    %4404 = vmatprep.subr.bf16.mxu0 0
    %4405 = vmatpush2.bf16.msra.mxu0 %v3666
    %4406 = vmatprep.subr.bf16.mxu0 0
    %4407 = vmatpush2.bf16.msra.mxu0 %v3665
    %4408 = vmatprep.subr.bf16.mxu0 0
    %4409 = vmatpush2.bf16.msra.mxu0 %v3664
    %4410 = vmatprep.subr.bf16.mxu0 0
    %4411 = vmatpush2.bf16.msra.mxu0 %v3663
    %4412 = vmatprep.subr.bf16.mxu0 0
    %4413 = vmatpush2.bf16.msra.mxu0 %v3662
    %4414 = vmatprep.subr.bf16.mxu0 0
    %4415 = vmatpush2.bf16.msra.mxu0 %v3661
    %4416 = vmatprep.subr.bf16.mxu0 0
    %4417 = vmatpush2.bf16.msra.mxu0 %v3660
    %4418 = vmatprep.subr.bf16.mxu0 0
    %4419 = vmatpush2.bf16.msra.mxu0 %v3659
    %4420 = vmatprep.mubr.bf16.mxu0 %v1951
    %4421 = vmatmul.mubr.bf16.gmra.mxu0 %v1950
    %v4422 = vpop.f32.mrf.mxu0
    %v4423 = vadd.f32 %v4382, %v4422
    %v4424 = vpop.f32.mrf.mxu0
    %v4425 = vpop.f32.mrf.mxu0
    %v4426 = vadd.f32 %v4385, %v4425
    %v4427 = vpop.f32.mrf.mxu0
    %4428 = vdwg.mxu0
    %4429 = vmatprep.subr.bf16.mxu0 0
    %4430 = vmatpush1.bf16.msra.mxu0 %v3674
    %4431 = vmatprep.subr.bf16.mxu0 0
    %4432 = vmatpush1.bf16.msra.mxu0 %v3673
    %4433 = vmatprep.subr.bf16.mxu0 0
    %4434 = vmatpush1.bf16.msra.mxu0 %v3672
    %4435 = vmatprep.subr.bf16.mxu0 0
    %4436 = vmatpush1.bf16.msra.mxu0 %v3671
    %4437 = vmatprep.subr.bf16.mxu0 0
    %4438 = vmatpush1.bf16.msra.mxu0 %v3670
    %4439 = vmatprep.subr.bf16.mxu0 0
    %4440 = vmatpush1.bf16.msra.mxu0 %v3669
    %4441 = vmatprep.subr.bf16.mxu0 0
    %4442 = vmatpush1.bf16.msra.mxu0 %v3668
    %4443 = vmatprep.subr.bf16.mxu0 0
    %4444 = vmatpush1.bf16.msra.mxu0 %v3667
    %4445 = vmatprep.subr.bf16.mxu0 0
    %4446 = vmatpush2.bf16.msra.mxu0 %v3682
    %4447 = vmatprep.subr.bf16.mxu0 0
    %4448 = vmatpush2.bf16.msra.mxu0 %v3681
    %4449 = vmatprep.subr.bf16.mxu0 0
    %4450 = vmatpush2.bf16.msra.mxu0 %v3680
    %4451 = vmatprep.subr.bf16.mxu0 0
    %4452 = vmatpush2.bf16.msra.mxu0 %v3679
    %4453 = vmatprep.subr.bf16.mxu0 0
    %4454 = vmatpush2.bf16.msra.mxu0 %v3678
    %4455 = vmatprep.subr.bf16.mxu0 0
    %4456 = vmatpush2.bf16.msra.mxu0 %v3677
    %4457 = vmatprep.subr.bf16.mxu0 0
    %4458 = vmatpush2.bf16.msra.mxu0 %v3676
    %4459 = vmatprep.subr.bf16.mxu0 0
    %4460 = vmatpush2.bf16.msra.mxu0 %v3675
    %4461 = vmatprep.mubr.bf16.mxu0 %v1953
    %4462 = vmatmul.mubr.bf16.gmra.mxu0 %v1952
    %v4463 = vpop.f32.mrf.mxu0
    %v4464 = vadd.f32 %v4423, %v4463
    %v4465 = vpop.f32.mrf.mxu0
    %v4466 = vpop.f32.mrf.mxu0
    %v4467 = vadd.f32 %v4426, %v4466
    %v4468 = vpop.f32.mrf.mxu0
    %4469 = vdwg.mxu0
    %4470 = vmatprep.subr.bf16.mxu0 0
    %4471 = vmatpush1.bf16.msra.mxu0 %v3690
    %4472 = vmatprep.subr.bf16.mxu0 0
    %4473 = vmatpush1.bf16.msra.mxu0 %v3689
    %4474 = vmatprep.subr.bf16.mxu0 0
    %4475 = vmatpush1.bf16.msra.mxu0 %v3688
    %4476 = vmatprep.subr.bf16.mxu0 0
    %4477 = vmatpush1.bf16.msra.mxu0 %v3687
    %4478 = vmatprep.subr.bf16.mxu0 0
    %4479 = vmatpush1.bf16.msra.mxu0 %v3686
    %4480 = vmatprep.subr.bf16.mxu0 0
    %4481 = vmatpush1.bf16.msra.mxu0 %v3685
    %4482 = vmatprep.subr.bf16.mxu0 0
    %4483 = vmatpush1.bf16.msra.mxu0 %v3684
    %4484 = vmatprep.subr.bf16.mxu0 0
    %4485 = vmatpush1.bf16.msra.mxu0 %v3683
    %4486 = vmatprep.subr.bf16.mxu0 0
    %4487 = vmatpush2.bf16.msra.mxu0 %v3698
    %4488 = vmatprep.subr.bf16.mxu0 0
    %4489 = vmatpush2.bf16.msra.mxu0 %v3697
    %4490 = vmatprep.subr.bf16.mxu0 0
    %4491 = vmatpush2.bf16.msra.mxu0 %v3696
    %4492 = vmatprep.subr.bf16.mxu0 0
    %4493 = vmatpush2.bf16.msra.mxu0 %v3695
    %4494 = vmatprep.subr.bf16.mxu0 0
    %4495 = vmatpush2.bf16.msra.mxu0 %v3694
    %4496 = vmatprep.subr.bf16.mxu0 0
    %4497 = vmatpush2.bf16.msra.mxu0 %v3693
    %4498 = vmatprep.subr.bf16.mxu0 0
    %4499 = vmatpush2.bf16.msra.mxu0 %v3692
    %4500 = vmatprep.subr.bf16.mxu0 0
    %4501 = vmatpush2.bf16.msra.mxu0 %v3691
    %4502 = vmatprep.mubr.bf16.mxu0 %v1955
    %4503 = vmatmul.mubr.bf16.gmra.mxu0 %v1954
    %v4504 = vpop.f32.mrf.mxu0
    %v4505 = vadd.f32 %v4464, %v4504
    %v4506 = vpop.f32.mrf.mxu0
    %v4507 = vpop.f32.mrf.mxu0
    %v4508 = vadd.f32 %v4467, %v4507
    %v4509 = vpop.f32.mrf.mxu0
    %4510 = vdwg.mxu0
    %4511 = vmatprep.subr.bf16.mxu0 0
    %4512 = vmatpush1.bf16.msra.mxu0 %v3706
    %4513 = vmatprep.subr.bf16.mxu0 0
    %4514 = vmatpush1.bf16.msra.mxu0 %v3705
    %4515 = vmatprep.subr.bf16.mxu0 0
    %4516 = vmatpush1.bf16.msra.mxu0 %v3704
    %4517 = vmatprep.subr.bf16.mxu0 0
    %4518 = vmatpush1.bf16.msra.mxu0 %v3703
    %4519 = vmatprep.subr.bf16.mxu0 0
    %4520 = vmatpush1.bf16.msra.mxu0 %v3702
    %4521 = vmatprep.subr.bf16.mxu0 0
    %4522 = vmatpush1.bf16.msra.mxu0 %v3701
    %4523 = vmatprep.subr.bf16.mxu0 0
    %4524 = vmatpush1.bf16.msra.mxu0 %v3700
    %4525 = vmatprep.subr.bf16.mxu0 0
    %4526 = vmatpush1.bf16.msra.mxu0 %v3699
    %4527 = vmatprep.subr.bf16.mxu0 0
    %4528 = vmatpush2.bf16.msra.mxu0 %v3714
    %4529 = vmatprep.subr.bf16.mxu0 0
    %4530 = vmatpush2.bf16.msra.mxu0 %v3713
    %4531 = vmatprep.subr.bf16.mxu0 0
    %4532 = vmatpush2.bf16.msra.mxu0 %v3712
    %4533 = vmatprep.subr.bf16.mxu0 0
    %4534 = vmatpush2.bf16.msra.mxu0 %v3711
    %4535 = vmatprep.subr.bf16.mxu0 0
    %4536 = vmatpush2.bf16.msra.mxu0 %v3710
    %4537 = vmatprep.subr.bf16.mxu0 0
    %4538 = vmatpush2.bf16.msra.mxu0 %v3709
    %4539 = vmatprep.subr.bf16.mxu0 0
    %4540 = vmatpush2.bf16.msra.mxu0 %v3708
    %4541 = vmatprep.subr.bf16.mxu0 0
    %4542 = vmatpush2.bf16.msra.mxu0 %v3707
    %4543 = vmatprep.mubr.bf16.mxu0 %v1957
    %4544 = vmatmul.mubr.bf16.gmra.mxu0 %v1956
    %v4545 = vpop.f32.mrf.mxu0
    %v4546 = vadd.f32 %v4505, %v4545
    %v4547 = vpop.f32.mrf.mxu0
    %v4548 = vpop.f32.mrf.mxu0
    %v4549 = vadd.f32 %v4508, %v4548
    %v4550 = vpop.f32.mrf.mxu0
    %4551 = vdwg.mxu0
    %4552 = vmatprep.subr.bf16.mxu0 0
    %4553 = vmatpush1.bf16.msra.mxu0 %v3722
    %4554 = vmatprep.subr.bf16.mxu0 0
    %4555 = vmatpush1.bf16.msra.mxu0 %v3721
    %4556 = vmatprep.subr.bf16.mxu0 0
    %4557 = vmatpush1.bf16.msra.mxu0 %v3720
    %4558 = vmatprep.subr.bf16.mxu0 0
    %4559 = vmatpush1.bf16.msra.mxu0 %v3719
    %4560 = vmatprep.subr.bf16.mxu0 0
    %4561 = vmatpush1.bf16.msra.mxu0 %v3718
    %4562 = vmatprep.subr.bf16.mxu0 0
    %4563 = vmatpush1.bf16.msra.mxu0 %v3717
    %4564 = vmatprep.subr.bf16.mxu0 0
    %4565 = vmatpush1.bf16.msra.mxu0 %v3716
    %4566 = vmatprep.subr.bf16.mxu0 0
    %4567 = vmatpush1.bf16.msra.mxu0 %v3715
    %4568 = vmatprep.subr.bf16.mxu0 0
    %4569 = vmatpush2.bf16.msra.mxu0 %v3730
    %4570 = vmatprep.subr.bf16.mxu0 0
    %4571 = vmatpush2.bf16.msra.mxu0 %v3729
    %4572 = vmatprep.subr.bf16.mxu0 0
    %4573 = vmatpush2.bf16.msra.mxu0 %v3728
    %4574 = vmatprep.subr.bf16.mxu0 0
    %4575 = vmatpush2.bf16.msra.mxu0 %v3727
    %4576 = vmatprep.subr.bf16.mxu0 0
    %4577 = vmatpush2.bf16.msra.mxu0 %v3726
    %4578 = vmatprep.subr.bf16.mxu0 0
    %4579 = vmatpush2.bf16.msra.mxu0 %v3725
    %4580 = vmatprep.subr.bf16.mxu0 0
    %4581 = vmatpush2.bf16.msra.mxu0 %v3724
    %4582 = vmatprep.subr.bf16.mxu0 0
    %4583 = vmatpush2.bf16.msra.mxu0 %v3723
    %4584 = vmatprep.mubr.bf16.mxu0 %v1959
    %4585 = vmatmul.mubr.bf16.gmra.mxu0 %v1958
    %v4586 = vpop.f32.mrf.mxu0
    %v4587 = vadd.f32 %v4546, %v4586
    %v4588 = vpop.f32.mrf.mxu0
    %v4589 = vpop.f32.mrf.mxu0
    %v4590 = vadd.f32 %v4549, %v4589
    %v4591 = vpop.f32.mrf.mxu0
    %4592 = vdwg.mxu0
    %4593 = vmatprep.subr.bf16.mxu0 0
    %4594 = vmatpush1.bf16.msra.mxu0 %v3738
    %4595 = vmatprep.subr.bf16.mxu0 0
    %4596 = vmatpush1.bf16.msra.mxu0 %v3737
    %4597 = vmatprep.subr.bf16.mxu0 0
    %4598 = vmatpush1.bf16.msra.mxu0 %v3736
    %4599 = vmatprep.subr.bf16.mxu0 0
    %4600 = vmatpush1.bf16.msra.mxu0 %v3735
    %4601 = vmatprep.subr.bf16.mxu0 0
    %4602 = vmatpush1.bf16.msra.mxu0 %v3734
    %4603 = vmatprep.subr.bf16.mxu0 0
    %4604 = vmatpush1.bf16.msra.mxu0 %v3733
    %4605 = vmatprep.subr.bf16.mxu0 0
    %4606 = vmatpush1.bf16.msra.mxu0 %v3732
    %4607 = vmatprep.subr.bf16.mxu0 0
    %4608 = vmatpush1.bf16.msra.mxu0 %v3731
    %4609 = vmatprep.subr.bf16.mxu0 0
    %4610 = vmatpush2.bf16.msra.mxu0 %v3746
    %4611 = vmatprep.subr.bf16.mxu0 0
    %4612 = vmatpush2.bf16.msra.mxu0 %v3745
    %4613 = vmatprep.subr.bf16.mxu0 0
    %4614 = vmatpush2.bf16.msra.mxu0 %v3744
    %4615 = vmatprep.subr.bf16.mxu0 0
    %4616 = vmatpush2.bf16.msra.mxu0 %v3743
    %4617 = vmatprep.subr.bf16.mxu0 0
    %4618 = vmatpush2.bf16.msra.mxu0 %v3742
    %4619 = vmatprep.subr.bf16.mxu0 0
    %4620 = vmatpush2.bf16.msra.mxu0 %v3741
    %4621 = vmatprep.subr.bf16.mxu0 0
    %4622 = vmatpush2.bf16.msra.mxu0 %v3740
    %4623 = vmatprep.subr.bf16.mxu0 0
    %4624 = vmatpush2.bf16.msra.mxu0 %v3739
    %4625 = vmatprep.mubr.bf16.mxu0 %v1961
    %4626 = vmatmul.mubr.bf16.gmra.mxu0 %v1960
    %v4627 = vpop.f32.mrf.mxu0
    %v4628 = vadd.f32 %v4587, %v4627
    %v4629 = vpop.f32.mrf.mxu0
    %v4630 = vpop.f32.mrf.mxu0
    %v4631 = vadd.f32 %v4590, %v4630
    %v4632 = vpop.f32.mrf.mxu0
    %4633 = vdwg.mxu0
    %4634 = vmatprep.subr.bf16.mxu0 0
    %4635 = vmatpush1.bf16.msra.mxu0 %v3754
    %4636 = vmatprep.subr.bf16.mxu0 0
    %4637 = vmatpush1.bf16.msra.mxu0 %v3753
    %4638 = vmatprep.subr.bf16.mxu0 0
    %4639 = vmatpush1.bf16.msra.mxu0 %v3752
    %4640 = vmatprep.subr.bf16.mxu0 0
    %4641 = vmatpush1.bf16.msra.mxu0 %v3751
    %4642 = vmatprep.subr.bf16.mxu0 0
    %4643 = vmatpush1.bf16.msra.mxu0 %v3750
    %4644 = vmatprep.subr.bf16.mxu0 0
    %4645 = vmatpush1.bf16.msra.mxu0 %v3749
    %4646 = vmatprep.subr.bf16.mxu0 0
    %4647 = vmatpush1.bf16.msra.mxu0 %v3748
    %4648 = vmatprep.subr.bf16.mxu0 0
    %4649 = vmatpush1.bf16.msra.mxu0 %v3747
    %4650 = vmatprep.subr.bf16.mxu0 0
    %4651 = vmatpush2.bf16.msra.mxu0 %v3762
    %4652 = vmatprep.subr.bf16.mxu0 0
    %4653 = vmatpush2.bf16.msra.mxu0 %v3761
    %4654 = vmatprep.subr.bf16.mxu0 0
    %4655 = vmatpush2.bf16.msra.mxu0 %v3760
    %4656 = vmatprep.subr.bf16.mxu0 0
    %4657 = vmatpush2.bf16.msra.mxu0 %v3759
    %4658 = vmatprep.subr.bf16.mxu0 0
    %4659 = vmatpush2.bf16.msra.mxu0 %v3758
    %4660 = vmatprep.subr.bf16.mxu0 0
    %4661 = vmatpush2.bf16.msra.mxu0 %v3757
    %4662 = vmatprep.subr.bf16.mxu0 0
    %4663 = vmatpush2.bf16.msra.mxu0 %v3756
    %4664 = vmatprep.subr.bf16.mxu0 0
    %4665 = vmatpush2.bf16.msra.mxu0 %v3755
    %4666 = vmatprep.mubr.bf16.mxu0 %v1963
    %4667 = vmatmul.mubr.bf16.gmra.mxu0 %v1962
    %v4668 = vpop.f32.mrf.mxu0
    %v4669 = vadd.f32 %v4628, %v4668
    %v4670 = vpop.f32.mrf.mxu0
    %v4671 = vpop.f32.mrf.mxu0
    %v4672 = vadd.f32 %v4631, %v4671
    %v4673 = vpop.f32.mrf.mxu0
    %4674 = vdwg.mxu0
    %4675 = vst [vmem:[#allocation10] sm:$0xff] %v4669
    %4676 = vst [vmem:[#allocation10 + $0x8] sm:$0xff] %v4672
    %v4677 = vmul.f32 %v4669, %v4669
    %v4678 = vmul.f32 %v4672, %v4672
    %4679 = vadd.xlane.f32.xlu0 %v4677
    %v4680 = vpop.xlane.xlu0 %4679
    %4681 = vadd.xlane.f32.xlu0 %v4678
    %v4682 = vpop.xlane.xlu0 %4681
    %v4683 = vmax.f32 %v4680, 1e-24
    %v4684 = vmax.f32 %v4682, 1e-24
    %v4685 = vrsqrt.pop %v4683
    %v4686 = vrsqrt.pop %v4684
    %v4687 = vmul.f32 %v4669, %v4685
    %v4688 = vmul.f32 %v4672, %v4686
    %v4689 = vpack.c.bf16 %v4688, %v4687
    %v4691 = vunpack.c.l.b16 %v4689
    %v4692 = vunpack.c.h.b16 %v4689
    %v4693 = vpack.c.b16 %v4691, %v4691
    %v4694 = vpack.c.b16 %v4692, %v4692
    %4697 = vst [vmem:[#allocation11] sm:$0xf] %v4693
    %4698 = vst [vmem:[#allocation11 + $0x4] sm:$0xf] %v4694
    // Predicated region
    $region38: #{tpu_custom_call.1} parent=1 // pred_check
      _
    $region39: #{tpu_custom_call.1} parent=1 // pred_check_branch
      %4700 = sbr.rel (0) target = $region41
    $region40: #{tpu_custom_call.1} parent=1 // pred_region
      %s4702 = ssub.s32 256, 256
      %4703 = vsyncadd [#allocation4], %s4702
      %s4704 = sshll.u32 [#allocation10], 4
      %s4705 = int_to_ptr.vmem [resolvable:$true] %s4704
      %4710 = dma.vmem_to_hbm [thread:$0]  %s4705, 256, %s5, [#allocation4], 128, 128, 8
    $region41: #{tpu_custom_call.1} parent=1 // pred_fallthru
      _
    // Predicated region
    $region42: #{tpu_custom_call.1} parent=1 // pred_check
      _
    $region43: #{tpu_custom_call.1} parent=1 // pred_check_branch
      %4712 = sbr.rel (0) target = $region45
    $region44: #{tpu_custom_call.1} parent=1 // pred_region
      %s4714 = ssub.s32 128, 128
      %4715 = vsyncadd [#allocation12], %s4714
      %s4716 = sshll.u32 [#allocation11], 4
      %s4717 = int_to_ptr.vmem [resolvable:$true] %s4716
      %4722 = dma.vmem_to_hbm [thread:$0]  %s4717, 128, %s6, [#allocation12], 64, 64, 4
    $region45: #{tpu_custom_call.1} parent=1 // pred_fallthru
      _
    // Predicated region
    $region46: #{tpu_custom_call.1} parent=1 // pred_check
      _
    $region47: #{tpu_custom_call.1} parent=1 // pred_check_branch
      %4724 = sbr.rel (0) target = $region49
    $region48: #{tpu_custom_call.1} parent=1 // pred_region
      %4725 = dma.done [#allocation4], 256
    $region49: #{tpu_custom_call.1} parent=1 // pred_fallthru
      _
    // Predicated region
    $region50: #{tpu_custom_call.1} parent=1 // pred_check
      _
    $region51: #{tpu_custom_call.1} parent=1 // pred_check_branch
      %4727 = sbr.rel (0) target = $region53
    $region52: #{tpu_custom_call.1} parent=1 // pred_region
      %4728 = dma.done [#allocation12], 128
    $region53: #{tpu_custom_call.1} parent=1 // pred_fallthru
      _
    %4729 = vsyncpa [#allocation3], 1
    %4730 = vsyncpa [#allocation6], 1
    %4731 = vsyncpa [#allocation9], 1
    %4732 = vsyncpa [#allocation4], 1
    %4733 = vsyncpa [#allocation12], 1

</llo_original>
